<compile_context>
chip_gen: v6e
topology: v6e:2x2x1
jax: 0.10.0
libtpu: 0.0.40
codegen_flags: <defaults>
</compile_context>

<pallas_src>
import functools
import random

import numpy as np
import jax
import jax.numpy as jnp
from jax.experimental import pallas as pl
from jax.experimental.pallas import tpu as pltpu

# Problem constants (hard-wired by the PyTorch module).
M, N, I = 28, 28, 48        # spatial dims (m, n) and input channels
K, Q = 2, 14                # W2's (k, q) dims
P = 9                       # unfold kernel height
OUTC = 192                  # output channels

# Kernel layout constants.
PADN = 40                   # per-m padded n-window width (data at cols [OFF, OFF+N))
OFF = 4                     # leading zero columns inside each window
QP = 16                     # q padded to 16 -> per-tap row groups are sublane aligned
MP = 32                     # m padded to 32 windows -> COLS = 1280 = 10 * 128 lanes
COLS = MP * PADN


@functools.lru_cache(maxsize=1)
def _num_grid_blocks():
    """2 blocks (one per TensorCore) on v7x, 1 on single-TC chips (v5e/v6e)."""
    try:
        kind = jax.devices()[0].device_kind.lower().replace(" ", "")
    except Exception:
        return 1
    return 2 if ("v7" in kind or "tpu7" in kind) else 1


def _lane_roll(v, d, cols):
    """Return w with w[:, c] = v[:, (c + d) mod cols] (static d)."""
    s = (-d) % cols
    return v if s == 0 else pltpu.roll(v, shift=s, axis=1)


def _kernel(x_ref, w2t_ref, w1p_ref, o_ref, slab_ref, *, shift, cols):
    # x_ref:    [I, cols]        bf16  x in (i, m, n) order, n zero-padded per window
    # w2t_ref:  [2*QP, I]        bf16  rows [0,14)=W2[:,ka,:]^T, [16,30)=W2[:,kb,:]^T
    # w1p_ref:  [OUTC, P*QP]     bf16  W1 with q padded 14->16, (p,q) flattened
    # o_ref:    [OUTC, cols]     f32   y in (i, m, n-window) order
    # slab_ref: [P*QP, cols]     bf16  VMEM scratch: unfolded + rolled + k-summed taps

    # Stage 1: both W2 slices in one matmul; zero-pad columns of x stay zero.
    t3 = jnp.dot(w2t_ref[...], x_ref[...],
                 preferred_element_type=jnp.float32)          # [2*QP, cols]
    a = t3[0:QP, :]                                           # rows 14,15 are zero
    b = t3[QP:2 * QP, :]

    # Wrap-column mask: col % PADN == OFF + n_star  (n_star static; no vector mod:
    # col // 40 == (col * 1639) >> 16 exactly for col < 2730).
    n_star = 0 if shift == 1 else N - 1
    col = jax.lax.broadcasted_iota(jnp.int32, (1, cols), 1)
    win = (col * 1639) >> 16
    wrap_col = jnp.broadcast_to((col - win * PADN) == (OFF + n_star), (QP, cols))

    # Per tap p, column (m, n) of the slab needs
    #   a[col + (p-4)] + b[col + dm]   on regular rows
    #   a[col + (p-4)] + b[col + dw]   on the single rolled-around row per window.
    # The per-window zero pad columns implement the unfold's zero padding, and all
    # circular roll wrap-around lands in pad columns / unselected branches.
    for p in range(P):
        if shift == 1:
            dm, dw = p - 5, p + 23
        else:
            dm, dw = p - 3, p - 31
        a_p = _lane_roll(a, p - 4, cols)
        b_m = _lane_roll(b, dm, cols)
        b_w = _lane_roll(b, dw, cols)
        piece = a_p + jnp.where(wrap_col, b_w, b_m)           # [QP, cols] f32
        slab_ref[p * QP:(p + 1) * QP, :] = piece.astype(jnp.bfloat16)

    # Stage 2: one dense [OUTC, P*QP] x [P*QP, cols] MXU push.
    o_ref[...] = jnp.dot(w1p_ref[...], slab_ref[...],
                         preferred_element_type=jnp.float32)


@functools.partial(jax.jit, static_argnames=("shift", "nb"))
def _forward(x, w1, w2, shift, nb):
    # x[0] is already (i, m, n): pad m -> MP, pad n into a 40-wide window, cast bf16.
    xpad = jnp.pad(x[0], ((0, 0), (0, MP - M), (OFF, PADN - OFF - N)))   # [I, MP, PADN]
    x2d = xpad.astype(jnp.bfloat16).reshape(I, COLS)                     # [48, 1280]

    ka, kb = (0, 1) if shift == 1 else (1, 0)
    zq = jnp.zeros((QP - Q, I), w2.dtype)
    w2t = jnp.concatenate([w2[:, ka, :].T, zq, w2[:, kb, :].T, zq],
                          axis=0).astype(jnp.bfloat16)                   # [32, 48]
    w1p = jnp.pad(w1, ((0, 0), (0, 0), (0, QP - Q))
                  ).reshape(OUTC, P * QP).astype(jnp.bfloat16)           # [192, 144]

    cb = COLS // nb
    out2d = pl.pallas_call(
        functools.partial(_kernel, shift=shift, cols=cb),
        out_shape=jax.ShapeDtypeStruct((OUTC, COLS), jnp.float32),
        grid_spec=pltpu.PrefetchScalarGridSpec(
            num_scalar_prefetch=0,
            grid=(nb,),
            in_specs=[
                pl.BlockSpec((I, cb), lambda i: (0, i)),
                pl.BlockSpec((2 * QP, I), lambda i: (0, 0)),
                pl.BlockSpec((OUTC, P * QP), lambda i: (0, 0)),
            ],
            out_specs=pl.BlockSpec((OUTC, cb), lambda i: (0, i)),
            scratch_shapes=[pltpu.VMEM((P * QP, cb), jnp.bfloat16)],
        ),
        compiler_params=pltpu.CompilerParams(
            dimension_semantics=("parallel",)),
    )(x2d, w2t, w1p)

    # Output is already (i, m, n-window); strip window/m padding -> [1,192,28,28].
    out = out2d.reshape(OUTC, MP, PADN)[:, :M, OFF:OFF + N]
    return out[None]


def kernel_generated_3_forward(x, w1, w2, shift):
    """x: [1,48,28,28], w1: [192,9,14], w2: [48,2,14] -> [1,192,28,28]."""
    return _forward(x, w1, w2, shift, _num_grid_blocks())


def _reference(x, w1, w2, shift):
    """Pure-numpy re-implementation of the torch forward pass."""
    t3 = np.einsum("limn,ikj->lmnkj", x, w2)                 # [1,28,28,2,14]
    t4 = t3.reshape(1, M, N, K * Q)
    padded = np.zeros((1, M, N + 8, K * Q), dtype=np.float32)
    padded[:, :, 4:4 + N, :] = t4
    cols = np.zeros((1, M, P, N, K * Q), dtype=np.float32)
    for p in range(P):
        cols[:, :, p] = padded[:, :, p:p + N, :]
    t4 = cols.reshape(1, M, P, N, K, Q)
    t4 = t4.reshape(1, M, P, N * K, Q)
    t4 = np.roll(t4, shift, axis=3)
    t4 = t4.reshape(1, M, P, N, K, Q)
    t4 = t4.sum(axis=4)
    return np.einsum("lmjnk,ijk->limn", t4, w1)


if __name__ == "__main__":
    # Deterministic reproduction of `(random.random() > 0.5) * 2 - 1` in __init__.
    random.seed(0)
    module_shift = int((random.random() > 0.5) * 2 - 1)      # -> +1

    key = jax.random.PRNGKey(0)
    kx, k1, k2 = jax.random.split(key, 3)
    x = jax.random.normal(kx, (1, 48, 28, 28), jnp.float32)
    w1 = jax.random.normal(k1, (192, 9, 14), jnp.float32)    # self.weights[0]
    w2 = jax.random.normal(k2, (48, 2, 14), jnp.float32)     # self.weights[1]

    # Check both roll directions (the module picks one at random at init time).
    for shift in (module_shift, -module_shift):
        y = jax.block_until_ready(kernel_generated_3_forward(x, w1, w2, shift))
        assert y.shape == (1, 192, 28, 28), y.shape
        ref = _reference(np.asarray(x), np.asarray(w1), np.asarray(w2), shift)
        rel_err = np.max(np.abs(np.asarray(y) - ref)) / max(np.max(np.abs(ref)), 1e-6)
        assert rel_err < 2e-2, f"shift={shift}: mismatch vs reference, rel_err={rel_err}"
    print("KERNEL_OK")
</pallas_src>

<mosaic_0001>
module attributes {stable_mosaic.version = 11 : i64} {
  func.func @_kernel(%arg0: i32, %arg1: memref<48x1280xbf16, #tpu.memory_space<vmem>>, %arg2: memref<32x48xbf16, #tpu.memory_space<vmem>>, %arg3: memref<192x144xbf16, #tpu.memory_space<vmem>>, %arg4: memref<192x1280xf32, #tpu.memory_space<vmem>>, %arg5: memref<144x1280xbf16, #tpu.memory_space<vmem>>) attributes {dimension_semantics = [#tpu.dimension_semantics<parallel>], iteration_bounds = array<i64: 1>, scalar_prefetch = 0 : i64, scratch_operands = 1 : i64, tpu.core_type = #tpu.core_type<tc>, window_params = [{transform_indices = @transform_0, window_bounds = array<i64: 48, 1280>}, {pipeline_mode = #tpu.pipeline_mode<synchronous>, transform_indices = @transform_1, window_bounds = array<i64: 32, 48>}, {pipeline_mode = #tpu.pipeline_mode<synchronous>, transform_indices = @transform_2, window_bounds = array<i64: 192, 144>}, {transform_indices = @transform_3, window_bounds = array<i64: 192, 1280>}]} {
    %c0 = arith.constant 0 : index
    %c0_0 = arith.constant 0 : index
    %0 = vector.load %arg2[%c0, %c0_0] : memref<32x48xbf16, #tpu.memory_space<vmem>>, vector<32x48xbf16>
    %c0_1 = arith.constant 0 : index
    %c0_2 = arith.constant 0 : index
    %1 = vector.load %arg1[%c0_1, %c0_2] : memref<48x1280xbf16, #tpu.memory_space<vmem>>, vector<48x1280xbf16>
    %cst = arith.constant dense<0.000000e+00> : vector<32x1280xf32>
    %2 = tpu.matmul %0, %1, %cst {dimension_numbers = #tpu.dot_dimension_numbers<[1], [0], [0], [1], [0, 0, 1, 1], [], []>} : vector<32x48xbf16>, vector<48x1280xbf16>, vector<32x1280xf32> -> vector<32x1280xf32>
    %3 = vector.extract_strided_slice %2 {offsets = [0, 0], sizes = [16, 1280], strides = [1, 1]} : vector<32x1280xf32> to vector<16x1280xf32>
    %4 = vector.extract_strided_slice %2 {offsets = [16, 0], sizes = [16, 1280], strides = [1, 1]} : vector<32x1280xf32> to vector<16x1280xf32>
    %5 = tpu.iota {dimensions = array<i32: 1>} : vector<1x1280xi32>
    %c1639_i32 = arith.constant 1639 : i32
    %6 = vector.broadcast %c1639_i32 : i32 to vector<1x1280xi32>
    %7 = arith.muli %5, %6 : vector<1x1280xi32>
    %c16_i32 = arith.constant 16 : i32
    %8 = vector.broadcast %c16_i32 : i32 to vector<1x1280xi32>
    %9 = arith.shrsi %7, %8 : vector<1x1280xi32>
    %c40_i32 = arith.constant 40 : i32
    %10 = vector.broadcast %c40_i32 : i32 to vector<1x1280xi32>
    %11 = arith.muli %9, %10 : vector<1x1280xi32>
    %12 = arith.subi %5, %11 : vector<1x1280xi32>
    %c4_i32 = arith.constant 4 : i32
    %13 = vector.broadcast %c4_i32 : i32 to vector<1x1280xi32>
    %14 = arith.cmpi eq, %12, %13 : vector<1x1280xi32>
    %15 = vector.shape_cast %14 : vector<1x1280xi1> to vector<1x1280xi1>
    %16 = vector.broadcast %15 : vector<1x1280xi1> to vector<16x1280xi1>
    %c4_i32_3 = arith.constant 4 : i32
    %17 = tpu.dynamic_rotate %3 by %c4_i32_3 dim 1 : vector<16x1280xf32>, i32 -> vector<16x1280xf32>
    %c5_i32 = arith.constant 5 : i32
    %18 = tpu.dynamic_rotate %4 by %c5_i32 dim 1 : vector<16x1280xf32>, i32 -> vector<16x1280xf32>
    %c1257_i32 = arith.constant 1257 : i32
    %19 = tpu.dynamic_rotate %4 by %c1257_i32 dim 1 : vector<16x1280xf32>, i32 -> vector<16x1280xf32>
    %20 = arith.select %16, %19, %18 : vector<16x1280xi1>, vector<16x1280xf32>
    %21 = arith.addf %17, %20 : vector<16x1280xf32>
    %22 = arith.truncf %21 : vector<16x1280xf32> to vector<16x1280xbf16>
    %c0_4 = arith.constant 0 : index
    %c0_5 = arith.constant 0 : index
    %23 = vector.load %arg5[%c0_4, %c0_5] : memref<144x1280xbf16, #tpu.memory_space<vmem>>, vector<16x1280xbf16>
    tpu.vector_store %arg5[%c0_4, %c0_5], %22 {strides = array<i32>} : memref<144x1280xbf16, #tpu.memory_space<vmem>>, vector<16x1280xbf16>,
    %c3_i32 = arith.constant 3 : i32
    %24 = tpu.dynamic_rotate %3 by %c3_i32 dim 1 : vector<16x1280xf32>, i32 -> vector<16x1280xf32>
    %c4_i32_6 = arith.constant 4 : i32
    %25 = tpu.dynamic_rotate %4 by %c4_i32_6 dim 1 : vector<16x1280xf32>, i32 -> vector<16x1280xf32>
    %c1256_i32 = arith.constant 1256 : i32
    %26 = tpu.dynamic_rotate %4 by %c1256_i32 dim 1 : vector<16x1280xf32>, i32 -> vector<16x1280xf32>
    %27 = arith.select %16, %26, %25 : vector<16x1280xi1>, vector<16x1280xf32>
    %28 = arith.addf %24, %27 : vector<16x1280xf32>
    %29 = arith.truncf %28 : vector<16x1280xf32> to vector<16x1280xbf16>
    %c16 = arith.constant 16 : index
    %c0_7 = arith.constant 0 : index
    %30 = vector.load %arg5[%c16, %c0_7] : memref<144x1280xbf16, #tpu.memory_space<vmem>>, vector<16x1280xbf16>
    tpu.vector_store %arg5[%c16, %c0_7], %29 {strides = array<i32>} : memref<144x1280xbf16, #tpu.memory_space<vmem>>, vector<16x1280xbf16>,
    %c2_i32 = arith.constant 2 : i32
    %31 = tpu.dynamic_rotate %3 by %c2_i32 dim 1 : vector<16x1280xf32>, i32 -> vector<16x1280xf32>
    %c3_i32_8 = arith.constant 3 : i32
    %32 = tpu.dynamic_rotate %4 by %c3_i32_8 dim 1 : vector<16x1280xf32>, i32 -> vector<16x1280xf32>
    %c1255_i32 = arith.constant 1255 : i32
    %33 = tpu.dynamic_rotate %4 by %c1255_i32 dim 1 : vector<16x1280xf32>, i32 -> vector<16x1280xf32>
    %34 = arith.select %16, %33, %32 : vector<16x1280xi1>, vector<16x1280xf32>
    %35 = arith.addf %31, %34 : vector<16x1280xf32>
    %36 = arith.truncf %35 : vector<16x1280xf32> to vector<16x1280xbf16>
    %c32 = arith.constant 32 : index
    %c0_9 = arith.constant 0 : index
    %37 = vector.load %arg5[%c32, %c0_9] : memref<144x1280xbf16, #tpu.memory_space<vmem>>, vector<16x1280xbf16>
    tpu.vector_store %arg5[%c32, %c0_9], %36 {strides = array<i32>} : memref<144x1280xbf16, #tpu.memory_space<vmem>>, vector<16x1280xbf16>,
    %c1_i32 = arith.constant 1 : i32
    %38 = tpu.dynamic_rotate %3 by %c1_i32 dim 1 : vector<16x1280xf32>, i32 -> vector<16x1280xf32>
    %c2_i32_10 = arith.constant 2 : i32
    %39 = tpu.dynamic_rotate %4 by %c2_i32_10 dim 1 : vector<16x1280xf32>, i32 -> vector<16x1280xf32>
    %c1254_i32 = arith.constant 1254 : i32
    %40 = tpu.dynamic_rotate %4 by %c1254_i32 dim 1 : vector<16x1280xf32>, i32 -> vector<16x1280xf32>
    %41 = arith.select %16, %40, %39 : vector<16x1280xi1>, vector<16x1280xf32>
    %42 = arith.addf %38, %41 : vector<16x1280xf32>
    %43 = arith.truncf %42 : vector<16x1280xf32> to vector<16x1280xbf16>
    %c48 = arith.constant 48 : index
    %c0_11 = arith.constant 0 : index
    %44 = vector.load %arg5[%c48, %c0_11] : memref<144x1280xbf16, #tpu.memory_space<vmem>>, vector<16x1280xbf16>
    tpu.vector_store %arg5[%c48, %c0_11], %43 {strides = array<i32>} : memref<144x1280xbf16, #tpu.memory_space<vmem>>, vector<16x1280xbf16>,
    %c1_i32_12 = arith.constant 1 : i32
    %45 = tpu.dynamic_rotate %4 by %c1_i32_12 dim 1 : vector<16x1280xf32>, i32 -> vector<16x1280xf32>
    %c1253_i32 = arith.constant 1253 : i32
    %46 = tpu.dynamic_rotate %4 by %c1253_i32 dim 1 : vector<16x1280xf32>, i32 -> vector<16x1280xf32>
    %47 = arith.select %16, %46, %45 : vector<16x1280xi1>, vector<16x1280xf32>
    %48 = arith.addf %3, %47 : vector<16x1280xf32>
    %49 = arith.truncf %48 : vector<16x1280xf32> to vector<16x1280xbf16>
    %c64 = arith.constant 64 : index
    %c0_13 = arith.constant 0 : index
    %50 = vector.load %arg5[%c64, %c0_13] : memref<144x1280xbf16, #tpu.memory_space<vmem>>, vector<16x1280xbf16>
    tpu.vector_store %arg5[%c64, %c0_13], %49 {strides = array<i32>} : memref<144x1280xbf16, #tpu.memory_space<vmem>>, vector<16x1280xbf16>,
    %c1279_i32 = arith.constant 1279 : i32
    %51 = tpu.dynamic_rotate %3 by %c1279_i32 dim 1 : vector<16x1280xf32>, i32 -> vector<16x1280xf32>
    %c1252_i32 = arith.constant 1252 : i32
    %52 = tpu.dynamic_rotate %4 by %c1252_i32 dim 1 : vector<16x1280xf32>, i32 -> vector<16x1280xf32>
    %53 = arith.select %16, %52, %4 : vector<16x1280xi1>, vector<16x1280xf32>
    %54 = arith.addf %51, %53 : vector<16x1280xf32>
    %55 = arith.truncf %54 : vector<16x1280xf32> to vector<16x1280xbf16>
    %c80 = arith.constant 80 : index
    %c0_14 = arith.constant 0 : index
    %56 = vector.load %arg5[%c80, %c0_14] : memref<144x1280xbf16, #tpu.memory_space<vmem>>, vector<16x1280xbf16>
    tpu.vector_store %arg5[%c80, %c0_14], %55 {strides = array<i32>} : memref<144x1280xbf16, #tpu.memory_space<vmem>>, vector<16x1280xbf16>,
    %c1278_i32 = arith.constant 1278 : i32
    %57 = tpu.dynamic_rotate %3 by %c1278_i32 dim 1 : vector<16x1280xf32>, i32 -> vector<16x1280xf32>
    %c1279_i32_15 = arith.constant 1279 : i32
    %58 = tpu.dynamic_rotate %4 by %c1279_i32_15 dim 1 : vector<16x1280xf32>, i32 -> vector<16x1280xf32>
    %c1251_i32 = arith.constant 1251 : i32
    %59 = tpu.dynamic_rotate %4 by %c1251_i32 dim 1 : vector<16x1280xf32>, i32 -> vector<16x1280xf32>
    %60 = arith.select %16, %59, %58 : vector<16x1280xi1>, vector<16x1280xf32>
    %61 = arith.addf %57, %60 : vector<16x1280xf32>
    %62 = arith.truncf %61 : vector<16x1280xf32> to vector<16x1280xbf16>
    %c96 = arith.constant 96 : index
    %c0_16 = arith.constant 0 : index
    %63 = vector.load %arg5[%c96, %c0_16] : memref<144x1280xbf16, #tpu.memory_space<vmem>>, vector<16x1280xbf16>
    tpu.vector_store %arg5[%c96, %c0_16], %62 {strides = array<i32>} : memref<144x1280xbf16, #tpu.memory_space<vmem>>, vector<16x1280xbf16>,
    %c1277_i32 = arith.constant 1277 : i32
    %64 = tpu.dynamic_rotate %3 by %c1277_i32 dim 1 : vector<16x1280xf32>, i32 -> vector<16x1280xf32>
    %c1278_i32_17 = arith.constant 1278 : i32
    %65 = tpu.dynamic_rotate %4 by %c1278_i32_17 dim 1 : vector<16x1280xf32>, i32 -> vector<16x1280xf32>
    %c1250_i32 = arith.constant 1250 : i32
    %66 = tpu.dynamic_rotate %4 by %c1250_i32 dim 1 : vector<16x1280xf32>, i32 -> vector<16x1280xf32>
    %67 = arith.select %16, %66, %65 : vector<16x1280xi1>, vector<16x1280xf32>
    %68 = arith.addf %64, %67 : vector<16x1280xf32>
    %69 = arith.truncf %68 : vector<16x1280xf32> to vector<16x1280xbf16>
    %c112 = arith.constant 112 : index
    %c0_18 = arith.constant 0 : index
    %70 = vector.load %arg5[%c112, %c0_18] : memref<144x1280xbf16, #tpu.memory_space<vmem>>, vector<16x1280xbf16>
    tpu.vector_store %arg5[%c112, %c0_18], %69 {strides = array<i32>} : memref<144x1280xbf16, #tpu.memory_space<vmem>>, vector<16x1280xbf16>,
    %c1276_i32 = arith.constant 1276 : i32
    %71 = tpu.dynamic_rotate %3 by %c1276_i32 dim 1 : vector<16x1280xf32>, i32 -> vector<16x1280xf32>
    %c1277_i32_19 = arith.constant 1277 : i32
    %72 = tpu.dynamic_rotate %4 by %c1277_i32_19 dim 1 : vector<16x1280xf32>, i32 -> vector<16x1280xf32>
    %c1249_i32 = arith.constant 1249 : i32
    %73 = tpu.dynamic_rotate %4 by %c1249_i32 dim 1 : vector<16x1280xf32>, i32 -> vector<16x1280xf32>
    %74 = arith.select %16, %73, %72 : vector<16x1280xi1>, vector<16x1280xf32>
    %75 = arith.addf %71, %74 : vector<16x1280xf32>
    %76 = arith.truncf %75 : vector<16x1280xf32> to vector<16x1280xbf16>
    %c128 = arith.constant 128 : index
    %c0_20 = arith.constant 0 : index
    %77 = vector.load %arg5[%c128, %c0_20] : memref<144x1280xbf16, #tpu.memory_space<vmem>>, vector<16x1280xbf16>
    tpu.vector_store %arg5[%c128, %c0_20], %76 {strides = array<i32>} : memref<144x1280xbf16, #tpu.memory_space<vmem>>, vector<16x1280xbf16>,
    %c0_21 = arith.constant 0 : index
    %c0_22 = arith.constant 0 : index
    %78 = vector.load %arg3[%c0_21, %c0_22] : memref<192x144xbf16, #tpu.memory_space<vmem>>, vector<192x144xbf16>
    %c0_23 = arith.constant 0 : index
    %c0_24 = arith.constant 0 : index
    %79 = vector.load %arg5[%c0_23, %c0_24] : memref<144x1280xbf16, #tpu.memory_space<vmem>>, vector<144x1280xbf16>
    %cst_25 = arith.constant dense<0.000000e+00> : vector<192x1280xf32>
    %80 = tpu.matmul %78, %79, %cst_25 {dimension_numbers = #tpu.dot_dimension_numbers<[1], [0], [0], [1], [0, 0, 1, 1], [], []>} : vector<192x144xbf16>, vector<144x1280xbf16>, vector<192x1280xf32> -> vector<192x1280xf32>
    %c0_26 = arith.constant 0 : index
    %c0_27 = arith.constant 0 : index
    %81 = vector.load %arg4[%c0_26, %c0_27] : memref<192x1280xf32, #tpu.memory_space<vmem>>, vector<192x1280xf32>
    tpu.vector_store %arg4[%c0_26, %c0_27], %80 {strides = array<i32>} : memref<192x1280xf32, #tpu.memory_space<vmem>>, vector<192x1280xf32>,
    return
  }
  func.func @transform_0(%arg0: i32) -> (i32, i32) {
    %c0_i32 = arith.constant 0 : i32
    %c0_i32_0 = arith.constant 0 : i32
    return %c0_i32, %arg0 : i32, i32
  }
  func.func @transform_1(%arg0: i32) -> (i32, i32) {
    %c0_i32 = arith.constant 0 : i32
    %c0_i32_0 = arith.constant 0 : i32
    %c0_i32_1 = arith.constant 0 : i32
    return %c0_i32, %c0_i32_0 : i32, i32
  }
  func.func @transform_2(%arg0: i32) -> (i32, i32) {
    %c0_i32 = arith.constant 0 : i32
    %c0_i32_0 = arith.constant 0 : i32
    %c0_i32_1 = arith.constant 0 : i32
    return %c0_i32, %c0_i32_0 : i32, i32
  }
  func.func @transform_3(%arg0: i32) -> (i32, i32) {
    %c0_i32 = arith.constant 0 : i32
    %c0_i32_0 = arith.constant 0 : i32
    return %c0_i32, %arg0 : i32, i32
  }
}

</mosaic_0001>

<llo_original>
// kernel: _forward.1
$region0: #{_forward.1}
  #allocation0 [shape = 'u32[]', space=smem, size = 0x4, offset = 0x4, fixed_abs, tag = 'smem constant byte address 0x4 - core index']
  #allocation1 [shape = 'u32[144,128]{1,0:T(1,128)}', space=vmem, size = 0x12000, scoped, tag = 'internal scratch']
  #allocation2 [shape = 'bf16[144,1280]{1,0:T(8,128)(2,1)}', space=vmem, size = 0x5a000, scoped, tag = 'scratch operand']
  %s0 = inlined_call_operand.vmem [shape: bf16[48,1280], index: 0, kind: input, shape index: {}]
  %s1 = inlined_call_operand.vmem [shape: bf16[32,48], index: 1, kind: input, shape index: {}]
  %s2 = inlined_call_operand.vmem [shape: bf16[192,144], index: 2, kind: input, shape index: {}]
  %s3 = inlined_call_operand.vmem [shape: f32[192,1280], index: 3, kind: output, shape index: {}]
  %s4 = sld [smem:[#allocation0]]
  $region22: #{_forward.1} parent=0
    _
  %s6 = ssub.s32 1, %s4
  %s7 = scalar_select 0, %s6, %s4
  // Predicated region
  $region2: #{_forward.1} parent=0 // pred_check
    _
  $region3: #{_forward.1} parent=0 // pred_check_branch
    %9 = sbr.rel (0) target = $region5
  $region4: #{_forward.1} parent=0 // pred_region
    _
  $region5: #{_forward.1} parent=0 // pred_fallthru
    _
  // Predicated region
  $region6: #{_forward.1} parent=0 // pred_check
    _
  $region7: #{_forward.1} parent=0 // pred_check_branch
    %11 = sbr.rel (0) target = $region9
  $region8: #{_forward.1} parent=0 // pred_region
    _
  $region9: #{_forward.1} parent=0 // pred_fallthru
    _
  // Predicated region
  $region10: #{_forward.1} parent=0 // pred_check
    _
  $region11: #{_forward.1} parent=0 // pred_check_branch
    %13 = sbr.rel (0) target = $region13
  $region12: #{_forward.1} parent=0 // pred_region
    _
  $region13: #{_forward.1} parent=0 // pred_fallthru
    _
  %v15 = vld [vmem:[%s1] sm:$0xf]
  %v16 = vld [vmem:[%s1 + $0x4] sm:$0xf]
  %v17 = vld [vmem:[%s1 + $0x8] sm:$0xf]
  %v18 = vld [vmem:[%s1 + $0xc] sm:$0xf]
  %v19 = vld [vmem:[%s0] sm:$0xff]
  %v20 = vld [vmem:[%s0 + $0x8] sm:$0xff]
  %v21 = vld [vmem:[%s0 + $0x10] sm:$0xff]
  %v22 = vld [vmem:[%s0 + $0x18] sm:$0xff]
  %v23 = vld [vmem:[%s0 + $0x20] sm:$0xff]
  %v24 = vld [vmem:[%s0 + $0x28] sm:$0xff]
  %v25 = vld [vmem:[%s0 + $0x30] sm:$0xff]
  %v26 = vld [vmem:[%s0 + $0x38] sm:$0xff]
  %v27 = vld [vmem:[%s0 + $0x40] sm:$0xff]
  %v28 = vld [vmem:[%s0 + $0x48] sm:$0xff]
  %v29 = vld [vmem:[%s0 + $0x50] sm:$0xff]
  %v30 = vld [vmem:[%s0 + $0x58] sm:$0xff]
  %v31 = vld [vmem:[%s0 + $0x60] sm:$0xff]
  %v32 = vld [vmem:[%s0 + $0x68] sm:$0xff]
  %v33 = vld [vmem:[%s0 + $0x70] sm:$0xff]
  %v34 = vld [vmem:[%s0 + $0x78] sm:$0xff]
  %v35 = vld [vmem:[%s0 + $0x80] sm:$0xff]
  %v36 = vld [vmem:[%s0 + $0x88] sm:$0xff]
  %v37 = vld [vmem:[%s0 + $0x90] sm:$0xff]
  %v38 = vld [vmem:[%s0 + $0x98] sm:$0xff]
  %v39 = vld [vmem:[%s0 + $0xa0] sm:$0xff]
  %v40 = vld [vmem:[%s0 + $0xa8] sm:$0xff]
  %v41 = vld [vmem:[%s0 + $0xb0] sm:$0xff]
  %v42 = vld [vmem:[%s0 + $0xb8] sm:$0xff]
  %v43 = vld [vmem:[%s0 + $0xc0] sm:$0xff]
  %v44 = vld [vmem:[%s0 + $0xc8] sm:$0xff]
  %v45 = vld [vmem:[%s0 + $0xd0] sm:$0xff]
  %v46 = vld [vmem:[%s0 + $0xd8] sm:$0xff]
  %v47 = vld [vmem:[%s0 + $0xe0] sm:$0xff]
  %v48 = vld [vmem:[%s0 + $0xe8] sm:$0xff]
  %v53 = vunpack.c.l.b16 %v15
  %v54 = vunpack.c.l.b16 %v16
  %v55 = vunpack.c.l.b16 %v17
  %v56 = vunpack.c.l.b16 %v18
  %v57 = vpack.c.b16 %v54, %v53
  %v58 = vpack.c.b16 %v56, %v55
  %v89 = vunpack.c.l.b16 %v19
  %v90 = vunpack.c.h.b16 %v19
  %v91 = vunpack.c.l.b16 %v20
  %v92 = vunpack.c.h.b16 %v20
  %v93 = vunpack.c.l.b16 %v21
  %v94 = vunpack.c.h.b16 %v21
  %v95 = vunpack.c.l.b16 %v22
  %v96 = vunpack.c.h.b16 %v22
  %v97 = vunpack.c.l.b16 %v23
  %v98 = vunpack.c.h.b16 %v23
  %v99 = vunpack.c.l.b16 %v24
  %v100 = vunpack.c.h.b16 %v24
  %v101 = vunpack.c.l.b16 %v25
  %v102 = vunpack.c.h.b16 %v25
  %v103 = vunpack.c.l.b16 %v26
  %v104 = vunpack.c.h.b16 %v26
  %v105 = vunpack.c.l.b16 %v27
  %v106 = vunpack.c.h.b16 %v27
  %v107 = vunpack.c.l.b16 %v28
  %v108 = vunpack.c.h.b16 %v28
  %v109 = vunpack.c.l.b16 %v29
  %v110 = vunpack.c.h.b16 %v29
  %v111 = vunpack.c.l.b16 %v30
  %v112 = vunpack.c.h.b16 %v30
  %v113 = vunpack.c.l.b16 %v31
  %v114 = vunpack.c.h.b16 %v31
  %v115 = vunpack.c.l.b16 %v32
  %v116 = vunpack.c.h.b16 %v32
  %v117 = vunpack.c.l.b16 %v33
  %v118 = vunpack.c.h.b16 %v33
  %v119 = vunpack.c.l.b16 %v34
  %v120 = vunpack.c.h.b16 %v34
  %v121 = vunpack.c.l.b16 %v35
  %v122 = vunpack.c.h.b16 %v35
  %v123 = vunpack.c.l.b16 %v36
  %v124 = vunpack.c.h.b16 %v36
  %v125 = vunpack.c.l.b16 %v37
  %v126 = vunpack.c.h.b16 %v37
  %v127 = vunpack.c.l.b16 %v38
  %v128 = vunpack.c.h.b16 %v38
  %v129 = vunpack.c.l.b16 %v39
  %v130 = vunpack.c.h.b16 %v39
  %v131 = vunpack.c.l.b16 %v40
  %v132 = vunpack.c.h.b16 %v40
  %v133 = vunpack.c.l.b16 %v41
  %v134 = vunpack.c.h.b16 %v41
  %v135 = vunpack.c.l.b16 %v42
  %v136 = vunpack.c.h.b16 %v42
  %v137 = vunpack.c.l.b16 %v43
  %v138 = vunpack.c.h.b16 %v43
  %v139 = vunpack.c.l.b16 %v44
  %v140 = vunpack.c.h.b16 %v44
  %v141 = vunpack.c.l.b16 %v45
  %v142 = vunpack.c.h.b16 %v45
  %v143 = vunpack.c.l.b16 %v46
  %v144 = vunpack.c.h.b16 %v46
  %v145 = vunpack.c.l.b16 %v47
  %v146 = vunpack.c.h.b16 %v47
  %v147 = vunpack.c.l.b16 %v48
  %v148 = vunpack.c.h.b16 %v48
  %v149 = vpack.c.b16 %v99, %v89
  %v150 = vpack.c.b16 %v100, %v90
  %v151 = vpack.c.b16 %v101, %v91
  %v152 = vpack.c.b16 %v102, %v92
  %v153 = vpack.c.b16 %v103, %v93
  %v154 = vpack.c.b16 %v104, %v94
  %v155 = vpack.c.b16 %v105, %v95
  %v156 = vpack.c.b16 %v106, %v96
  %v157 = vpack.c.b16 %v107, %v97
  %v158 = vpack.c.b16 %v108, %v98
  %v159 = vpack.c.b16 %v119, %v109
  %v160 = vpack.c.b16 %v120, %v110
  %v161 = vpack.c.b16 %v121, %v111
  %v162 = vpack.c.b16 %v122, %v112
  %v163 = vpack.c.b16 %v123, %v113
  %v164 = vpack.c.b16 %v124, %v114
  %v165 = vpack.c.b16 %v125, %v115
  %v166 = vpack.c.b16 %v126, %v116
  %v167 = vpack.c.b16 %v127, %v117
  %v168 = vpack.c.b16 %v128, %v118
  %v169 = vpack.c.b16 %v139, %v129
  %v170 = vpack.c.b16 %v140, %v130
  %v171 = vpack.c.b16 %v141, %v131
  %v172 = vpack.c.b16 %v142, %v132
  %v173 = vpack.c.b16 %v143, %v133
  %v174 = vpack.c.b16 %v144, %v134
  %v175 = vpack.c.b16 %v145, %v135
  %v176 = vpack.c.b16 %v146, %v136
  %v177 = vpack.c.b16 %v147, %v137
  %v178 = vpack.c.b16 %v148, %v138
  %vm209 = vcmask 392192
  %v211 = vsel %vm209, %v57, 0
  %v214 = vsel %vm209, %v58, 0
  %216 = vmatprep.subr.bf16.mxu0 0
  %217 = vmatpush1.bf16.msra.mxu0 0
  %218 = vmatprep.subr.bf16.mxu0 0
  %219 = vmatpush1.bf16.msra.mxu0 0
  %220 = vmatprep.subr.bf16.mxu0 0
  %221 = vmatpush1.bf16.msra.mxu0 0
  %222 = vmatprep.subr.bf16.mxu0 0
  %223 = vmatpush1.bf16.msra.mxu0 0
  %224 = vmatprep.subr.bf16.mxu0 0
  %225 = vmatpush1.bf16.msra.mxu0 0
  %226 = vmatprep.subr.bf16.mxu0 %v170
  %227 = vmatpush1.bf16.msra.mxu0 %v169
  %228 = vmatprep.subr.bf16.mxu0 %v160
  %229 = vmatpush1.bf16.msra.mxu0 %v159
  %230 = vmatprep.subr.bf16.mxu0 %v150
  %231 = vmatpush1.bf16.msra.mxu0 %v149
  %232 = vmatprep.subr.bf16.mxu0 0
  %233 = vmatpush2.bf16.msra.mxu0 0
  %234 = vmatprep.subr.bf16.mxu0 0
  %235 = vmatpush2.bf16.msra.mxu0 0
  %236 = vmatprep.subr.bf16.mxu0 0
  %237 = vmatpush2.bf16.msra.mxu0 0
  %238 = vmatprep.subr.bf16.mxu0 0
  %239 = vmatpush2.bf16.msra.mxu0 0
  %240 = vmatprep.subr.bf16.mxu0 0
  %241 = vmatpush2.bf16.msra.mxu0 0
  %242 = vmatprep.subr.bf16.mxu0 0
  %243 = vmatpush2.bf16.msra.mxu0 0
  %244 = vmatprep.subr.bf16.mxu0 0
  %245 = vmatpush2.bf16.msra.mxu0 0
  %246 = vmatprep.subr.bf16.mxu0 0
  %247 = vmatpush2.bf16.msra.mxu0 0
  %248 = vmatprep.mubr.bf16.mxu0 0
  %249 = vmatmul.mubr.bf16.gmra.mxu0 %v211
  %v250 = vpop.f32.mrf.mxu0
  %v251 = vadd.f32 0.0, %v250
  %v252 = vpop.f32.mrf.mxu0
  %v253 = vadd.f32 0.0, %v252
  %v254 = vpop.f32.mrf.mxu0
  %v255 = vadd.f32 0.0, %v254
  %v256 = vpop.f32.mrf.mxu0
  %v257 = vadd.f32 0.0, %v256
  %258 = vmatprep.mubr.bf16.mxu0 0
  %259 = vmatmul.mubr.bf16.gmra.mxu0 %v214
  %v260 = vpop.f32.mrf.mxu0
  %v261 = vadd.f32 0.0, %v260
  %v262 = vpop.f32.mrf.mxu0
  %v263 = vadd.f32 0.0, %v262
  %v264 = vpop.f32.mrf.mxu0
  %v265 = vadd.f32 0.0, %v264
  %v266 = vpop.f32.mrf.mxu0
  %v267 = vadd.f32 0.0, %v266
  %268 = vdwg.mxu0
  %269 = vmatprep.subr.bf16.mxu0 0
  %270 = vmatpush1.bf16.msra.mxu0 0
  %271 = vmatprep.subr.bf16.mxu0 0
  %272 = vmatpush1.bf16.msra.mxu0 0
  %273 = vmatprep.subr.bf16.mxu0 0
  %274 = vmatpush1.bf16.msra.mxu0 0
  %275 = vmatprep.subr.bf16.mxu0 0
  %276 = vmatpush1.bf16.msra.mxu0 0
  %277 = vmatprep.subr.bf16.mxu0 0
  %278 = vmatpush1.bf16.msra.mxu0 0
  %279 = vmatprep.subr.bf16.mxu0 %v172
  %280 = vmatpush1.bf16.msra.mxu0 %v171
  %281 = vmatprep.subr.bf16.mxu0 %v162
  %282 = vmatpush1.bf16.msra.mxu0 %v161
  %283 = vmatprep.subr.bf16.mxu0 %v152
  %284 = vmatpush1.bf16.msra.mxu0 %v151
  %285 = vmatprep.subr.bf16.mxu0 0
  %286 = vmatpush2.bf16.msra.mxu0 0
  %287 = vmatprep.subr.bf16.mxu0 0
  %288 = vmatpush2.bf16.msra.mxu0 0
  %289 = vmatprep.subr.bf16.mxu0 0
  %290 = vmatpush2.bf16.msra.mxu0 0
  %291 = vmatprep.subr.bf16.mxu0 0
  %292 = vmatpush2.bf16.msra.mxu0 0
  %293 = vmatprep.subr.bf16.mxu0 0
  %294 = vmatpush2.bf16.msra.mxu0 0
  %295 = vmatprep.subr.bf16.mxu0 0
  %296 = vmatpush2.bf16.msra.mxu0 0
  %297 = vmatprep.subr.bf16.mxu0 0
  %298 = vmatpush2.bf16.msra.mxu0 0
  %299 = vmatprep.subr.bf16.mxu0 0
  %300 = vmatpush2.bf16.msra.mxu0 0
  %301 = vmatprep.mubr.bf16.mxu0 0
  %302 = vmatmul.mubr.bf16.gmra.mxu0 %v211
  %v303 = vpop.f32.mrf.mxu0
  %v304 = vadd.f32 0.0, %v303
  %v305 = vpop.f32.mrf.mxu0
  %v306 = vadd.f32 0.0, %v305
  %v307 = vpop.f32.mrf.mxu0
  %v308 = vadd.f32 0.0, %v307
  %v309 = vpop.f32.mrf.mxu0
  %v310 = vadd.f32 0.0, %v309
  %311 = vmatprep.mubr.bf16.mxu0 0
  %312 = vmatmul.mubr.bf16.gmra.mxu0 %v214
  %v313 = vpop.f32.mrf.mxu0
  %v314 = vadd.f32 0.0, %v313
  %v315 = vpop.f32.mrf.mxu0
  %v316 = vadd.f32 0.0, %v315
  %v317 = vpop.f32.mrf.mxu0
  %v318 = vadd.f32 0.0, %v317
  %v319 = vpop.f32.mrf.mxu0
  %v320 = vadd.f32 0.0, %v319
  %321 = vdwg.mxu0
  %322 = vmatprep.subr.bf16.mxu0 0
  %323 = vmatpush1.bf16.msra.mxu0 0
  %324 = vmatprep.subr.bf16.mxu0 0
  %325 = vmatpush1.bf16.msra.mxu0 0
  %326 = vmatprep.subr.bf16.mxu0 0
  %327 = vmatpush1.bf16.msra.mxu0 0
  %328 = vmatprep.subr.bf16.mxu0 0
  %329 = vmatpush1.bf16.msra.mxu0 0
  %330 = vmatprep.subr.bf16.mxu0 0
  %331 = vmatpush1.bf16.msra.mxu0 0
  %332 = vmatprep.subr.bf16.mxu0 %v174
  %333 = vmatpush1.bf16.msra.mxu0 %v173
  %334 = vmatprep.subr.bf16.mxu0 %v164
  %335 = vmatpush1.bf16.msra.mxu0 %v163
  %336 = vmatprep.subr.bf16.mxu0 %v154
  %337 = vmatpush1.bf16.msra.mxu0 %v153
  %338 = vmatprep.subr.bf16.mxu0 0
  %339 = vmatpush2.bf16.msra.mxu0 0
  %340 = vmatprep.subr.bf16.mxu0 0
  %341 = vmatpush2.bf16.msra.mxu0 0
  %342 = vmatprep.subr.bf16.mxu0 0
  %343 = vmatpush2.bf16.msra.mxu0 0
  %344 = vmatprep.subr.bf16.mxu0 0
  %345 = vmatpush2.bf16.msra.mxu0 0
  %346 = vmatprep.subr.bf16.mxu0 0
  %347 = vmatpush2.bf16.msra.mxu0 0
  %348 = vmatprep.subr.bf16.mxu0 0
  %349 = vmatpush2.bf16.msra.mxu0 0
  %350 = vmatprep.subr.bf16.mxu0 0
  %351 = vmatpush2.bf16.msra.mxu0 0
  %352 = vmatprep.subr.bf16.mxu0 0
  %353 = vmatpush2.bf16.msra.mxu0 0
  %354 = vmatprep.mubr.bf16.mxu0 0
  %355 = vmatmul.mubr.bf16.gmra.mxu0 %v211
  %v356 = vpop.f32.mrf.mxu0
  %v357 = vadd.f32 0.0, %v356
  %v358 = vpop.f32.mrf.mxu0
  %v359 = vadd.f32 0.0, %v358
  %v360 = vpop.f32.mrf.mxu0
  %v361 = vadd.f32 0.0, %v360
  %v362 = vpop.f32.mrf.mxu0
  %v363 = vadd.f32 0.0, %v362
  %364 = vmatprep.mubr.bf16.mxu0 0
  %365 = vmatmul.mubr.bf16.gmra.mxu0 %v214
  %v366 = vpop.f32.mrf.mxu0
  %v367 = vadd.f32 0.0, %v366
  %v368 = vpop.f32.mrf.mxu0
  %v369 = vadd.f32 0.0, %v368
  %v370 = vpop.f32.mrf.mxu0
  %v371 = vadd.f32 0.0, %v370
  %v372 = vpop.f32.mrf.mxu0
  %v373 = vadd.f32 0.0, %v372
  %374 = vdwg.mxu0
  %375 = vmatprep.subr.bf16.mxu0 0
  %376 = vmatpush1.bf16.msra.mxu0 0
  %377 = vmatprep.subr.bf16.mxu0 0
  %378 = vmatpush1.bf16.msra.mxu0 0
  %379 = vmatprep.subr.bf16.mxu0 0
  %380 = vmatpush1.bf16.msra.mxu0 0
  %381 = vmatprep.subr.bf16.mxu0 0
  %382 = vmatpush1.bf16.msra.mxu0 0
  %383 = vmatprep.subr.bf16.mxu0 0
  %384 = vmatpush1.bf16.msra.mxu0 0
  %385 = vmatprep.subr.bf16.mxu0 %v176
  %386 = vmatpush1.bf16.msra.mxu0 %v175
  %387 = vmatprep.subr.bf16.mxu0 %v166
  %388 = vmatpush1.bf16.msra.mxu0 %v165
  %389 = vmatprep.subr.bf16.mxu0 %v156
  %390 = vmatpush1.bf16.msra.mxu0 %v155
  %391 = vmatprep.subr.bf16.mxu0 0
  %392 = vmatpush2.bf16.msra.mxu0 0
  %393 = vmatprep.subr.bf16.mxu0 0
  %394 = vmatpush2.bf16.msra.mxu0 0
  %395 = vmatprep.subr.bf16.mxu0 0
  %396 = vmatpush2.bf16.msra.mxu0 0
  %397 = vmatprep.subr.bf16.mxu0 0
  %398 = vmatpush2.bf16.msra.mxu0 0
  %399 = vmatprep.subr.bf16.mxu0 0
  %400 = vmatpush2.bf16.msra.mxu0 0
  %401 = vmatprep.subr.bf16.mxu0 0
  %402 = vmatpush2.bf16.msra.mxu0 0
  %403 = vmatprep.subr.bf16.mxu0 0
  %404 = vmatpush2.bf16.msra.mxu0 0
  %405 = vmatprep.subr.bf16.mxu0 0
  %406 = vmatpush2.bf16.msra.mxu0 0
  %407 = vmatprep.mubr.bf16.mxu0 0
  %408 = vmatmul.mubr.bf16.gmra.mxu0 %v211
  %v409 = vpop.f32.mrf.mxu0
  %v410 = vadd.f32 0.0, %v409
  %v411 = vpop.f32.mrf.mxu0
  %v412 = vadd.f32 0.0, %v411
  %v413 = vpop.f32.mrf.mxu0
  %v414 = vadd.f32 0.0, %v413
  %v415 = vpop.f32.mrf.mxu0
  %v416 = vadd.f32 0.0, %v415
  %417 = vmatprep.mubr.bf16.mxu0 0
  %418 = vmatmul.mubr.bf16.gmra.mxu0 %v214
  %v419 = vpop.f32.mrf.mxu0
  %v420 = vadd.f32 0.0, %v419
  %v421 = vpop.f32.mrf.mxu0
  %v422 = vadd.f32 0.0, %v421
  %v423 = vpop.f32.mrf.mxu0
  %v424 = vadd.f32 0.0, %v423
  %v425 = vpop.f32.mrf.mxu0
  %v426 = vadd.f32 0.0, %v425
  %427 = vdwg.mxu0
  %428 = vmatprep.subr.bf16.mxu0 0
  %429 = vmatpush1.bf16.msra.mxu0 0
  %430 = vmatprep.subr.bf16.mxu0 0
  %431 = vmatpush1.bf16.msra.mxu0 0
  %432 = vmatprep.subr.bf16.mxu0 0
  %433 = vmatpush1.bf16.msra.mxu0 0
  %434 = vmatprep.subr.bf16.mxu0 0
  %435 = vmatpush1.bf16.msra.mxu0 0
  %436 = vmatprep.subr.bf16.mxu0 0
  %437 = vmatpush1.bf16.msra.mxu0 0
  %438 = vmatprep.subr.bf16.mxu0 %v178
  %439 = vmatpush1.bf16.msra.mxu0 %v177
  %440 = vmatprep.subr.bf16.mxu0 %v168
  %441 = vmatpush1.bf16.msra.mxu0 %v167
  %442 = vmatprep.subr.bf16.mxu0 %v158
  %443 = vmatpush1.bf16.msra.mxu0 %v157
  %444 = vmatprep.subr.bf16.mxu0 0
  %445 = vmatpush2.bf16.msra.mxu0 0
  %446 = vmatprep.subr.bf16.mxu0 0
  %447 = vmatpush2.bf16.msra.mxu0 0
  %448 = vmatprep.subr.bf16.mxu0 0
  %449 = vmatpush2.bf16.msra.mxu0 0
  %450 = vmatprep.subr.bf16.mxu0 0
  %451 = vmatpush2.bf16.msra.mxu0 0
  %452 = vmatprep.subr.bf16.mxu0 0
  %453 = vmatpush2.bf16.msra.mxu0 0
  %454 = vmatprep.subr.bf16.mxu0 0
  %455 = vmatpush2.bf16.msra.mxu0 0
  %456 = vmatprep.subr.bf16.mxu0 0
  %457 = vmatpush2.bf16.msra.mxu0 0
  %458 = vmatprep.subr.bf16.mxu0 0
  %459 = vmatpush2.bf16.msra.mxu0 0
  %460 = vmatprep.mubr.bf16.mxu0 0
  %461 = vmatmul.mubr.bf16.gmra.mxu0 %v211
  %v462 = vpop.f32.mrf.mxu0
  %v463 = vadd.f32 0.0, %v462
  %v464 = vpop.f32.mrf.mxu0
  %v465 = vadd.f32 0.0, %v464
  %v466 = vpop.f32.mrf.mxu0
  %v467 = vadd.f32 0.0, %v466
  %v468 = vpop.f32.mrf.mxu0
  %v469 = vadd.f32 0.0, %v468
  %470 = vmatprep.mubr.bf16.mxu0 0
  %471 = vmatmul.mubr.bf16.gmra.mxu0 %v214
  %v472 = vpop.f32.mrf.mxu0
  %v473 = vadd.f32 0.0, %v472
  %v474 = vpop.f32.mrf.mxu0
  %v475 = vadd.f32 0.0, %v474
  %v476 = vpop.f32.mrf.mxu0
  %v477 = vadd.f32 0.0, %v476
  %v478 = vpop.f32.mrf.mxu0
  %v479 = vadd.f32 0.0, %v478
  %480 = vdwg.mxu0
  %v481 = vlaneseq
  %v482 = vand.u32 %v481, 127
  %v483 = vadd.s32 %v482, 128
  %v484 = vadd.s32 %v482, 256
  %v485 = vadd.s32 %v482, 384
  %v486 = vadd.s32 %v482, 512
  %v487 = vadd.s32 %v482, 640
  %v488 = vadd.s32 %v482, 768
  %v489 = vadd.s32 %v482, 896
  %v490 = vadd.s32 %v482, 1024
  %v491 = vadd.s32 %v482, 1152
  %v492 = vmul.u32 %v482, 1639
  %v493 = vmul.u32 %v483, 1639
  %v494 = vmul.u32 %v484, 1639
  %v495 = vmul.u32 %v485, 1639
  %v496 = vmul.u32 %v486, 1639
  %v497 = vmul.u32 %v487, 1639
  %v498 = vmul.u32 %v488, 1639
  %v499 = vmul.u32 %v489, 1639
  %v500 = vmul.u32 %v490, 1639
  %v501 = vmul.u32 %v491, 1639
  %v502 = vshra.s32 %v492, 16
  %v503 = vshra.s32 %v493, 16
  %v504 = vshra.s32 %v494, 16
  %v505 = vshra.s32 %v495, 16
  %v506 = vshra.s32 %v496, 16
  %v507 = vshra.s32 %v497, 16
  %v508 = vshra.s32 %v498, 16
  %v509 = vshra.s32 %v499, 16
  %v510 = vshra.s32 %v500, 16
  %v511 = vshra.s32 %v501, 16
  %v512 = vmul.u32 %v502, 40
  %v513 = vmul.u32 %v503, 40
  %v514 = vmul.u32 %v504, 40
  %v515 = vmul.u32 %v505, 40
  %v516 = vmul.u32 %v506, 40
  %v517 = vmul.u32 %v507, 40
  %v518 = vmul.u32 %v508, 40
  %v519 = vmul.u32 %v509, 40
  %v520 = vmul.u32 %v510, 40
  %v521 = vmul.u32 %v511, 40
  %v522 = vsub.s32 %v482, %v512
  %v523 = vsub.s32 %v483, %v513
  %v524 = vsub.s32 %v484, %v514
  %v525 = vsub.s32 %v485, %v515
  %v526 = vsub.s32 %v486, %v516
  %v527 = vsub.s32 %v487, %v517
  %v528 = vsub.s32 %v488, %v518
  %v529 = vsub.s32 %v489, %v519
  %v530 = vsub.s32 %v490, %v520
  %v531 = vsub.s32 %v491, %v521
  %vm532 = vcmp.eq.s32.totalorder %v522, 4
  %vm533 = vcmp.eq.s32.totalorder %v523, 4
  %vm534 = vcmp.eq.s32.totalorder %v524, 4
  %vm535 = vcmp.eq.s32.totalorder %v525, 4
  %vm536 = vcmp.eq.s32.totalorder %v526, 4
  %vm537 = vcmp.eq.s32.totalorder %v527, 4
  %vm538 = vcmp.eq.s32.totalorder %v528, 4
  %vm539 = vcmp.eq.s32.totalorder %v529, 4
  %vm540 = vcmp.eq.s32.totalorder %v530, 4
  %vm541 = vcmp.eq.s32.totalorder %v531, 4
  %v542 = vsel %vm532, 1, 0
  %v543 = vsel %vm533, 1, 0
  %v544 = vsel %vm534, 1, 0
  %v545 = vsel %vm535, 1, 0
  %v546 = vsel %vm536, 1, 0
  %v547 = vsel %vm537, 1, 0
  %v548 = vsel %vm538, 1, 0
  %v549 = vsel %vm539, 1, 0
  %v550 = vsel %vm540, 1, 0
  %v551 = vsel %vm541, 1, 0
  %vm552 = vcmp.eq.s32.totalorder %v542, 1
  %vm553 = vcmp.eq.s32.totalorder %v543, 1
  %vm554 = vcmp.eq.s32.totalorder %v544, 1
  %vm555 = vcmp.eq.s32.totalorder %v545, 1
  %vm556 = vcmp.eq.s32.totalorder %v546, 1
  %vm557 = vcmp.eq.s32.totalorder %v547, 1
  %vm558 = vcmp.eq.s32.totalorder %v548, 1
  %vm559 = vcmp.eq.s32.totalorder %v549, 1
  %vm560 = vcmp.eq.s32.totalorder %v550, 1
  %vm561 = vcmp.eq.s32.totalorder %v551, 1
  %562 = vrot.lane.b32.xlu0 %v251, 4
  %v563 = vpop.permute.xlu0 %562
  %564 = vrot.lane.b32.xlu0 %v255, 4
  %v565 = vpop.permute.xlu0 %564
  %566 = vrot.lane.b32.xlu0 %v253, 4
  %v567 = vpop.permute.xlu0 %566
  %568 = vrot.lane.b32.xlu0 %v257, 4
  %v569 = vpop.permute.xlu0 %568
  %570 = vrot.lane.b32.xlu0 %v304, 4
  %v571 = vpop.permute.xlu0 %570
  %572 = vrot.lane.b32.xlu0 %v308, 4
  %v573 = vpop.permute.xlu0 %572
  %574 = vrot.lane.b32.xlu0 %v306, 4
  %v575 = vpop.permute.xlu0 %574
  %576 = vrot.lane.b32.xlu0 %v310, 4
  %v577 = vpop.permute.xlu0 %576
  %578 = vrot.lane.b32.xlu0 %v357, 4
  %v579 = vpop.permute.xlu0 %578
  %580 = vrot.lane.b32.xlu0 %v361, 4
  %v581 = vpop.permute.xlu0 %580
  %582 = vrot.lane.b32.xlu0 %v359, 4
  %v583 = vpop.permute.xlu0 %582
  %584 = vrot.lane.b32.xlu0 %v363, 4
  %v585 = vpop.permute.xlu0 %584
  %586 = vrot.lane.b32.xlu0 %v410, 4
  %v587 = vpop.permute.xlu0 %586
  %588 = vrot.lane.b32.xlu0 %v414, 4
  %v589 = vpop.permute.xlu0 %588
  %590 = vrot.lane.b32.xlu0 %v412, 4
  %v591 = vpop.permute.xlu0 %590
  %592 = vrot.lane.b32.xlu0 %v416, 4
  %v593 = vpop.permute.xlu0 %592
  %594 = vrot.lane.b32.xlu0 %v463, 4
  %v595 = vpop.permute.xlu0 %594
  %596 = vrot.lane.b32.xlu0 %v467, 4
  %v597 = vpop.permute.xlu0 %596
  %598 = vrot.lane.b32.xlu0 %v465, 4
  %v599 = vpop.permute.xlu0 %598
  %600 = vrot.lane.b32.xlu0 %v469, 4
  %v601 = vpop.permute.xlu0 %600
  %vm602 = vcmp.lt.s32.totalorder %v482, 4
  %v603 = vsel %vm602, %v595, %v599
  %v604 = vsel %vm602, %v597, %v601
  %v605 = vsel %vm602, %v591, %v595
  %v606 = vsel %vm602, %v593, %v597
  %v607 = vsel %vm602, %v587, %v591
  %v608 = vsel %vm602, %v589, %v593
  %v609 = vsel %vm602, %v583, %v587
  %v610 = vsel %vm602, %v585, %v589
  %v611 = vsel %vm602, %v579, %v583
  %v612 = vsel %vm602, %v581, %v585
  %v613 = vsel %vm602, %v575, %v579
  %v614 = vsel %vm602, %v577, %v581
  %v615 = vsel %vm602, %v571, %v575
  %v616 = vsel %vm602, %v573, %v577
  %v617 = vsel %vm602, %v567, %v571
  %v618 = vsel %vm602, %v569, %v573
  %v619 = vsel %vm602, %v563, %v567
  %v620 = vsel %vm602, %v565, %v569
  %v621 = vsel %vm602, %v599, %v563
  %v622 = vsel %vm602, %v601, %v565
  %623 = vrot.lane.b32.xlu0 %v261, 5
  %v624 = vpop.permute.xlu0 %623
  %625 = vrot.lane.b32.xlu0 %v265, 5
  %v626 = vpop.permute.xlu0 %625
  %627 = vrot.lane.b32.xlu0 %v263, 5
  %v628 = vpop.permute.xlu0 %627
  %629 = vrot.lane.b32.xlu0 %v267, 5
  %v630 = vpop.permute.xlu0 %629
  %631 = vrot.lane.b32.xlu0 %v314, 5
  %v632 = vpop.permute.xlu0 %631
  %633 = vrot.lane.b32.xlu0 %v318, 5
  %v634 = vpop.permute.xlu0 %633
  %635 = vrot.lane.b32.xlu0 %v316, 5
  %v636 = vpop.permute.xlu0 %635
  %637 = vrot.lane.b32.xlu0 %v320, 5
  %v638 = vpop.permute.xlu0 %637
  %639 = vrot.lane.b32.xlu0 %v367, 5
  %v640 = vpop.permute.xlu0 %639
  %641 = vrot.lane.b32.xlu0 %v371, 5
  %v642 = vpop.permute.xlu0 %641
  %643 = vrot.lane.b32.xlu0 %v369, 5
  %v644 = vpop.permute.xlu0 %643
  %645 = vrot.lane.b32.xlu0 %v373, 5
  %v646 = vpop.permute.xlu0 %645
  %647 = vrot.lane.b32.xlu0 %v420, 5
  %v648 = vpop.permute.xlu0 %647
  %649 = vrot.lane.b32.xlu0 %v424, 5
  %v650 = vpop.permute.xlu0 %649
  %651 = vrot.lane.b32.xlu0 %v422, 5
  %v652 = vpop.permute.xlu0 %651
  %653 = vrot.lane.b32.xlu0 %v426, 5
  %v654 = vpop.permute.xlu0 %653
  %655 = vrot.lane.b32.xlu0 %v473, 5
  %v656 = vpop.permute.xlu0 %655
  %657 = vrot.lane.b32.xlu0 %v477, 5
  %v658 = vpop.permute.xlu0 %657
  %659 = vrot.lane.b32.xlu0 %v475, 5
  %v660 = vpop.permute.xlu0 %659
  %661 = vrot.lane.b32.xlu0 %v479, 5
  %v662 = vpop.permute.xlu0 %661
  %vm663 = vcmp.lt.s32.totalorder %v482, 5
  %v664 = vsel %vm663, %v656, %v660
  %v665 = vsel %vm663, %v658, %v662
  %v666 = vsel %vm663, %v652, %v656
  %v667 = vsel %vm663, %v654, %v658
  %v668 = vsel %vm663, %v648, %v652
  %v669 = vsel %vm663, %v650, %v654
  %v670 = vsel %vm663, %v644, %v648
  %v671 = vsel %vm663, %v646, %v650
  %v672 = vsel %vm663, %v640, %v644
  %v673 = vsel %vm663, %v642, %v646
  %v674 = vsel %vm663, %v636, %v640
  %v675 = vsel %vm663, %v638, %v642
  %v676 = vsel %vm663, %v632, %v636
  %v677 = vsel %vm663, %v634, %v638
  %v678 = vsel %vm663, %v628, %v632
  %v679 = vsel %vm663, %v630, %v634
  %v680 = vsel %vm663, %v624, %v628
  %v681 = vsel %vm663, %v626, %v630
  %v682 = vsel %vm663, %v660, %v624
  %v683 = vsel %vm663, %v662, %v626
  %684 = vrot.lane.b32.xlu0 %v261, 105
  %v685 = vpop.permute.xlu0 %684
  %686 = vrot.lane.b32.xlu0 %v265, 105
  %v687 = vpop.permute.xlu0 %686
  %688 = vrot.lane.b32.xlu0 %v263, 105
  %v689 = vpop.permute.xlu0 %688
  %690 = vrot.lane.b32.xlu0 %v267, 105
  %v691 = vpop.permute.xlu0 %690
  %692 = vrot.lane.b32.xlu0 %v314, 105
  %v693 = vpop.permute.xlu0 %692
  %694 = vrot.lane.b32.xlu0 %v318, 105
  %v695 = vpop.permute.xlu0 %694
  %696 = vrot.lane.b32.xlu0 %v316, 105
  %v697 = vpop.permute.xlu0 %696
  %698 = vrot.lane.b32.xlu0 %v320, 105
  %v699 = vpop.permute.xlu0 %698
  %700 = vrot.lane.b32.xlu0 %v367, 105
  %v701 = vpop.permute.xlu0 %700
  %702 = vrot.lane.b32.xlu0 %v371, 105
  %v703 = vpop.permute.xlu0 %702
  %704 = vrot.lane.b32.xlu0 %v369, 105
  %v705 = vpop.permute.xlu0 %704
  %706 = vrot.lane.b32.xlu0 %v373, 105
  %v707 = vpop.permute.xlu0 %706
  %708 = vrot.lane.b32.xlu0 %v420, 105
  %v709 = vpop.permute.xlu0 %708
  %710 = vrot.lane.b32.xlu0 %v424, 105
  %v711 = vpop.permute.xlu0 %710
  %712 = vrot.lane.b32.xlu0 %v422, 105
  %v713 = vpop.permute.xlu0 %712
  %714 = vrot.lane.b32.xlu0 %v426, 105
  %v715 = vpop.permute.xlu0 %714
  %716 = vrot.lane.b32.xlu0 %v473, 105
  %v717 = vpop.permute.xlu0 %716
  %718 = vrot.lane.b32.xlu0 %v477, 105
  %v719 = vpop.permute.xlu0 %718
  %720 = vrot.lane.b32.xlu0 %v475, 105
  %v721 = vpop.permute.xlu0 %720
  %722 = vrot.lane.b32.xlu0 %v479, 105
  %v723 = vpop.permute.xlu0 %722
  %vm724 = vcmp.lt.s32.totalorder %v482, 105
  %v725 = vsel %vm724, %v717, %v721
  %v726 = vsel %vm724, %v719, %v723
  %v727 = vsel %vm724, %v713, %v717
  %v728 = vsel %vm724, %v715, %v719
  %v729 = vsel %vm724, %v709, %v713
  %v730 = vsel %vm724, %v711, %v715
  %v731 = vsel %vm724, %v705, %v709
  %v732 = vsel %vm724, %v707, %v711
  %v733 = vsel %vm724, %v701, %v705
  %v734 = vsel %vm724, %v703, %v707
  %v735 = vsel %vm724, %v697, %v701
  %v736 = vsel %vm724, %v699, %v703
  %v737 = vsel %vm724, %v693, %v697
  %v738 = vsel %vm724, %v695, %v699
  %v739 = vsel %vm724, %v689, %v693
  %v740 = vsel %vm724, %v691, %v695
  %v741 = vsel %vm724, %v685, %v689
  %v742 = vsel %vm724, %v687, %v691
  %v743 = vsel %vm724, %v721, %v685
  %v744 = vsel %vm724, %v723, %v687
  %v745 = vsel %vm552, %v741, %v682
  %v746 = vsel %vm553, %v739, %v680
  %v747 = vsel %vm554, %v737, %v678
  %v748 = vsel %vm555, %v735, %v676
  %v749 = vsel %vm556, %v733, %v674
  %v750 = vsel %vm557, %v731, %v672
  %v751 = vsel %vm558, %v729, %v670
  %v752 = vsel %vm559, %v727, %v668
  %v753 = vsel %vm560, %v725, %v666
  %v754 = vsel %vm561, %v743, %v664
  %v755 = vsel %vm552, %v742, %v683
  %v756 = vsel %vm553, %v740, %v681
  %v757 = vsel %vm554, %v738, %v679
  %v758 = vsel %vm555, %v736, %v677
  %v759 = vsel %vm556, %v734, %v675
  %v760 = vsel %vm557, %v732, %v673
  %v761 = vsel %vm558, %v730, %v671
  %v762 = vsel %vm559, %v728, %v669
  %v763 = vsel %vm560, %v726, %v667
  %v764 = vsel %vm561, %v744, %v665
  %v765 = vadd.f32 %v621, %v745
  %v766 = vadd.f32 %v619, %v746
  %v767 = vadd.f32 %v617, %v747
  %v768 = vadd.f32 %v615, %v748
  %v769 = vadd.f32 %v613, %v749
  %v770 = vadd.f32 %v611, %v750
  %v771 = vadd.f32 %v609, %v751
  %v772 = vadd.f32 %v607, %v752
  %v773 = vadd.f32 %v605, %v753
  %v774 = vadd.f32 %v603, %v754
  %v775 = vadd.f32 %v622, %v755
  %v776 = vadd.f32 %v620, %v756
  %v777 = vadd.f32 %v618, %v757
  %v778 = vadd.f32 %v616, %v758
  %v779 = vadd.f32 %v614, %v759
  %v780 = vadd.f32 %v612, %v760
  %v781 = vadd.f32 %v610, %v761
  %v782 = vadd.f32 %v608, %v762
  %v783 = vadd.f32 %v606, %v763
  %v784 = vadd.f32 %v604, %v764
  %v785 = vpack.c.bf16 %v775, %v765
  %v786 = vpack.c.bf16 %v776, %v766
  %v787 = vpack.c.bf16 %v777, %v767
  %v788 = vpack.c.bf16 %v778, %v768
  %v789 = vpack.c.bf16 %v779, %v769
  %v790 = vpack.c.bf16 %v780, %v770
  %v791 = vpack.c.bf16 %v781, %v771
  %v792 = vpack.c.bf16 %v782, %v772
  %v793 = vpack.c.bf16 %v783, %v773
  %v794 = vpack.c.bf16 %v784, %v774
  %v805 = vunpack.c.l.b16 %v785
  %v806 = vunpack.c.l.b16 %v786
  %v807 = vunpack.c.l.b16 %v787
  %v808 = vunpack.c.l.b16 %v788
  %v809 = vunpack.c.l.b16 %v789
  %v810 = vunpack.c.l.b16 %v790
  %v811 = vunpack.c.l.b16 %v791
  %v812 = vunpack.c.l.b16 %v792
  %v813 = vunpack.c.l.b16 %v793
  %v814 = vunpack.c.l.b16 %v794
  %v815 = vunpack.c.h.b16 %v785
  %v816 = vunpack.c.h.b16 %v786
  %v817 = vunpack.c.h.b16 %v787
  %v818 = vunpack.c.h.b16 %v788
  %v819 = vunpack.c.h.b16 %v789
  %v820 = vunpack.c.h.b16 %v790
  %v821 = vunpack.c.h.b16 %v791
  %v822 = vunpack.c.h.b16 %v792
  %v823 = vunpack.c.h.b16 %v793
  %v824 = vunpack.c.h.b16 %v794
  %v825 = vpack.c.b16 %v806, %v805
  %v826 = vpack.c.b16 %v808, %v807
  %v827 = vpack.c.b16 %v810, %v809
  %v828 = vpack.c.b16 %v812, %v811
  %v829 = vpack.c.b16 %v814, %v813
  %v830 = vpack.c.b16 %v816, %v815
  %v831 = vpack.c.b16 %v818, %v817
  %v832 = vpack.c.b16 %v820, %v819
  %v833 = vpack.c.b16 %v822, %v821
  %v834 = vpack.c.b16 %v824, %v823
  %845 = vst [vmem:[#allocation2] sm:$0xff] %v825
  %846 = vst [vmem:[#allocation2 + $0x8] sm:$0xff] %v826
  %847 = vst [vmem:[#allocation2 + $0x10] sm:$0xff] %v827
  %848 = vst [vmem:[#allocation2 + $0x18] sm:$0xff] %v828
  %849 = vst [vmem:[#allocation2 + $0x20] sm:$0xff] %v829
  %850 = vst [vmem:[#allocation2 + $0x28] sm:$0xff] %v830
  %851 = vst [vmem:[#allocation2 + $0x30] sm:$0xff] %v831
  %852 = vst [vmem:[#allocation2 + $0x38] sm:$0xff] %v832
  %853 = vst [vmem:[#allocation2 + $0x40] sm:$0xff] %v833
  %854 = vst [vmem:[#allocation2 + $0x48] sm:$0xff] %v834
  %855 = vrot.lane.b32.xlu0 %v251, 3
  %v856 = vpop.permute.xlu0 %855
  %857 = vrot.lane.b32.xlu0 %v255, 3
  %v858 = vpop.permute.xlu0 %857
  %859 = vrot.lane.b32.xlu0 %v253, 3
  %v860 = vpop.permute.xlu0 %859
  %861 = vrot.lane.b32.xlu0 %v257, 3
  %v862 = vpop.permute.xlu0 %861
  %863 = vrot.lane.b32.xlu0 %v304, 3
  %v864 = vpop.permute.xlu0 %863
  %865 = vrot.lane.b32.xlu0 %v308, 3
  %v866 = vpop.permute.xlu0 %865
  %867 = vrot.lane.b32.xlu0 %v306, 3
  %v868 = vpop.permute.xlu0 %867
  %869 = vrot.lane.b32.xlu0 %v310, 3
  %v870 = vpop.permute.xlu0 %869
  %871 = vrot.lane.b32.xlu0 %v357, 3
  %v872 = vpop.permute.xlu0 %871
  %873 = vrot.lane.b32.xlu0 %v361, 3
  %v874 = vpop.permute.xlu0 %873
  %875 = vrot.lane.b32.xlu0 %v359, 3
  %v876 = vpop.permute.xlu0 %875
  %877 = vrot.lane.b32.xlu0 %v363, 3
  %v878 = vpop.permute.xlu0 %877
  %879 = vrot.lane.b32.xlu0 %v410, 3
  %v880 = vpop.permute.xlu0 %879
  %881 = vrot.lane.b32.xlu0 %v414, 3
  %v882 = vpop.permute.xlu0 %881
  %883 = vrot.lane.b32.xlu0 %v412, 3
  %v884 = vpop.permute.xlu0 %883
  %885 = vrot.lane.b32.xlu0 %v416, 3
  %v886 = vpop.permute.xlu0 %885
  %887 = vrot.lane.b32.xlu0 %v463, 3
  %v888 = vpop.permute.xlu0 %887
  %889 = vrot.lane.b32.xlu0 %v467, 3
  %v890 = vpop.permute.xlu0 %889
  %891 = vrot.lane.b32.xlu0 %v465, 3
  %v892 = vpop.permute.xlu0 %891
  %893 = vrot.lane.b32.xlu0 %v469, 3
  %v894 = vpop.permute.xlu0 %893
  %vm895 = vcmp.lt.s32.totalorder %v482, 3
  %v896 = vsel %vm895, %v888, %v892
  %v897 = vsel %vm895, %v890, %v894
  %v898 = vsel %vm895, %v884, %v888
  %v899 = vsel %vm895, %v886, %v890
  %v900 = vsel %vm895, %v880, %v884
  %v901 = vsel %vm895, %v882, %v886
  %v902 = vsel %vm895, %v876, %v880
  %v903 = vsel %vm895, %v878, %v882
  %v904 = vsel %vm895, %v872, %v876
  %v905 = vsel %vm895, %v874, %v878
  %v906 = vsel %vm895, %v868, %v872
  %v907 = vsel %vm895, %v870, %v874
  %v908 = vsel %vm895, %v864, %v868
  %v909 = vsel %vm895, %v866, %v870
  %v910 = vsel %vm895, %v860, %v864
  %v911 = vsel %vm895, %v862, %v866
  %v912 = vsel %vm895, %v856, %v860
  %v913 = vsel %vm895, %v858, %v862
  %v914 = vsel %vm895, %v892, %v856
  %v915 = vsel %vm895, %v894, %v858
  %916 = vrot.lane.b32.xlu0 %v261, 4
  %v917 = vpop.permute.xlu0 %916
  %918 = vrot.lane.b32.xlu0 %v265, 4
  %v919 = vpop.permute.xlu0 %918
  %920 = vrot.lane.b32.xlu0 %v263, 4
  %v921 = vpop.permute.xlu0 %920
  %922 = vrot.lane.b32.xlu0 %v267, 4
  %v923 = vpop.permute.xlu0 %922
  %924 = vrot.lane.b32.xlu0 %v314, 4
  %v925 = vpop.permute.xlu0 %924
  %926 = vrot.lane.b32.xlu0 %v318, 4
  %v927 = vpop.permute.xlu0 %926
  %928 = vrot.lane.b32.xlu0 %v316, 4
  %v929 = vpop.permute.xlu0 %928
  %930 = vrot.lane.b32.xlu0 %v320, 4
  %v931 = vpop.permute.xlu0 %930
  %932 = vrot.lane.b32.xlu0 %v367, 4
  %v933 = vpop.permute.xlu0 %932
  %934 = vrot.lane.b32.xlu0 %v371, 4
  %v935 = vpop.permute.xlu0 %934
  %936 = vrot.lane.b32.xlu0 %v369, 4
  %v937 = vpop.permute.xlu0 %936
  %938 = vrot.lane.b32.xlu0 %v373, 4
  %v939 = vpop.permute.xlu0 %938
  %940 = vrot.lane.b32.xlu0 %v420, 4
  %v941 = vpop.permute.xlu0 %940
  %942 = vrot.lane.b32.xlu0 %v424, 4
  %v943 = vpop.permute.xlu0 %942
  %944 = vrot.lane.b32.xlu0 %v422, 4
  %v945 = vpop.permute.xlu0 %944
  %946 = vrot.lane.b32.xlu0 %v426, 4
  %v947 = vpop.permute.xlu0 %946
  %948 = vrot.lane.b32.xlu0 %v473, 4
  %v949 = vpop.permute.xlu0 %948
  %950 = vrot.lane.b32.xlu0 %v477, 4
  %v951 = vpop.permute.xlu0 %950
  %952 = vrot.lane.b32.xlu0 %v475, 4
  %v953 = vpop.permute.xlu0 %952
  %954 = vrot.lane.b32.xlu0 %v479, 4
  %v955 = vpop.permute.xlu0 %954
  %v956 = vsel %vm602, %v949, %v953
  %v957 = vsel %vm602, %v951, %v955
  %v958 = vsel %vm602, %v945, %v949
  %v959 = vsel %vm602, %v947, %v951
  %v960 = vsel %vm602, %v941, %v945
  %v961 = vsel %vm602, %v943, %v947
  %v962 = vsel %vm602, %v937, %v941
  %v963 = vsel %vm602, %v939, %v943
  %v964 = vsel %vm602, %v933, %v937
  %v965 = vsel %vm602, %v935, %v939
  %v966 = vsel %vm602, %v929, %v933
  %v967 = vsel %vm602, %v931, %v935
  %v968 = vsel %vm602, %v925, %v929
  %v969 = vsel %vm602, %v927, %v931
  %v970 = vsel %vm602, %v921, %v925
  %v971 = vsel %vm602, %v923, %v927
  %v972 = vsel %vm602, %v917, %v921
  %v973 = vsel %vm602, %v919, %v923
  %v974 = vsel %vm602, %v953, %v917
  %v975 = vsel %vm602, %v955, %v919
  %976 = vrot.lane.b32.xlu0 %v261, 104
  %v977 = vpop.permute.xlu0 %976
  %978 = vrot.lane.b32.xlu0 %v265, 104
  %v979 = vpop.permute.xlu0 %978
  %980 = vrot.lane.b32.xlu0 %v263, 104
  %v981 = vpop.permute.xlu0 %980
  %982 = vrot.lane.b32.xlu0 %v267, 104
  %v983 = vpop.permute.xlu0 %982
  %984 = vrot.lane.b32.xlu0 %v314, 104
  %v985 = vpop.permute.xlu0 %984
  %986 = vrot.lane.b32.xlu0 %v318, 104
  %v987 = vpop.permute.xlu0 %986
  %988 = vrot.lane.b32.xlu0 %v316, 104
  %v989 = vpop.permute.xlu0 %988
  %990 = vrot.lane.b32.xlu0 %v320, 104
  %v991 = vpop.permute.xlu0 %990
  %992 = vrot.lane.b32.xlu0 %v367, 104
  %v993 = vpop.permute.xlu0 %992
  %994 = vrot.lane.b32.xlu0 %v371, 104
  %v995 = vpop.permute.xlu0 %994
  %996 = vrot.lane.b32.xlu0 %v369, 104
  %v997 = vpop.permute.xlu0 %996
  %998 = vrot.lane.b32.xlu0 %v373, 104
  %v999 = vpop.permute.xlu0 %998
  %1000 = vrot.lane.b32.xlu0 %v420, 104
  %v1001 = vpop.permute.xlu0 %1000
  %1002 = vrot.lane.b32.xlu0 %v424, 104
  %v1003 = vpop.permute.xlu0 %1002
  %1004 = vrot.lane.b32.xlu0 %v422, 104
  %v1005 = vpop.permute.xlu0 %1004
  %1006 = vrot.lane.b32.xlu0 %v426, 104
  %v1007 = vpop.permute.xlu0 %1006
  %1008 = vrot.lane.b32.xlu0 %v473, 104
  %v1009 = vpop.permute.xlu0 %1008
  %1010 = vrot.lane.b32.xlu0 %v477, 104
  %v1011 = vpop.permute.xlu0 %1010
  %1012 = vrot.lane.b32.xlu0 %v475, 104
  %v1013 = vpop.permute.xlu0 %1012
  %1014 = vrot.lane.b32.xlu0 %v479, 104
  %v1015 = vpop.permute.xlu0 %1014
  %vm1016 = vcmp.lt.s32.totalorder %v482, 104
  %v1017 = vsel %vm1016, %v1009, %v1013
  %v1018 = vsel %vm1016, %v1011, %v1015
  %v1019 = vsel %vm1016, %v1005, %v1009
  %v1020 = vsel %vm1016, %v1007, %v1011
  %v1021 = vsel %vm1016, %v1001, %v1005
  %v1022 = vsel %vm1016, %v1003, %v1007
  %v1023 = vsel %vm1016, %v997, %v1001
  %v1024 = vsel %vm1016, %v999, %v1003
  %v1025 = vsel %vm1016, %v993, %v997
  %v1026 = vsel %vm1016, %v995, %v999
  %v1027 = vsel %vm1016, %v989, %v993
  %v1028 = vsel %vm1016, %v991, %v995
  %v1029 = vsel %vm1016, %v985, %v989
  %v1030 = vsel %vm1016, %v987, %v991
  %v1031 = vsel %vm1016, %v981, %v985
  %v1032 = vsel %vm1016, %v983, %v987
  %v1033 = vsel %vm1016, %v977, %v981
  %v1034 = vsel %vm1016, %v979, %v983
  %v1035 = vsel %vm1016, %v1013, %v977
  %v1036 = vsel %vm1016, %v1015, %v979
  %v1037 = vsel %vm552, %v1033, %v974
  %v1038 = vsel %vm553, %v1031, %v972
  %v1039 = vsel %vm554, %v1029, %v970
  %v1040 = vsel %vm555, %v1027, %v968
  %v1041 = vsel %vm556, %v1025, %v966
  %v1042 = vsel %vm557, %v1023, %v964
  %v1043 = vsel %vm558, %v1021, %v962
  %v1044 = vsel %vm559, %v1019, %v960
  %v1045 = vsel %vm560, %v1017, %v958
  %v1046 = vsel %vm561, %v1035, %v956
  %v1047 = vsel %vm552, %v1034, %v975
  %v1048 = vsel %vm553, %v1032, %v973
  %v1049 = vsel %vm554, %v1030, %v971
  %v1050 = vsel %vm555, %v1028, %v969
  %v1051 = vsel %vm556, %v1026, %v967
  %v1052 = vsel %vm557, %v1024, %v965
  %v1053 = vsel %vm558, %v1022, %v963
  %v1054 = vsel %vm559, %v1020, %v961
  %v1055 = vsel %vm560, %v1018, %v959
  %v1056 = vsel %vm561, %v1036, %v957
  %v1057 = vadd.f32 %v914, %v1037
  %v1058 = vadd.f32 %v912, %v1038
  %v1059 = vadd.f32 %v910, %v1039
  %v1060 = vadd.f32 %v908, %v1040
  %v1061 = vadd.f32 %v906, %v1041
  %v1062 = vadd.f32 %v904, %v1042
  %v1063 = vadd.f32 %v902, %v1043
  %v1064 = vadd.f32 %v900, %v1044
  %v1065 = vadd.f32 %v898, %v1045
  %v1066 = vadd.f32 %v896, %v1046
  %v1067 = vadd.f32 %v915, %v1047
  %v1068 = vadd.f32 %v913, %v1048
  %v1069 = vadd.f32 %v911, %v1049
  %v1070 = vadd.f32 %v909, %v1050
  %v1071 = vadd.f32 %v907, %v1051
  %v1072 = vadd.f32 %v905, %v1052
  %v1073 = vadd.f32 %v903, %v1053
  %v1074 = vadd.f32 %v901, %v1054
  %v1075 = vadd.f32 %v899, %v1055
  %v1076 = vadd.f32 %v897, %v1056
  %v1077 = vpack.c.bf16 %v1067, %v1057
  %v1078 = vpack.c.bf16 %v1068, %v1058
  %v1079 = vpack.c.bf16 %v1069, %v1059
  %v1080 = vpack.c.bf16 %v1070, %v1060
  %v1081 = vpack.c.bf16 %v1071, %v1061
  %v1082 = vpack.c.bf16 %v1072, %v1062
  %v1083 = vpack.c.bf16 %v1073, %v1063
  %v1084 = vpack.c.bf16 %v1074, %v1064
  %v1085 = vpack.c.bf16 %v1075, %v1065
  %v1086 = vpack.c.bf16 %v1076, %v1066
  %v1097 = vunpack.c.l.b16 %v1077
  %v1098 = vunpack.c.l.b16 %v1078
  %v1099 = vunpack.c.l.b16 %v1079
  %v1100 = vunpack.c.l.b16 %v1080
  %v1101 = vunpack.c.l.b16 %v1081
  %v1102 = vunpack.c.l.b16 %v1082
  %v1103 = vunpack.c.l.b16 %v1083
  %v1104 = vunpack.c.l.b16 %v1084
  %v1105 = vunpack.c.l.b16 %v1085
  %v1106 = vunpack.c.l.b16 %v1086
  %v1107 = vunpack.c.h.b16 %v1077
  %v1108 = vunpack.c.h.b16 %v1078
  %v1109 = vunpack.c.h.b16 %v1079
  %v1110 = vunpack.c.h.b16 %v1080
  %v1111 = vunpack.c.h.b16 %v1081
  %v1112 = vunpack.c.h.b16 %v1082
  %v1113 = vunpack.c.h.b16 %v1083
  %v1114 = vunpack.c.h.b16 %v1084
  %v1115 = vunpack.c.h.b16 %v1085
  %v1116 = vunpack.c.h.b16 %v1086
  %v1117 = vpack.c.b16 %v1098, %v1097
  %v1118 = vpack.c.b16 %v1100, %v1099
  %v1119 = vpack.c.b16 %v1102, %v1101
  %v1120 = vpack.c.b16 %v1104, %v1103
  %v1121 = vpack.c.b16 %v1106, %v1105
  %v1122 = vpack.c.b16 %v1108, %v1107
  %v1123 = vpack.c.b16 %v1110, %v1109
  %v1124 = vpack.c.b16 %v1112, %v1111
  %v1125 = vpack.c.b16 %v1114, %v1113
  %v1126 = vpack.c.b16 %v1116, %v1115
  %1137 = vst [vmem:[#allocation2 + $0x50] sm:$0xff] %v1117
  %1138 = vst [vmem:[#allocation2 + $0x58] sm:$0xff] %v1118
  %1139 = vst [vmem:[#allocation2 + $0x60] sm:$0xff] %v1119
  %1140 = vst [vmem:[#allocation2 + $0x68] sm:$0xff] %v1120
  %1141 = vst [vmem:[#allocation2 + $0x70] sm:$0xff] %v1121
  %1142 = vst [vmem:[#allocation2 + $0x78] sm:$0xff] %v1122
  %1143 = vst [vmem:[#allocation2 + $0x80] sm:$0xff] %v1123
  %1144 = vst [vmem:[#allocation2 + $0x88] sm:$0xff] %v1124
  %1145 = vst [vmem:[#allocation2 + $0x90] sm:$0xff] %v1125
  %1146 = vst [vmem:[#allocation2 + $0x98] sm:$0xff] %v1126
  %1147 = vrot.lane.b32.xlu0 %v251, 2
  %v1148 = vpop.permute.xlu0 %1147
  %1149 = vrot.lane.b32.xlu0 %v255, 2
  %v1150 = vpop.permute.xlu0 %1149
  %1151 = vrot.lane.b32.xlu0 %v253, 2
  %v1152 = vpop.permute.xlu0 %1151
  %1153 = vrot.lane.b32.xlu0 %v257, 2
  %v1154 = vpop.permute.xlu0 %1153
  %1155 = vrot.lane.b32.xlu0 %v304, 2
  %v1156 = vpop.permute.xlu0 %1155
  %1157 = vrot.lane.b32.xlu0 %v308, 2
  %v1158 = vpop.permute.xlu0 %1157
  %1159 = vrot.lane.b32.xlu0 %v306, 2
  %v1160 = vpop.permute.xlu0 %1159
  %1161 = vrot.lane.b32.xlu0 %v310, 2
  %v1162 = vpop.permute.xlu0 %1161
  %1163 = vrot.lane.b32.xlu0 %v357, 2
  %v1164 = vpop.permute.xlu0 %1163
  %1165 = vrot.lane.b32.xlu0 %v361, 2
  %v1166 = vpop.permute.xlu0 %1165
  %1167 = vrot.lane.b32.xlu0 %v359, 2
  %v1168 = vpop.permute.xlu0 %1167
  %1169 = vrot.lane.b32.xlu0 %v363, 2
  %v1170 = vpop.permute.xlu0 %1169
  %1171 = vrot.lane.b32.xlu0 %v410, 2
  %v1172 = vpop.permute.xlu0 %1171
  %1173 = vrot.lane.b32.xlu0 %v414, 2
  %v1174 = vpop.permute.xlu0 %1173
  %1175 = vrot.lane.b32.xlu0 %v412, 2
  %v1176 = vpop.permute.xlu0 %1175
  %1177 = vrot.lane.b32.xlu0 %v416, 2
  %v1178 = vpop.permute.xlu0 %1177
  %1179 = vrot.lane.b32.xlu0 %v463, 2
  %v1180 = vpop.permute.xlu0 %1179
  %1181 = vrot.lane.b32.xlu0 %v467, 2
  %v1182 = vpop.permute.xlu0 %1181
  %1183 = vrot.lane.b32.xlu0 %v465, 2
  %v1184 = vpop.permute.xlu0 %1183
  %1185 = vrot.lane.b32.xlu0 %v469, 2
  %v1186 = vpop.permute.xlu0 %1185
  %vm1187 = vcmp.lt.s32.totalorder %v482, 2
  %v1188 = vsel %vm1187, %v1180, %v1184
  %v1189 = vsel %vm1187, %v1182, %v1186
  %v1190 = vsel %vm1187, %v1176, %v1180
  %v1191 = vsel %vm1187, %v1178, %v1182
  %v1192 = vsel %vm1187, %v1172, %v1176
  %v1193 = vsel %vm1187, %v1174, %v1178
  %v1194 = vsel %vm1187, %v1168, %v1172
  %v1195 = vsel %vm1187, %v1170, %v1174
  %v1196 = vsel %vm1187, %v1164, %v1168
  %v1197 = vsel %vm1187, %v1166, %v1170
  %v1198 = vsel %vm1187, %v1160, %v1164
  %v1199 = vsel %vm1187, %v1162, %v1166
  %v1200 = vsel %vm1187, %v1156, %v1160
  %v1201 = vsel %vm1187, %v1158, %v1162
  %v1202 = vsel %vm1187, %v1152, %v1156
  %v1203 = vsel %vm1187, %v1154, %v1158
  %v1204 = vsel %vm1187, %v1148, %v1152
  %v1205 = vsel %vm1187, %v1150, %v1154
  %v1206 = vsel %vm1187, %v1184, %v1148
  %v1207 = vsel %vm1187, %v1186, %v1150
  %1208 = vrot.lane.b32.xlu0 %v261, 3
  %v1209 = vpop.permute.xlu0 %1208
  %1210 = vrot.lane.b32.xlu0 %v265, 3
  %v1211 = vpop.permute.xlu0 %1210
  %1212 = vrot.lane.b32.xlu0 %v263, 3
  %v1213 = vpop.permute.xlu0 %1212
  %1214 = vrot.lane.b32.xlu0 %v267, 3
  %v1215 = vpop.permute.xlu0 %1214
  %1216 = vrot.lane.b32.xlu0 %v314, 3
  %v1217 = vpop.permute.xlu0 %1216
  %1218 = vrot.lane.b32.xlu0 %v318, 3
  %v1219 = vpop.permute.xlu0 %1218
  %1220 = vrot.lane.b32.xlu0 %v316, 3
  %v1221 = vpop.permute.xlu0 %1220
  %1222 = vrot.lane.b32.xlu0 %v320, 3
  %v1223 = vpop.permute.xlu0 %1222
  %1224 = vrot.lane.b32.xlu0 %v367, 3
  %v1225 = vpop.permute.xlu0 %1224
  %1226 = vrot.lane.b32.xlu0 %v371, 3
  %v1227 = vpop.permute.xlu0 %1226
  %1228 = vrot.lane.b32.xlu0 %v369, 3
  %v1229 = vpop.permute.xlu0 %1228
  %1230 = vrot.lane.b32.xlu0 %v373, 3
  %v1231 = vpop.permute.xlu0 %1230
  %1232 = vrot.lane.b32.xlu0 %v420, 3
  %v1233 = vpop.permute.xlu0 %1232
  %1234 = vrot.lane.b32.xlu0 %v424, 3
  %v1235 = vpop.permute.xlu0 %1234
  %1236 = vrot.lane.b32.xlu0 %v422, 3
  %v1237 = vpop.permute.xlu0 %1236
  %1238 = vrot.lane.b32.xlu0 %v426, 3
  %v1239 = vpop.permute.xlu0 %1238
  %1240 = vrot.lane.b32.xlu0 %v473, 3
  %v1241 = vpop.permute.xlu0 %1240
  %1242 = vrot.lane.b32.xlu0 %v477, 3
  %v1243 = vpop.permute.xlu0 %1242
  %1244 = vrot.lane.b32.xlu0 %v475, 3
  %v1245 = vpop.permute.xlu0 %1244
  %1246 = vrot.lane.b32.xlu0 %v479, 3
  %v1247 = vpop.permute.xlu0 %1246
  %v1248 = vsel %vm895, %v1241, %v1245
  %v1249 = vsel %vm895, %v1243, %v1247
  %v1250 = vsel %vm895, %v1237, %v1241
  %v1251 = vsel %vm895, %v1239, %v1243
  %v1252 = vsel %vm895, %v1233, %v1237
  %v1253 = vsel %vm895, %v1235, %v1239
  %v1254 = vsel %vm895, %v1229, %v1233
  %v1255 = vsel %vm895, %v1231, %v1235
  %v1256 = vsel %vm895, %v1225, %v1229
  %v1257 = vsel %vm895, %v1227, %v1231
  %v1258 = vsel %vm895, %v1221, %v1225
  %v1259 = vsel %vm895, %v1223, %v1227
  %v1260 = vsel %vm895, %v1217, %v1221
  %v1261 = vsel %vm895, %v1219, %v1223
  %v1262 = vsel %vm895, %v1213, %v1217
  %v1263 = vsel %vm895, %v1215, %v1219
  %v1264 = vsel %vm895, %v1209, %v1213
  %v1265 = vsel %vm895, %v1211, %v1215
  %v1266 = vsel %vm895, %v1245, %v1209
  %v1267 = vsel %vm895, %v1247, %v1211
  %1268 = vrot.lane.b32.xlu0 %v261, 103
  %v1269 = vpop.permute.xlu0 %1268
  %1270 = vrot.lane.b32.xlu0 %v265, 103
  %v1271 = vpop.permute.xlu0 %1270
  %1272 = vrot.lane.b32.xlu0 %v263, 103
  %v1273 = vpop.permute.xlu0 %1272
  %1274 = vrot.lane.b32.xlu0 %v267, 103
  %v1275 = vpop.permute.xlu0 %1274
  %1276 = vrot.lane.b32.xlu0 %v314, 103
  %v1277 = vpop.permute.xlu0 %1276
  %1278 = vrot.lane.b32.xlu0 %v318, 103
  %v1279 = vpop.permute.xlu0 %1278
  %1280 = vrot.lane.b32.xlu0 %v316, 103
  %v1281 = vpop.permute.xlu0 %1280
  %1282 = vrot.lane.b32.xlu0 %v320, 103
  %v1283 = vpop.permute.xlu0 %1282
  %1284 = vrot.lane.b32.xlu0 %v367, 103
  %v1285 = vpop.permute.xlu0 %1284
  %1286 = vrot.lane.b32.xlu0 %v371, 103
  %v1287 = vpop.permute.xlu0 %1286
  %1288 = vrot.lane.b32.xlu0 %v369, 103
  %v1289 = vpop.permute.xlu0 %1288
  %1290 = vrot.lane.b32.xlu0 %v373, 103
  %v1291 = vpop.permute.xlu0 %1290
  %1292 = vrot.lane.b32.xlu0 %v420, 103
  %v1293 = vpop.permute.xlu0 %1292
  %1294 = vrot.lane.b32.xlu0 %v424, 103
  %v1295 = vpop.permute.xlu0 %1294
  %1296 = vrot.lane.b32.xlu0 %v422, 103
  %v1297 = vpop.permute.xlu0 %1296
  %1298 = vrot.lane.b32.xlu0 %v426, 103
  %v1299 = vpop.permute.xlu0 %1298
  %1300 = vrot.lane.b32.xlu0 %v473, 103
  %v1301 = vpop.permute.xlu0 %1300
  %1302 = vrot.lane.b32.xlu0 %v477, 103
  %v1303 = vpop.permute.xlu0 %1302
  %1304 = vrot.lane.b32.xlu0 %v475, 103
  %v1305 = vpop.permute.xlu0 %1304
  %1306 = vrot.lane.b32.xlu0 %v479, 103
  %v1307 = vpop.permute.xlu0 %1306
  %vm1308 = vcmp.lt.s32.totalorder %v482, 103
  %v1309 = vsel %vm1308, %v1301, %v1305
  %v1310 = vsel %vm1308, %v1303, %v1307
  %v1311 = vsel %vm1308, %v1297, %v1301
  %v1312 = vsel %vm1308, %v1299, %v1303
  %v1313 = vsel %vm1308, %v1293, %v1297
  %v1314 = vsel %vm1308, %v1295, %v1299
  %v1315 = vsel %vm1308, %v1289, %v1293
  %v1316 = vsel %vm1308, %v1291, %v1295
  %v1317 = vsel %vm1308, %v1285, %v1289
  %v1318 = vsel %vm1308, %v1287, %v1291
  %v1319 = vsel %vm1308, %v1281, %v1285
  %v1320 = vsel %vm1308, %v1283, %v1287
  %v1321 = vsel %vm1308, %v1277, %v1281
  %v1322 = vsel %vm1308, %v1279, %v1283
  %v1323 = vsel %vm1308, %v1273, %v1277
  %v1324 = vsel %vm1308, %v1275, %v1279
  %v1325 = vsel %vm1308, %v1269, %v1273
  %v1326 = vsel %vm1308, %v1271, %v1275
  %v1327 = vsel %vm1308, %v1305, %v1269
  %v1328 = vsel %vm1308, %v1307, %v1271
  %v1329 = vsel %vm552, %v1325, %v1266
  %v1330 = vsel %vm553, %v1323, %v1264
  %v1331 = vsel %vm554, %v1321, %v1262
  %v1332 = vsel %vm555, %v1319, %v1260
  %v1333 = vsel %vm556, %v1317, %v1258
  %v1334 = vsel %vm557, %v1315, %v1256
  %v1335 = vsel %vm558, %v1313, %v1254
  %v1336 = vsel %vm559, %v1311, %v1252
  %v1337 = vsel %vm560, %v1309, %v1250
  %v1338 = vsel %vm561, %v1327, %v1248
  %v1339 = vsel %vm552, %v1326, %v1267
  %v1340 = vsel %vm553, %v1324, %v1265
  %v1341 = vsel %vm554, %v1322, %v1263
  %v1342 = vsel %vm555, %v1320, %v1261
  %v1343 = vsel %vm556, %v1318, %v1259
  %v1344 = vsel %vm557, %v1316, %v1257
  %v1345 = vsel %vm558, %v1314, %v1255
  %v1346 = vsel %vm559, %v1312, %v1253
  %v1347 = vsel %vm560, %v1310, %v1251
  %v1348 = vsel %vm561, %v1328, %v1249
  %v1349 = vadd.f32 %v1206, %v1329
  %v1350 = vadd.f32 %v1204, %v1330
  %v1351 = vadd.f32 %v1202, %v1331
  %v1352 = vadd.f32 %v1200, %v1332
  %v1353 = vadd.f32 %v1198, %v1333
  %v1354 = vadd.f32 %v1196, %v1334
  %v1355 = vadd.f32 %v1194, %v1335
  %v1356 = vadd.f32 %v1192, %v1336
  %v1357 = vadd.f32 %v1190, %v1337
  %v1358 = vadd.f32 %v1188, %v1338
  %v1359 = vadd.f32 %v1207, %v1339
  %v1360 = vadd.f32 %v1205, %v1340
  %v1361 = vadd.f32 %v1203, %v1341
  %v1362 = vadd.f32 %v1201, %v1342
  %v1363 = vadd.f32 %v1199, %v1343
  %v1364 = vadd.f32 %v1197, %v1344
  %v1365 = vadd.f32 %v1195, %v1345
  %v1366 = vadd.f32 %v1193, %v1346
  %v1367 = vadd.f32 %v1191, %v1347
  %v1368 = vadd.f32 %v1189, %v1348
  %v1369 = vpack.c.bf16 %v1359, %v1349
  %v1370 = vpack.c.bf16 %v1360, %v1350
  %v1371 = vpack.c.bf16 %v1361, %v1351
  %v1372 = vpack.c.bf16 %v1362, %v1352
  %v1373 = vpack.c.bf16 %v1363, %v1353
  %v1374 = vpack.c.bf16 %v1364, %v1354
  %v1375 = vpack.c.bf16 %v1365, %v1355
  %v1376 = vpack.c.bf16 %v1366, %v1356
  %v1377 = vpack.c.bf16 %v1367, %v1357
  %v1378 = vpack.c.bf16 %v1368, %v1358
  %v1389 = vunpack.c.l.b16 %v1369
  %v1390 = vunpack.c.l.b16 %v1370
  %v1391 = vunpack.c.l.b16 %v1371
  %v1392 = vunpack.c.l.b16 %v1372
  %v1393 = vunpack.c.l.b16 %v1373
  %v1394 = vunpack.c.l.b16 %v1374
  %v1395 = vunpack.c.l.b16 %v1375
  %v1396 = vunpack.c.l.b16 %v1376
  %v1397 = vunpack.c.l.b16 %v1377
  %v1398 = vunpack.c.l.b16 %v1378
  %v1399 = vunpack.c.h.b16 %v1369
  %v1400 = vunpack.c.h.b16 %v1370
  %v1401 = vunpack.c.h.b16 %v1371
  %v1402 = vunpack.c.h.b16 %v1372
  %v1403 = vunpack.c.h.b16 %v1373
  %v1404 = vunpack.c.h.b16 %v1374
  %v1405 = vunpack.c.h.b16 %v1375
  %v1406 = vunpack.c.h.b16 %v1376
  %v1407 = vunpack.c.h.b16 %v1377
  %v1408 = vunpack.c.h.b16 %v1378
  %v1409 = vpack.c.b16 %v1390, %v1389
  %v1410 = vpack.c.b16 %v1392, %v1391
  %v1411 = vpack.c.b16 %v1394, %v1393
  %v1412 = vpack.c.b16 %v1396, %v1395
  %v1413 = vpack.c.b16 %v1398, %v1397
  %v1414 = vpack.c.b16 %v1400, %v1399
  %v1415 = vpack.c.b16 %v1402, %v1401
  %v1416 = vpack.c.b16 %v1404, %v1403
  %v1417 = vpack.c.b16 %v1406, %v1405
  %v1418 = vpack.c.b16 %v1408, %v1407
  %1429 = vst [vmem:[#allocation2 + $0xa0] sm:$0xff] %v1409
  %1430 = vst [vmem:[#allocation2 + $0xa8] sm:$0xff] %v1410
  %1431 = vst [vmem:[#allocation2 + $0xb0] sm:$0xff] %v1411
  %1432 = vst [vmem:[#allocation2 + $0xb8] sm:$0xff] %v1412
  %1433 = vst [vmem:[#allocation2 + $0xc0] sm:$0xff] %v1413
  %1434 = vst [vmem:[#allocation2 + $0xc8] sm:$0xff] %v1414
  %1435 = vst [vmem:[#allocation2 + $0xd0] sm:$0xff] %v1415
  %1436 = vst [vmem:[#allocation2 + $0xd8] sm:$0xff] %v1416
  %1437 = vst [vmem:[#allocation2 + $0xe0] sm:$0xff] %v1417
  %1438 = vst [vmem:[#allocation2 + $0xe8] sm:$0xff] %v1418
  %1439 = vrot.lane.b32.xlu0 %v251, 1
  %v1440 = vpop.permute.xlu0 %1439
  %1441 = vrot.lane.b32.xlu0 %v255, 1
  %v1442 = vpop.permute.xlu0 %1441
  %1443 = vrot.lane.b32.xlu0 %v253, 1
  %v1444 = vpop.permute.xlu0 %1443
  %1445 = vrot.lane.b32.xlu0 %v257, 1
  %v1446 = vpop.permute.xlu0 %1445
  %1447 = vrot.lane.b32.xlu0 %v304, 1
  %v1448 = vpop.permute.xlu0 %1447
  %1449 = vrot.lane.b32.xlu0 %v308, 1
  %v1450 = vpop.permute.xlu0 %1449
  %1451 = vrot.lane.b32.xlu0 %v306, 1
  %v1452 = vpop.permute.xlu0 %1451
  %1453 = vrot.lane.b32.xlu0 %v310, 1
  %v1454 = vpop.permute.xlu0 %1453
  %1455 = vrot.lane.b32.xlu0 %v357, 1
  %v1456 = vpop.permute.xlu0 %1455
  %1457 = vrot.lane.b32.xlu0 %v361, 1
  %v1458 = vpop.permute.xlu0 %1457
  %1459 = vrot.lane.b32.xlu0 %v359, 1
  %v1460 = vpop.permute.xlu0 %1459
  %1461 = vrot.lane.b32.xlu0 %v363, 1
  %v1462 = vpop.permute.xlu0 %1461
  %1463 = vrot.lane.b32.xlu0 %v410, 1
  %v1464 = vpop.permute.xlu0 %1463
  %1465 = vrot.lane.b32.xlu0 %v414, 1
  %v1466 = vpop.permute.xlu0 %1465
  %1467 = vrot.lane.b32.xlu0 %v412, 1
  %v1468 = vpop.permute.xlu0 %1467
  %1469 = vrot.lane.b32.xlu0 %v416, 1
  %v1470 = vpop.permute.xlu0 %1469
  %1471 = vrot.lane.b32.xlu0 %v463, 1
  %v1472 = vpop.permute.xlu0 %1471
  %1473 = vrot.lane.b32.xlu0 %v467, 1
  %v1474 = vpop.permute.xlu0 %1473
  %1475 = vrot.lane.b32.xlu0 %v465, 1
  %v1476 = vpop.permute.xlu0 %1475
  %1477 = vrot.lane.b32.xlu0 %v469, 1
  %v1478 = vpop.permute.xlu0 %1477
  %vm1479 = vcmp.lt.s32.totalorder %v482, 1
  %v1480 = vsel %vm1479, %v1472, %v1476
  %v1481 = vsel %vm1479, %v1474, %v1478
  %v1482 = vsel %vm1479, %v1468, %v1472
  %v1483 = vsel %vm1479, %v1470, %v1474
  %v1484 = vsel %vm1479, %v1464, %v1468
  %v1485 = vsel %vm1479, %v1466, %v1470
  %v1486 = vsel %vm1479, %v1460, %v1464
  %v1487 = vsel %vm1479, %v1462, %v1466
  %v1488 = vsel %vm1479, %v1456, %v1460
  %v1489 = vsel %vm1479, %v1458, %v1462
  %v1490 = vsel %vm1479, %v1452, %v1456
  %v1491 = vsel %vm1479, %v1454, %v1458
  %v1492 = vsel %vm1479, %v1448, %v1452
  %v1493 = vsel %vm1479, %v1450, %v1454
  %v1494 = vsel %vm1479, %v1444, %v1448
  %v1495 = vsel %vm1479, %v1446, %v1450
  %v1496 = vsel %vm1479, %v1440, %v1444
  %v1497 = vsel %vm1479, %v1442, %v1446
  %v1498 = vsel %vm1479, %v1476, %v1440
  %v1499 = vsel %vm1479, %v1478, %v1442
  %1500 = vrot.lane.b32.xlu0 %v261, 2
  %v1501 = vpop.permute.xlu0 %1500
  %1502 = vrot.lane.b32.xlu0 %v265, 2
  %v1503 = vpop.permute.xlu0 %1502
  %1504 = vrot.lane.b32.xlu0 %v263, 2
  %v1505 = vpop.permute.xlu0 %1504
  %1506 = vrot.lane.b32.xlu0 %v267, 2
  %v1507 = vpop.permute.xlu0 %1506
  %1508 = vrot.lane.b32.xlu0 %v314, 2
  %v1509 = vpop.permute.xlu0 %1508
  %1510 = vrot.lane.b32.xlu0 %v318, 2
  %v1511 = vpop.permute.xlu0 %1510
  %1512 = vrot.lane.b32.xlu0 %v316, 2
  %v1513 = vpop.permute.xlu0 %1512
  %1514 = vrot.lane.b32.xlu0 %v320, 2
  %v1515 = vpop.permute.xlu0 %1514
  %1516 = vrot.lane.b32.xlu0 %v367, 2
  %v1517 = vpop.permute.xlu0 %1516
  %1518 = vrot.lane.b32.xlu0 %v371, 2
  %v1519 = vpop.permute.xlu0 %1518
  %1520 = vrot.lane.b32.xlu0 %v369, 2
  %v1521 = vpop.permute.xlu0 %1520
  %1522 = vrot.lane.b32.xlu0 %v373, 2
  %v1523 = vpop.permute.xlu0 %1522
  %1524 = vrot.lane.b32.xlu0 %v420, 2
  %v1525 = vpop.permute.xlu0 %1524
  %1526 = vrot.lane.b32.xlu0 %v424, 2
  %v1527 = vpop.permute.xlu0 %1526
  %1528 = vrot.lane.b32.xlu0 %v422, 2
  %v1529 = vpop.permute.xlu0 %1528
  %1530 = vrot.lane.b32.xlu0 %v426, 2
  %v1531 = vpop.permute.xlu0 %1530
  %1532 = vrot.lane.b32.xlu0 %v473, 2
  %v1533 = vpop.permute.xlu0 %1532
  %1534 = vrot.lane.b32.xlu0 %v477, 2
  %v1535 = vpop.permute.xlu0 %1534
  %1536 = vrot.lane.b32.xlu0 %v475, 2
  %v1537 = vpop.permute.xlu0 %1536
  %1538 = vrot.lane.b32.xlu0 %v479, 2
  %v1539 = vpop.permute.xlu0 %1538
  %v1540 = vsel %vm1187, %v1533, %v1537
  %v1541 = vsel %vm1187, %v1535, %v1539
  %v1542 = vsel %vm1187, %v1529, %v1533
  %v1543 = vsel %vm1187, %v1531, %v1535
  %v1544 = vsel %vm1187, %v1525, %v1529
  %v1545 = vsel %vm1187, %v1527, %v1531
  %v1546 = vsel %vm1187, %v1521, %v1525
  %v1547 = vsel %vm1187, %v1523, %v1527
  %v1548 = vsel %vm1187, %v1517, %v1521
  %v1549 = vsel %vm1187, %v1519, %v1523
  %v1550 = vsel %vm1187, %v1513, %v1517
  %v1551 = vsel %vm1187, %v1515, %v1519
  %v1552 = vsel %vm1187, %v1509, %v1513
  %v1553 = vsel %vm1187, %v1511, %v1515
  %v1554 = vsel %vm1187, %v1505, %v1509
  %v1555 = vsel %vm1187, %v1507, %v1511
  %v1556 = vsel %vm1187, %v1501, %v1505
  %v1557 = vsel %vm1187, %v1503, %v1507
  %v1558 = vsel %vm1187, %v1537, %v1501
  %v1559 = vsel %vm1187, %v1539, %v1503
  %1560 = vrot.lane.b32.xlu0 %v261, 102
  %v1561 = vpop.permute.xlu0 %1560
  %1562 = vrot.lane.b32.xlu0 %v265, 102
  %v1563 = vpop.permute.xlu0 %1562
  %1564 = vrot.lane.b32.xlu0 %v263, 102
  %v1565 = vpop.permute.xlu0 %1564
  %1566 = vrot.lane.b32.xlu0 %v267, 102
  %v1567 = vpop.permute.xlu0 %1566
  %1568 = vrot.lane.b32.xlu0 %v314, 102
  %v1569 = vpop.permute.xlu0 %1568
  %1570 = vrot.lane.b32.xlu0 %v318, 102
  %v1571 = vpop.permute.xlu0 %1570
  %1572 = vrot.lane.b32.xlu0 %v316, 102
  %v1573 = vpop.permute.xlu0 %1572
  %1574 = vrot.lane.b32.xlu0 %v320, 102
  %v1575 = vpop.permute.xlu0 %1574
  %1576 = vrot.lane.b32.xlu0 %v367, 102
  %v1577 = vpop.permute.xlu0 %1576
  %1578 = vrot.lane.b32.xlu0 %v371, 102
  %v1579 = vpop.permute.xlu0 %1578
  %1580 = vrot.lane.b32.xlu0 %v369, 102
  %v1581 = vpop.permute.xlu0 %1580
  %1582 = vrot.lane.b32.xlu0 %v373, 102
  %v1583 = vpop.permute.xlu0 %1582
  %1584 = vrot.lane.b32.xlu0 %v420, 102
  %v1585 = vpop.permute.xlu0 %1584
  %1586 = vrot.lane.b32.xlu0 %v424, 102
  %v1587 = vpop.permute.xlu0 %1586
  %1588 = vrot.lane.b32.xlu0 %v422, 102
  %v1589 = vpop.permute.xlu0 %1588
  %1590 = vrot.lane.b32.xlu0 %v426, 102
  %v1591 = vpop.permute.xlu0 %1590
  %1592 = vrot.lane.b32.xlu0 %v473, 102
  %v1593 = vpop.permute.xlu0 %1592
  %1594 = vrot.lane.b32.xlu0 %v477, 102
  %v1595 = vpop.permute.xlu0 %1594
  %1596 = vrot.lane.b32.xlu0 %v475, 102
  %v1597 = vpop.permute.xlu0 %1596
  %1598 = vrot.lane.b32.xlu0 %v479, 102
  %v1599 = vpop.permute.xlu0 %1598
  %vm1600 = vcmp.lt.s32.totalorder %v482, 102
  %v1601 = vsel %vm1600, %v1593, %v1597
  %v1602 = vsel %vm1600, %v1595, %v1599
  %v1603 = vsel %vm1600, %v1589, %v1593
  %v1604 = vsel %vm1600, %v1591, %v1595
  %v1605 = vsel %vm1600, %v1585, %v1589
  %v1606 = vsel %vm1600, %v1587, %v1591
  %v1607 = vsel %vm1600, %v1581, %v1585
  %v1608 = vsel %vm1600, %v1583, %v1587
  %v1609 = vsel %vm1600, %v1577, %v1581
  %v1610 = vsel %vm1600, %v1579, %v1583
  %v1611 = vsel %vm1600, %v1573, %v1577
  %v1612 = vsel %vm1600, %v1575, %v1579
  %v1613 = vsel %vm1600, %v1569, %v1573
  %v1614 = vsel %vm1600, %v1571, %v1575
  %v1615 = vsel %vm1600, %v1565, %v1569
  %v1616 = vsel %vm1600, %v1567, %v1571
  %v1617 = vsel %vm1600, %v1561, %v1565
  %v1618 = vsel %vm1600, %v1563, %v1567
  %v1619 = vsel %vm1600, %v1597, %v1561
  %v1620 = vsel %vm1600, %v1599, %v1563
  %v1621 = vsel %vm552, %v1617, %v1558
  %v1622 = vsel %vm553, %v1615, %v1556
  %v1623 = vsel %vm554, %v1613, %v1554
  %v1624 = vsel %vm555, %v1611, %v1552
  %v1625 = vsel %vm556, %v1609, %v1550
  %v1626 = vsel %vm557, %v1607, %v1548
  %v1627 = vsel %vm558, %v1605, %v1546
  %v1628 = vsel %vm559, %v1603, %v1544
  %v1629 = vsel %vm560, %v1601, %v1542
  %v1630 = vsel %vm561, %v1619, %v1540
  %v1631 = vsel %vm552, %v1618, %v1559
  %v1632 = vsel %vm553, %v1616, %v1557
  %v1633 = vsel %vm554, %v1614, %v1555
  %v1634 = vsel %vm555, %v1612, %v1553
  %v1635 = vsel %vm556, %v1610, %v1551
  %v1636 = vsel %vm557, %v1608, %v1549
  %v1637 = vsel %vm558, %v1606, %v1547
  %v1638 = vsel %vm559, %v1604, %v1545
  %v1639 = vsel %vm560, %v1602, %v1543
  %v1640 = vsel %vm561, %v1620, %v1541
  %v1641 = vadd.f32 %v1498, %v1621
  %v1642 = vadd.f32 %v1496, %v1622
  %v1643 = vadd.f32 %v1494, %v1623
  %v1644 = vadd.f32 %v1492, %v1624
  %v1645 = vadd.f32 %v1490, %v1625
  %v1646 = vadd.f32 %v1488, %v1626
  %v1647 = vadd.f32 %v1486, %v1627
  %v1648 = vadd.f32 %v1484, %v1628
  %v1649 = vadd.f32 %v1482, %v1629
  %v1650 = vadd.f32 %v1480, %v1630
  %v1651 = vadd.f32 %v1499, %v1631
  %v1652 = vadd.f32 %v1497, %v1632
  %v1653 = vadd.f32 %v1495, %v1633
  %v1654 = vadd.f32 %v1493, %v1634
  %v1655 = vadd.f32 %v1491, %v1635
  %v1656 = vadd.f32 %v1489, %v1636
  %v1657 = vadd.f32 %v1487, %v1637
  %v1658 = vadd.f32 %v1485, %v1638
  %v1659 = vadd.f32 %v1483, %v1639
  %v1660 = vadd.f32 %v1481, %v1640
  %v1661 = vpack.c.bf16 %v1651, %v1641
  %v1662 = vpack.c.bf16 %v1652, %v1642
  %v1663 = vpack.c.bf16 %v1653, %v1643
  %v1664 = vpack.c.bf16 %v1654, %v1644
  %v1665 = vpack.c.bf16 %v1655, %v1645
  %v1666 = vpack.c.bf16 %v1656, %v1646
  %v1667 = vpack.c.bf16 %v1657, %v1647
  %v1668 = vpack.c.bf16 %v1658, %v1648
  %v1669 = vpack.c.bf16 %v1659, %v1649
  %v1670 = vpack.c.bf16 %v1660, %v1650
  %v1681 = vunpack.c.l.b16 %v1661
  %v1682 = vunpack.c.l.b16 %v1662
  %v1683 = vunpack.c.l.b16 %v1663
  %v1684 = vunpack.c.l.b16 %v1664
  %v1685 = vunpack.c.l.b16 %v1665
  %v1686 = vunpack.c.l.b16 %v1666
  %v1687 = vunpack.c.l.b16 %v1667
  %v1688 = vunpack.c.l.b16 %v1668
  %v1689 = vunpack.c.l.b16 %v1669
  %v1690 = vunpack.c.l.b16 %v1670
  %v1691 = vunpack.c.h.b16 %v1661
  %v1692 = vunpack.c.h.b16 %v1662
  %v1693 = vunpack.c.h.b16 %v1663
  %v1694 = vunpack.c.h.b16 %v1664
  %v1695 = vunpack.c.h.b16 %v1665
  %v1696 = vunpack.c.h.b16 %v1666
  %v1697 = vunpack.c.h.b16 %v1667
  %v1698 = vunpack.c.h.b16 %v1668
  %v1699 = vunpack.c.h.b16 %v1669
  %v1700 = vunpack.c.h.b16 %v1670
  %v1701 = vpack.c.b16 %v1682, %v1681
  %v1702 = vpack.c.b16 %v1684, %v1683
  %v1703 = vpack.c.b16 %v1686, %v1685
  %v1704 = vpack.c.b16 %v1688, %v1687
  %v1705 = vpack.c.b16 %v1690, %v1689
  %v1706 = vpack.c.b16 %v1692, %v1691
  %v1707 = vpack.c.b16 %v1694, %v1693
  %v1708 = vpack.c.b16 %v1696, %v1695
  %v1709 = vpack.c.b16 %v1698, %v1697
  %v1710 = vpack.c.b16 %v1700, %v1699
  %1721 = vst [vmem:[#allocation2 + $0xf0] sm:$0xff] %v1701
  %1722 = vst [vmem:[#allocation2 + $0xf8] sm:$0xff] %v1702
  %1723 = vst [vmem:[#allocation2 + $0x100] sm:$0xff] %v1703
  %1724 = vst [vmem:[#allocation2 + $0x108] sm:$0xff] %v1704
  %1725 = vst [vmem:[#allocation2 + $0x110] sm:$0xff] %v1705
  %1726 = vst [vmem:[#allocation2 + $0x118] sm:$0xff] %v1706
  %1727 = vst [vmem:[#allocation2 + $0x120] sm:$0xff] %v1707
  %1728 = vst [vmem:[#allocation2 + $0x128] sm:$0xff] %v1708
  %1729 = vst [vmem:[#allocation2 + $0x130] sm:$0xff] %v1709
  %1730 = vst [vmem:[#allocation2 + $0x138] sm:$0xff] %v1710
  %1731 = vrot.lane.b32.xlu0 %v261, 1
  %v1732 = vpop.permute.xlu0 %1731
  %1733 = vrot.lane.b32.xlu0 %v265, 1
  %v1734 = vpop.permute.xlu0 %1733
  %1735 = vrot.lane.b32.xlu0 %v263, 1
  %v1736 = vpop.permute.xlu0 %1735
  %1737 = vrot.lane.b32.xlu0 %v267, 1
  %v1738 = vpop.permute.xlu0 %1737
  %1739 = vrot.lane.b32.xlu0 %v314, 1
  %v1740 = vpop.permute.xlu0 %1739
  %1741 = vrot.lane.b32.xlu0 %v318, 1
  %v1742 = vpop.permute.xlu0 %1741
  %1743 = vrot.lane.b32.xlu0 %v316, 1
  %v1744 = vpop.permute.xlu0 %1743
  %1745 = vrot.lane.b32.xlu0 %v320, 1
  %v1746 = vpop.permute.xlu0 %1745
  %1747 = vrot.lane.b32.xlu0 %v367, 1
  %v1748 = vpop.permute.xlu0 %1747
  %1749 = vrot.lane.b32.xlu0 %v371, 1
  %v1750 = vpop.permute.xlu0 %1749
  %1751 = vrot.lane.b32.xlu0 %v369, 1
  %v1752 = vpop.permute.xlu0 %1751
  %1753 = vrot.lane.b32.xlu0 %v373, 1
  %v1754 = vpop.permute.xlu0 %1753
  %1755 = vrot.lane.b32.xlu0 %v420, 1
  %v1756 = vpop.permute.xlu0 %1755
  %1757 = vrot.lane.b32.xlu0 %v424, 1
  %v1758 = vpop.permute.xlu0 %1757
  %1759 = vrot.lane.b32.xlu0 %v422, 1
  %v1760 = vpop.permute.xlu0 %1759
  %1761 = vrot.lane.b32.xlu0 %v426, 1
  %v1762 = vpop.permute.xlu0 %1761
  %1763 = vrot.lane.b32.xlu0 %v473, 1
  %v1764 = vpop.permute.xlu0 %1763
  %1765 = vrot.lane.b32.xlu0 %v477, 1
  %v1766 = vpop.permute.xlu0 %1765
  %1767 = vrot.lane.b32.xlu0 %v475, 1
  %v1768 = vpop.permute.xlu0 %1767
  %1769 = vrot.lane.b32.xlu0 %v479, 1
  %v1770 = vpop.permute.xlu0 %1769
  %v1771 = vsel %vm1479, %v1764, %v1768
  %v1772 = vsel %vm1479, %v1766, %v1770
  %v1773 = vsel %vm1479, %v1760, %v1764
  %v1774 = vsel %vm1479, %v1762, %v1766
  %v1775 = vsel %vm1479, %v1756, %v1760
  %v1776 = vsel %vm1479, %v1758, %v1762
  %v1777 = vsel %vm1479, %v1752, %v1756
  %v1778 = vsel %vm1479, %v1754, %v1758
  %v1779 = vsel %vm1479, %v1748, %v1752
  %v1780 = vsel %vm1479, %v1750, %v1754
  %v1781 = vsel %vm1479, %v1744, %v1748
  %v1782 = vsel %vm1479, %v1746, %v1750
  %v1783 = vsel %vm1479, %v1740, %v1744
  %v1784 = vsel %vm1479, %v1742, %v1746
  %v1785 = vsel %vm1479, %v1736, %v1740
  %v1786 = vsel %vm1479, %v1738, %v1742
  %v1787 = vsel %vm1479, %v1732, %v1736
  %v1788 = vsel %vm1479, %v1734, %v1738
  %v1789 = vsel %vm1479, %v1768, %v1732
  %v1790 = vsel %vm1479, %v1770, %v1734
  %1791 = vrot.lane.b32.xlu0 %v261, 101
  %v1792 = vpop.permute.xlu0 %1791
  %1793 = vrot.lane.b32.xlu0 %v265, 101
  %v1794 = vpop.permute.xlu0 %1793
  %1795 = vrot.lane.b32.xlu0 %v263, 101
  %v1796 = vpop.permute.xlu0 %1795
  %1797 = vrot.lane.b32.xlu0 %v267, 101
  %v1798 = vpop.permute.xlu0 %1797
  %1799 = vrot.lane.b32.xlu0 %v314, 101
  %v1800 = vpop.permute.xlu0 %1799
  %1801 = vrot.lane.b32.xlu0 %v318, 101
  %v1802 = vpop.permute.xlu0 %1801
  %1803 = vrot.lane.b32.xlu0 %v316, 101
  %v1804 = vpop.permute.xlu0 %1803
  %1805 = vrot.lane.b32.xlu0 %v320, 101
  %v1806 = vpop.permute.xlu0 %1805
  %1807 = vrot.lane.b32.xlu0 %v367, 101
  %v1808 = vpop.permute.xlu0 %1807
  %1809 = vrot.lane.b32.xlu0 %v371, 101
  %v1810 = vpop.permute.xlu0 %1809
  %1811 = vrot.lane.b32.xlu0 %v369, 101
  %v1812 = vpop.permute.xlu0 %1811
  %1813 = vrot.lane.b32.xlu0 %v373, 101
  %v1814 = vpop.permute.xlu0 %1813
  %1815 = vrot.lane.b32.xlu0 %v420, 101
  %v1816 = vpop.permute.xlu0 %1815
  %1817 = vrot.lane.b32.xlu0 %v424, 101
  %v1818 = vpop.permute.xlu0 %1817
  %1819 = vrot.lane.b32.xlu0 %v422, 101
  %v1820 = vpop.permute.xlu0 %1819
  %1821 = vrot.lane.b32.xlu0 %v426, 101
  %v1822 = vpop.permute.xlu0 %1821
  %1823 = vrot.lane.b32.xlu0 %v473, 101
  %v1824 = vpop.permute.xlu0 %1823
  %1825 = vrot.lane.b32.xlu0 %v477, 101
  %v1826 = vpop.permute.xlu0 %1825
  %1827 = vrot.lane.b32.xlu0 %v475, 101
  %v1828 = vpop.permute.xlu0 %1827
  %1829 = vrot.lane.b32.xlu0 %v479, 101
  %v1830 = vpop.permute.xlu0 %1829
  %vm1831 = vcmp.lt.s32.totalorder %v482, 101
  %v1832 = vsel %vm1831, %v1824, %v1828
  %v1833 = vsel %vm1831, %v1826, %v1830
  %v1834 = vsel %vm1831, %v1820, %v1824
  %v1835 = vsel %vm1831, %v1822, %v1826
  %v1836 = vsel %vm1831, %v1816, %v1820
  %v1837 = vsel %vm1831, %v1818, %v1822
  %v1838 = vsel %vm1831, %v1812, %v1816
  %v1839 = vsel %vm1831, %v1814, %v1818
  %v1840 = vsel %vm1831, %v1808, %v1812
  %v1841 = vsel %vm1831, %v1810, %v1814
  %v1842 = vsel %vm1831, %v1804, %v1808
  %v1843 = vsel %vm1831, %v1806, %v1810
  %v1844 = vsel %vm1831, %v1800, %v1804
  %v1845 = vsel %vm1831, %v1802, %v1806
  %v1846 = vsel %vm1831, %v1796, %v1800
  %v1847 = vsel %vm1831, %v1798, %v1802
  %v1848 = vsel %vm1831, %v1792, %v1796
  %v1849 = vsel %vm1831, %v1794, %v1798
  %v1850 = vsel %vm1831, %v1828, %v1792
  %v1851 = vsel %vm1831, %v1830, %v1794
  %v1852 = vsel %vm552, %v1848, %v1789
  %v1853 = vsel %vm553, %v1846, %v1787
  %v1854 = vsel %vm554, %v1844, %v1785
  %v1855 = vsel %vm555, %v1842, %v1783
  %v1856 = vsel %vm556, %v1840, %v1781
  %v1857 = vsel %vm557, %v1838, %v1779
  %v1858 = vsel %vm558, %v1836, %v1777
  %v1859 = vsel %vm559, %v1834, %v1775
  %v1860 = vsel %vm560, %v1832, %v1773
  %v1861 = vsel %vm561, %v1850, %v1771
  %v1862 = vsel %vm552, %v1849, %v1790
  %v1863 = vsel %vm553, %v1847, %v1788
  %v1864 = vsel %vm554, %v1845, %v1786
  %v1865 = vsel %vm555, %v1843, %v1784
  %v1866 = vsel %vm556, %v1841, %v1782
  %v1867 = vsel %vm557, %v1839, %v1780
  %v1868 = vsel %vm558, %v1837, %v1778
  %v1869 = vsel %vm559, %v1835, %v1776
  %v1870 = vsel %vm560, %v1833, %v1774
  %v1871 = vsel %vm561, %v1851, %v1772
  %v1872 = vadd.f32 %v251, %v1852
  %v1873 = vadd.f32 %v253, %v1853
  %v1874 = vadd.f32 %v304, %v1854
  %v1875 = vadd.f32 %v306, %v1855
  %v1876 = vadd.f32 %v357, %v1856
  %v1877 = vadd.f32 %v359, %v1857
  %v1878 = vadd.f32 %v410, %v1858
  %v1879 = vadd.f32 %v412, %v1859
  %v1880 = vadd.f32 %v463, %v1860
  %v1881 = vadd.f32 %v465, %v1861
  %v1882 = vadd.f32 %v255, %v1862
  %v1883 = vadd.f32 %v257, %v1863
  %v1884 = vadd.f32 %v308, %v1864
  %v1885 = vadd.f32 %v310, %v1865
  %v1886 = vadd.f32 %v361, %v1866
  %v1887 = vadd.f32 %v363, %v1867
  %v1888 = vadd.f32 %v414, %v1868
  %v1889 = vadd.f32 %v416, %v1869
  %v1890 = vadd.f32 %v467, %v1870
  %v1891 = vadd.f32 %v469, %v1871
  %v1892 = vpack.c.bf16 %v1882, %v1872
  %v1893 = vpack.c.bf16 %v1883, %v1873
  %v1894 = vpack.c.bf16 %v1884, %v1874
  %v1895 = vpack.c.bf16 %v1885, %v1875
  %v1896 = vpack.c.bf16 %v1886, %v1876
  %v1897 = vpack.c.bf16 %v1887, %v1877
  %v1898 = vpack.c.bf16 %v1888, %v1878
  %v1899 = vpack.c.bf16 %v1889, %v1879
  %v1900 = vpack.c.bf16 %v1890, %v1880
  %v1901 = vpack.c.bf16 %v1891, %v1881
  %v1912 = vunpack.c.l.b16 %v1892
  %v1913 = vunpack.c.l.b16 %v1893
  %v1914 = vunpack.c.l.b16 %v1894
  %v1915 = vunpack.c.l.b16 %v1895
  %v1916 = vunpack.c.l.b16 %v1896
  %v1917 = vunpack.c.l.b16 %v1897
  %v1918 = vunpack.c.l.b16 %v1898
  %v1919 = vunpack.c.l.b16 %v1899
  %v1920 = vunpack.c.l.b16 %v1900
  %v1921 = vunpack.c.l.b16 %v1901
  %v1922 = vunpack.c.h.b16 %v1892
  %v1923 = vunpack.c.h.b16 %v1893
  %v1924 = vunpack.c.h.b16 %v1894
  %v1925 = vunpack.c.h.b16 %v1895
  %v1926 = vunpack.c.h.b16 %v1896
  %v1927 = vunpack.c.h.b16 %v1897
  %v1928 = vunpack.c.h.b16 %v1898
  %v1929 = vunpack.c.h.b16 %v1899
  %v1930 = vunpack.c.h.b16 %v1900
  %v1931 = vunpack.c.h.b16 %v1901
  %v1932 = vpack.c.b16 %v1913, %v1912
  %v1933 = vpack.c.b16 %v1915, %v1914
  %v1934 = vpack.c.b16 %v1917, %v1916
  %v1935 = vpack.c.b16 %v1919, %v1918
  %v1936 = vpack.c.b16 %v1921, %v1920
  %v1937 = vpack.c.b16 %v1923, %v1922
  %v1938 = vpack.c.b16 %v1925, %v1924
  %v1939 = vpack.c.b16 %v1927, %v1926
  %v1940 = vpack.c.b16 %v1929, %v1928
  %v1941 = vpack.c.b16 %v1931, %v1930
  %1952 = vst [vmem:[#allocation2 + $0x140] sm:$0xff] %v1932
  %1953 = vst [vmem:[#allocation2 + $0x148] sm:$0xff] %v1933
  %1954 = vst [vmem:[#allocation2 + $0x150] sm:$0xff] %v1934
  %1955 = vst [vmem:[#allocation2 + $0x158] sm:$0xff] %v1935
  %1956 = vst [vmem:[#allocation2 + $0x160] sm:$0xff] %v1936
  %1957 = vst [vmem:[#allocation2 + $0x168] sm:$0xff] %v1937
  %1958 = vst [vmem:[#allocation2 + $0x170] sm:$0xff] %v1938
  %1959 = vst [vmem:[#allocation2 + $0x178] sm:$0xff] %v1939
  %1960 = vst [vmem:[#allocation2 + $0x180] sm:$0xff] %v1940
  %1961 = vst [vmem:[#allocation2 + $0x188] sm:$0xff] %v1941
  %1962 = vrot.lane.b32.xlu0 %v251, 127
  %v1963 = vpop.permute.xlu0 %1962
  %1964 = vrot.lane.b32.xlu0 %v255, 127
  %v1965 = vpop.permute.xlu0 %1964
  %1966 = vrot.lane.b32.xlu0 %v253, 127
  %v1967 = vpop.permute.xlu0 %1966
  %1968 = vrot.lane.b32.xlu0 %v257, 127
  %v1969 = vpop.permute.xlu0 %1968
  %1970 = vrot.lane.b32.xlu0 %v304, 127
  %v1971 = vpop.permute.xlu0 %1970
  %1972 = vrot.lane.b32.xlu0 %v308, 127
  %v1973 = vpop.permute.xlu0 %1972
  %1974 = vrot.lane.b32.xlu0 %v306, 127
  %v1975 = vpop.permute.xlu0 %1974
  %1976 = vrot.lane.b32.xlu0 %v310, 127
  %v1977 = vpop.permute.xlu0 %1976
  %1978 = vrot.lane.b32.xlu0 %v357, 127
  %v1979 = vpop.permute.xlu0 %1978
  %1980 = vrot.lane.b32.xlu0 %v361, 127
  %v1981 = vpop.permute.xlu0 %1980
  %1982 = vrot.lane.b32.xlu0 %v359, 127
  %v1983 = vpop.permute.xlu0 %1982
  %1984 = vrot.lane.b32.xlu0 %v363, 127
  %v1985 = vpop.permute.xlu0 %1984
  %1986 = vrot.lane.b32.xlu0 %v410, 127
  %v1987 = vpop.permute.xlu0 %1986
  %1988 = vrot.lane.b32.xlu0 %v414, 127
  %v1989 = vpop.permute.xlu0 %1988
  %1990 = vrot.lane.b32.xlu0 %v412, 127
  %v1991 = vpop.permute.xlu0 %1990
  %1992 = vrot.lane.b32.xlu0 %v416, 127
  %v1993 = vpop.permute.xlu0 %1992
  %1994 = vrot.lane.b32.xlu0 %v463, 127
  %v1995 = vpop.permute.xlu0 %1994
  %1996 = vrot.lane.b32.xlu0 %v467, 127
  %v1997 = vpop.permute.xlu0 %1996
  %1998 = vrot.lane.b32.xlu0 %v465, 127
  %v1999 = vpop.permute.xlu0 %1998
  %2000 = vrot.lane.b32.xlu0 %v469, 127
  %v2001 = vpop.permute.xlu0 %2000
  %vm2002 = vcmp.lt.s32.totalorder %v482, 127
  %v2003 = vsel %vm2002, %v1995, %v1999
  %v2004 = vsel %vm2002, %v1997, %v2001
  %v2005 = vsel %vm2002, %v1991, %v1995
  %v2006 = vsel %vm2002, %v1993, %v1997
  %v2007 = vsel %vm2002, %v1987, %v1991
  %v2008 = vsel %vm2002, %v1989, %v1993
  %v2009 = vsel %vm2002, %v1983, %v1987
  %v2010 = vsel %vm2002, %v1985, %v1989
  %v2011 = vsel %vm2002, %v1979, %v1983
  %v2012 = vsel %vm2002, %v1981, %v1985
  %v2013 = vsel %vm2002, %v1975, %v1979
  %v2014 = vsel %vm2002, %v1977, %v1981
  %v2015 = vsel %vm2002, %v1971, %v1975
  %v2016 = vsel %vm2002, %v1973, %v1977
  %v2017 = vsel %vm2002, %v1967, %v1971
  %v2018 = vsel %vm2002, %v1969, %v1973
  %v2019 = vsel %vm2002, %v1963, %v1967
  %v2020 = vsel %vm2002, %v1965, %v1969
  %v2021 = vsel %vm2002, %v1999, %v1963
  %v2022 = vsel %vm2002, %v2001, %v1965
  %2023 = vrot.lane.b32.xlu0 %v261, 100
  %v2024 = vpop.permute.xlu0 %2023
  %2025 = vrot.lane.b32.xlu0 %v265, 100
  %v2026 = vpop.permute.xlu0 %2025
  %2027 = vrot.lane.b32.xlu0 %v263, 100
  %v2028 = vpop.permute.xlu0 %2027
  %2029 = vrot.lane.b32.xlu0 %v267, 100
  %v2030 = vpop.permute.xlu0 %2029
  %2031 = vrot.lane.b32.xlu0 %v314, 100
  %v2032 = vpop.permute.xlu0 %2031
  %2033 = vrot.lane.b32.xlu0 %v318, 100
  %v2034 = vpop.permute.xlu0 %2033
  %2035 = vrot.lane.b32.xlu0 %v316, 100
  %v2036 = vpop.permute.xlu0 %2035
  %2037 = vrot.lane.b32.xlu0 %v320, 100
  %v2038 = vpop.permute.xlu0 %2037
  %2039 = vrot.lane.b32.xlu0 %v367, 100
  %v2040 = vpop.permute.xlu0 %2039
  %2041 = vrot.lane.b32.xlu0 %v371, 100
  %v2042 = vpop.permute.xlu0 %2041
  %2043 = vrot.lane.b32.xlu0 %v369, 100
  %v2044 = vpop.permute.xlu0 %2043
  %2045 = vrot.lane.b32.xlu0 %v373, 100
  %v2046 = vpop.permute.xlu0 %2045
  %2047 = vrot.lane.b32.xlu0 %v420, 100
  %v2048 = vpop.permute.xlu0 %2047
  %2049 = vrot.lane.b32.xlu0 %v424, 100
  %v2050 = vpop.permute.xlu0 %2049
  %2051 = vrot.lane.b32.xlu0 %v422, 100
  %v2052 = vpop.permute.xlu0 %2051
  %2053 = vrot.lane.b32.xlu0 %v426, 100
  %v2054 = vpop.permute.xlu0 %2053
  %2055 = vrot.lane.b32.xlu0 %v473, 100
  %v2056 = vpop.permute.xlu0 %2055
  %2057 = vrot.lane.b32.xlu0 %v477, 100
  %v2058 = vpop.permute.xlu0 %2057
  %2059 = vrot.lane.b32.xlu0 %v475, 100
  %v2060 = vpop.permute.xlu0 %2059
  %2061 = vrot.lane.b32.xlu0 %v479, 100
  %v2062 = vpop.permute.xlu0 %2061
  %vm2063 = vcmp.lt.s32.totalorder %v482, 100
  %v2064 = vsel %vm2063, %v2056, %v2060
  %v2065 = vsel %vm2063, %v2058, %v2062
  %v2066 = vsel %vm2063, %v2052, %v2056
  %v2067 = vsel %vm2063, %v2054, %v2058
  %v2068 = vsel %vm2063, %v2048, %v2052
  %v2069 = vsel %vm2063, %v2050, %v2054
  %v2070 = vsel %vm2063, %v2044, %v2048
  %v2071 = vsel %vm2063, %v2046, %v2050
  %v2072 = vsel %vm2063, %v2040, %v2044
  %v2073 = vsel %vm2063, %v2042, %v2046
  %v2074 = vsel %vm2063, %v2036, %v2040
  %v2075 = vsel %vm2063, %v2038, %v2042
  %v2076 = vsel %vm2063, %v2032, %v2036
  %v2077 = vsel %vm2063, %v2034, %v2038
  %v2078 = vsel %vm2063, %v2028, %v2032
  %v2079 = vsel %vm2063, %v2030, %v2034
  %v2080 = vsel %vm2063, %v2024, %v2028
  %v2081 = vsel %vm2063, %v2026, %v2030
  %v2082 = vsel %vm2063, %v2060, %v2024
  %v2083 = vsel %vm2063, %v2062, %v2026
  %v2084 = vsel %vm552, %v2080, %v261
  %v2085 = vsel %vm553, %v2078, %v263
  %v2086 = vsel %vm554, %v2076, %v314
  %v2087 = vsel %vm555, %v2074, %v316
  %v2088 = vsel %vm556, %v2072, %v367
  %v2089 = vsel %vm557, %v2070, %v369
  %v2090 = vsel %vm558, %v2068, %v420
  %v2091 = vsel %vm559, %v2066, %v422
  %v2092 = vsel %vm560, %v2064, %v473
  %v2093 = vsel %vm561, %v2082, %v475
  %v2094 = vsel %vm552, %v2081, %v265
  %v2095 = vsel %vm553, %v2079, %v267
  %v2096 = vsel %vm554, %v2077, %v318
  %v2097 = vsel %vm555, %v2075, %v320
  %v2098 = vsel %vm556, %v2073, %v371
  %v2099 = vsel %vm557, %v2071, %v373
  %v2100 = vsel %vm558, %v2069, %v424
  %v2101 = vsel %vm559, %v2067, %v426
  %v2102 = vsel %vm560, %v2065, %v477
  %v2103 = vsel %vm561, %v2083, %v479
  %v2104 = vadd.f32 %v2019, %v2084
  %v2105 = vadd.f32 %v2017, %v2085
  %v2106 = vadd.f32 %v2015, %v2086
  %v2107 = vadd.f32 %v2013, %v2087
  %v2108 = vadd.f32 %v2011, %v2088
  %v2109 = vadd.f32 %v2009, %v2089
  %v2110 = vadd.f32 %v2007, %v2090
  %v2111 = vadd.f32 %v2005, %v2091
  %v2112 = vadd.f32 %v2003, %v2092
  %v2113 = vadd.f32 %v2021, %v2093
  %v2114 = vadd.f32 %v2020, %v2094
  %v2115 = vadd.f32 %v2018, %v2095
  %v2116 = vadd.f32 %v2016, %v2096
  %v2117 = vadd.f32 %v2014, %v2097
  %v2118 = vadd.f32 %v2012, %v2098
  %v2119 = vadd.f32 %v2010, %v2099
  %v2120 = vadd.f32 %v2008, %v2100
  %v2121 = vadd.f32 %v2006, %v2101
  %v2122 = vadd.f32 %v2004, %v2102
  %v2123 = vadd.f32 %v2022, %v2103
  %v2124 = vpack.c.bf16 %v2114, %v2104
  %v2125 = vpack.c.bf16 %v2115, %v2105
  %v2126 = vpack.c.bf16 %v2116, %v2106
  %v2127 = vpack.c.bf16 %v2117, %v2107
  %v2128 = vpack.c.bf16 %v2118, %v2108
  %v2129 = vpack.c.bf16 %v2119, %v2109
  %v2130 = vpack.c.bf16 %v2120, %v2110
  %v2131 = vpack.c.bf16 %v2121, %v2111
  %v2132 = vpack.c.bf16 %v2122, %v2112
  %v2133 = vpack.c.bf16 %v2123, %v2113
  %v2144 = vunpack.c.l.b16 %v2124
  %v2145 = vunpack.c.l.b16 %v2125
  %v2146 = vunpack.c.l.b16 %v2126
  %v2147 = vunpack.c.l.b16 %v2127
  %v2148 = vunpack.c.l.b16 %v2128
  %v2149 = vunpack.c.l.b16 %v2129
  %v2150 = vunpack.c.l.b16 %v2130
  %v2151 = vunpack.c.l.b16 %v2131
  %v2152 = vunpack.c.l.b16 %v2132
  %v2153 = vunpack.c.l.b16 %v2133
  %v2154 = vunpack.c.h.b16 %v2124
  %v2155 = vunpack.c.h.b16 %v2125
  %v2156 = vunpack.c.h.b16 %v2126
  %v2157 = vunpack.c.h.b16 %v2127
  %v2158 = vunpack.c.h.b16 %v2128
  %v2159 = vunpack.c.h.b16 %v2129
  %v2160 = vunpack.c.h.b16 %v2130
  %v2161 = vunpack.c.h.b16 %v2131
  %v2162 = vunpack.c.h.b16 %v2132
  %v2163 = vunpack.c.h.b16 %v2133
  %v2164 = vpack.c.b16 %v2145, %v2144
  %v2165 = vpack.c.b16 %v2147, %v2146
  %v2166 = vpack.c.b16 %v2149, %v2148
  %v2167 = vpack.c.b16 %v2151, %v2150
  %v2168 = vpack.c.b16 %v2153, %v2152
  %v2169 = vpack.c.b16 %v2155, %v2154
  %v2170 = vpack.c.b16 %v2157, %v2156
  %v2171 = vpack.c.b16 %v2159, %v2158
  %v2172 = vpack.c.b16 %v2161, %v2160
  %v2173 = vpack.c.b16 %v2163, %v2162
  %2184 = vst [vmem:[#allocation2 + $0x190] sm:$0xff] %v2164
  %2185 = vst [vmem:[#allocation2 + $0x198] sm:$0xff] %v2165
  %2186 = vst [vmem:[#allocation2 + $0x1a0] sm:$0xff] %v2166
  %2187 = vst [vmem:[#allocation2 + $0x1a8] sm:$0xff] %v2167
  %2188 = vst [vmem:[#allocation2 + $0x1b0] sm:$0xff] %v2168
  %2189 = vst [vmem:[#allocation2 + $0x1b8] sm:$0xff] %v2169
  %2190 = vst [vmem:[#allocation2 + $0x1c0] sm:$0xff] %v2170
  %2191 = vst [vmem:[#allocation2 + $0x1c8] sm:$0xff] %v2171
  %2192 = vst [vmem:[#allocation2 + $0x1d0] sm:$0xff] %v2172
  %2193 = vst [vmem:[#allocation2 + $0x1d8] sm:$0xff] %v2173
  %2194 = vrot.lane.b32.xlu0 %v251, 126
  %v2195 = vpop.permute.xlu0 %2194
  %2196 = vrot.lane.b32.xlu0 %v255, 126
  %v2197 = vpop.permute.xlu0 %2196
  %2198 = vrot.lane.b32.xlu0 %v253, 126
  %v2199 = vpop.permute.xlu0 %2198
  %2200 = vrot.lane.b32.xlu0 %v257, 126
  %v2201 = vpop.permute.xlu0 %2200
  %2202 = vrot.lane.b32.xlu0 %v304, 126
  %v2203 = vpop.permute.xlu0 %2202
  %2204 = vrot.lane.b32.xlu0 %v308, 126
  %v2205 = vpop.permute.xlu0 %2204
  %2206 = vrot.lane.b32.xlu0 %v306, 126
  %v2207 = vpop.permute.xlu0 %2206
  %2208 = vrot.lane.b32.xlu0 %v310, 126
  %v2209 = vpop.permute.xlu0 %2208
  %2210 = vrot.lane.b32.xlu0 %v357, 126
  %v2211 = vpop.permute.xlu0 %2210
  %2212 = vrot.lane.b32.xlu0 %v361, 126
  %v2213 = vpop.permute.xlu0 %2212
  %2214 = vrot.lane.b32.xlu0 %v359, 126
  %v2215 = vpop.permute.xlu0 %2214
  %2216 = vrot.lane.b32.xlu0 %v363, 126
  %v2217 = vpop.permute.xlu0 %2216
  %2218 = vrot.lane.b32.xlu0 %v410, 126
  %v2219 = vpop.permute.xlu0 %2218
  %2220 = vrot.lane.b32.xlu0 %v414, 126
  %v2221 = vpop.permute.xlu0 %2220
  %2222 = vrot.lane.b32.xlu0 %v412, 126
  %v2223 = vpop.permute.xlu0 %2222
  %2224 = vrot.lane.b32.xlu0 %v416, 126
  %v2225 = vpop.permute.xlu0 %2224
  %2226 = vrot.lane.b32.xlu0 %v463, 126
  %v2227 = vpop.permute.xlu0 %2226
  %2228 = vrot.lane.b32.xlu0 %v467, 126
  %v2229 = vpop.permute.xlu0 %2228
  %2230 = vrot.lane.b32.xlu0 %v465, 126
  %v2231 = vpop.permute.xlu0 %2230
  %2232 = vrot.lane.b32.xlu0 %v469, 126
  %v2233 = vpop.permute.xlu0 %2232
  %vm2234 = vcmp.lt.s32.totalorder %v482, 126
  %v2235 = vsel %vm2234, %v2227, %v2231
  %v2236 = vsel %vm2234, %v2229, %v2233
  %v2237 = vsel %vm2234, %v2223, %v2227
  %v2238 = vsel %vm2234, %v2225, %v2229
  %v2239 = vsel %vm2234, %v2219, %v2223
  %v2240 = vsel %vm2234, %v2221, %v2225
  %v2241 = vsel %vm2234, %v2215, %v2219
  %v2242 = vsel %vm2234, %v2217, %v2221
  %v2243 = vsel %vm2234, %v2211, %v2215
  %v2244 = vsel %vm2234, %v2213, %v2217
  %v2245 = vsel %vm2234, %v2207, %v2211
  %v2246 = vsel %vm2234, %v2209, %v2213
  %v2247 = vsel %vm2234, %v2203, %v2207
  %v2248 = vsel %vm2234, %v2205, %v2209
  %v2249 = vsel %vm2234, %v2199, %v2203
  %v2250 = vsel %vm2234, %v2201, %v2205
  %v2251 = vsel %vm2234, %v2195, %v2199
  %v2252 = vsel %vm2234, %v2197, %v2201
  %v2253 = vsel %vm2234, %v2231, %v2195
  %v2254 = vsel %vm2234, %v2233, %v2197
  %2255 = vrot.lane.b32.xlu0 %v261, 127
  %v2256 = vpop.permute.xlu0 %2255
  %2257 = vrot.lane.b32.xlu0 %v265, 127
  %v2258 = vpop.permute.xlu0 %2257
  %2259 = vrot.lane.b32.xlu0 %v263, 127
  %v2260 = vpop.permute.xlu0 %2259
  %2261 = vrot.lane.b32.xlu0 %v267, 127
  %v2262 = vpop.permute.xlu0 %2261
  %2263 = vrot.lane.b32.xlu0 %v314, 127
  %v2264 = vpop.permute.xlu0 %2263
  %2265 = vrot.lane.b32.xlu0 %v318, 127
  %v2266 = vpop.permute.xlu0 %2265
  %2267 = vrot.lane.b32.xlu0 %v316, 127
  %v2268 = vpop.permute.xlu0 %2267
  %2269 = vrot.lane.b32.xlu0 %v320, 127
  %v2270 = vpop.permute.xlu0 %2269
  %2271 = vrot.lane.b32.xlu0 %v367, 127
  %v2272 = vpop.permute.xlu0 %2271
  %2273 = vrot.lane.b32.xlu0 %v371, 127
  %v2274 = vpop.permute.xlu0 %2273
  %2275 = vrot.lane.b32.xlu0 %v369, 127
  %v2276 = vpop.permute.xlu0 %2275
  %2277 = vrot.lane.b32.xlu0 %v373, 127
  %v2278 = vpop.permute.xlu0 %2277
  %2279 = vrot.lane.b32.xlu0 %v420, 127
  %v2280 = vpop.permute.xlu0 %2279
  %2281 = vrot.lane.b32.xlu0 %v424, 127
  %v2282 = vpop.permute.xlu0 %2281
  %2283 = vrot.lane.b32.xlu0 %v422, 127
  %v2284 = vpop.permute.xlu0 %2283
  %2285 = vrot.lane.b32.xlu0 %v426, 127
  %v2286 = vpop.permute.xlu0 %2285
  %2287 = vrot.lane.b32.xlu0 %v473, 127
  %v2288 = vpop.permute.xlu0 %2287
  %2289 = vrot.lane.b32.xlu0 %v477, 127
  %v2290 = vpop.permute.xlu0 %2289
  %2291 = vrot.lane.b32.xlu0 %v475, 127
  %v2292 = vpop.permute.xlu0 %2291
  %2293 = vrot.lane.b32.xlu0 %v479, 127
  %v2294 = vpop.permute.xlu0 %2293
  %v2295 = vsel %vm2002, %v2288, %v2292
  %v2296 = vsel %vm2002, %v2290, %v2294
  %v2297 = vsel %vm2002, %v2284, %v2288
  %v2298 = vsel %vm2002, %v2286, %v2290
  %v2299 = vsel %vm2002, %v2280, %v2284
  %v2300 = vsel %vm2002, %v2282, %v2286
  %v2301 = vsel %vm2002, %v2276, %v2280
  %v2302 = vsel %vm2002, %v2278, %v2282
  %v2303 = vsel %vm2002, %v2272, %v2276
  %v2304 = vsel %vm2002, %v2274, %v2278
  %v2305 = vsel %vm2002, %v2268, %v2272
  %v2306 = vsel %vm2002, %v2270, %v2274
  %v2307 = vsel %vm2002, %v2264, %v2268
  %v2308 = vsel %vm2002, %v2266, %v2270
  %v2309 = vsel %vm2002, %v2260, %v2264
  %v2310 = vsel %vm2002, %v2262, %v2266
  %v2311 = vsel %vm2002, %v2256, %v2260
  %v2312 = vsel %vm2002, %v2258, %v2262
  %v2313 = vsel %vm2002, %v2292, %v2256
  %v2314 = vsel %vm2002, %v2294, %v2258
  %2315 = vrot.lane.b32.xlu0 %v261, 99
  %v2316 = vpop.permute.xlu0 %2315
  %2317 = vrot.lane.b32.xlu0 %v265, 99
  %v2318 = vpop.permute.xlu0 %2317
  %2319 = vrot.lane.b32.xlu0 %v263, 99
  %v2320 = vpop.permute.xlu0 %2319
  %2321 = vrot.lane.b32.xlu0 %v267, 99
  %v2322 = vpop.permute.xlu0 %2321
  %2323 = vrot.lane.b32.xlu0 %v314, 99
  %v2324 = vpop.permute.xlu0 %2323
  %2325 = vrot.lane.b32.xlu0 %v318, 99
  %v2326 = vpop.permute.xlu0 %2325
  %2327 = vrot.lane.b32.xlu0 %v316, 99
  %v2328 = vpop.permute.xlu0 %2327
  %2329 = vrot.lane.b32.xlu0 %v320, 99
  %v2330 = vpop.permute.xlu0 %2329
  %2331 = vrot.lane.b32.xlu0 %v367, 99
  %v2332 = vpop.permute.xlu0 %2331
  %2333 = vrot.lane.b32.xlu0 %v371, 99
  %v2334 = vpop.permute.xlu0 %2333
  %2335 = vrot.lane.b32.xlu0 %v369, 99
  %v2336 = vpop.permute.xlu0 %2335
  %2337 = vrot.lane.b32.xlu0 %v373, 99
  %v2338 = vpop.permute.xlu0 %2337
  %2339 = vrot.lane.b32.xlu0 %v420, 99
  %v2340 = vpop.permute.xlu0 %2339
  %2341 = vrot.lane.b32.xlu0 %v424, 99
  %v2342 = vpop.permute.xlu0 %2341
  %2343 = vrot.lane.b32.xlu0 %v422, 99
  %v2344 = vpop.permute.xlu0 %2343
  %2345 = vrot.lane.b32.xlu0 %v426, 99
  %v2346 = vpop.permute.xlu0 %2345
  %2347 = vrot.lane.b32.xlu0 %v473, 99
  %v2348 = vpop.permute.xlu0 %2347
  %2349 = vrot.lane.b32.xlu0 %v477, 99
  %v2350 = vpop.permute.xlu0 %2349
  %2351 = vrot.lane.b32.xlu0 %v475, 99
  %v2352 = vpop.permute.xlu0 %2351
  %2353 = vrot.lane.b32.xlu0 %v479, 99
  %v2354 = vpop.permute.xlu0 %2353
  %vm2355 = vcmp.lt.s32.totalorder %v482, 99
  %v2356 = vsel %vm2355, %v2348, %v2352
  %v2357 = vsel %vm2355, %v2350, %v2354
  %v2358 = vsel %vm2355, %v2344, %v2348
  %v2359 = vsel %vm2355, %v2346, %v2350
  %v2360 = vsel %vm2355, %v2340, %v2344
  %v2361 = vsel %vm2355, %v2342, %v2346
  %v2362 = vsel %vm2355, %v2336, %v2340
  %v2363 = vsel %vm2355, %v2338, %v2342
  %v2364 = vsel %vm2355, %v2332, %v2336
  %v2365 = vsel %vm2355, %v2334, %v2338
  %v2366 = vsel %vm2355, %v2328, %v2332
  %v2367 = vsel %vm2355, %v2330, %v2334
  %v2368 = vsel %vm2355, %v2324, %v2328
  %v2369 = vsel %vm2355, %v2326, %v2330
  %v2370 = vsel %vm2355, %v2320, %v2324
  %v2371 = vsel %vm2355, %v2322, %v2326
  %v2372 = vsel %vm2355, %v2316, %v2320
  %v2373 = vsel %vm2355, %v2318, %v2322
  %v2374 = vsel %vm2355, %v2352, %v2316
  %v2375 = vsel %vm2355, %v2354, %v2318
  %v2376 = vsel %vm552, %v2372, %v2311
  %v2377 = vsel %vm553, %v2370, %v2309
  %v2378 = vsel %vm554, %v2368, %v2307
  %v2379 = vsel %vm555, %v2366, %v2305
  %v2380 = vsel %vm556, %v2364, %v2303
  %v2381 = vsel %vm557, %v2362, %v2301
  %v2382 = vsel %vm558, %v2360, %v2299
  %v2383 = vsel %vm559, %v2358, %v2297
  %v2384 = vsel %vm560, %v2356, %v2295
  %v2385 = vsel %vm561, %v2374, %v2313
  %v2386 = vsel %vm552, %v2373, %v2312
  %v2387 = vsel %vm553, %v2371, %v2310
  %v2388 = vsel %vm554, %v2369, %v2308
  %v2389 = vsel %vm555, %v2367, %v2306
  %v2390 = vsel %vm556, %v2365, %v2304
  %v2391 = vsel %vm557, %v2363, %v2302
  %v2392 = vsel %vm558, %v2361, %v2300
  %v2393 = vsel %vm559, %v2359, %v2298
  %v2394 = vsel %vm560, %v2357, %v2296
  %v2395 = vsel %vm561, %v2375, %v2314
  %v2396 = vadd.f32 %v2251, %v2376
  %v2397 = vadd.f32 %v2249, %v2377
  %v2398 = vadd.f32 %v2247, %v2378
  %v2399 = vadd.f32 %v2245, %v2379
  %v2400 = vadd.f32 %v2243, %v2380
  %v2401 = vadd.f32 %v2241, %v2381
  %v2402 = vadd.f32 %v2239, %v2382
  %v2403 = vadd.f32 %v2237, %v2383
  %v2404 = vadd.f32 %v2235, %v2384
  %v2405 = vadd.f32 %v2253, %v2385
  %v2406 = vadd.f32 %v2252, %v2386
  %v2407 = vadd.f32 %v2250, %v2387
  %v2408 = vadd.f32 %v2248, %v2388
  %v2409 = vadd.f32 %v2246, %v2389
  %v2410 = vadd.f32 %v2244, %v2390
  %v2411 = vadd.f32 %v2242, %v2391
  %v2412 = vadd.f32 %v2240, %v2392
  %v2413 = vadd.f32 %v2238, %v2393
  %v2414 = vadd.f32 %v2236, %v2394
  %v2415 = vadd.f32 %v2254, %v2395
  %v2416 = vpack.c.bf16 %v2406, %v2396
  %v2417 = vpack.c.bf16 %v2407, %v2397
  %v2418 = vpack.c.bf16 %v2408, %v2398
  %v2419 = vpack.c.bf16 %v2409, %v2399
  %v2420 = vpack.c.bf16 %v2410, %v2400
  %v2421 = vpack.c.bf16 %v2411, %v2401
  %v2422 = vpack.c.bf16 %v2412, %v2402
  %v2423 = vpack.c.bf16 %v2413, %v2403
  %v2424 = vpack.c.bf16 %v2414, %v2404
  %v2425 = vpack.c.bf16 %v2415, %v2405
  %v2436 = vunpack.c.l.b16 %v2416
  %v2437 = vunpack.c.l.b16 %v2417
  %v2438 = vunpack.c.l.b16 %v2418
  %v2439 = vunpack.c.l.b16 %v2419
  %v2440 = vunpack.c.l.b16 %v2420
  %v2441 = vunpack.c.l.b16 %v2421
  %v2442 = vunpack.c.l.b16 %v2422
  %v2443 = vunpack.c.l.b16 %v2423
  %v2444 = vunpack.c.l.b16 %v2424
  %v2445 = vunpack.c.l.b16 %v2425
  %v2446 = vunpack.c.h.b16 %v2416
  %v2447 = vunpack.c.h.b16 %v2417
  %v2448 = vunpack.c.h.b16 %v2418
  %v2449 = vunpack.c.h.b16 %v2419
  %v2450 = vunpack.c.h.b16 %v2420
  %v2451 = vunpack.c.h.b16 %v2421
  %v2452 = vunpack.c.h.b16 %v2422
  %v2453 = vunpack.c.h.b16 %v2423
  %v2454 = vunpack.c.h.b16 %v2424
  %v2455 = vunpack.c.h.b16 %v2425
  %v2456 = vpack.c.b16 %v2437, %v2436
  %v2457 = vpack.c.b16 %v2439, %v2438
  %v2458 = vpack.c.b16 %v2441, %v2440
  %v2459 = vpack.c.b16 %v2443, %v2442
  %v2460 = vpack.c.b16 %v2445, %v2444
  %v2461 = vpack.c.b16 %v2447, %v2446
  %v2462 = vpack.c.b16 %v2449, %v2448
  %v2463 = vpack.c.b16 %v2451, %v2450
  %v2464 = vpack.c.b16 %v2453, %v2452
  %v2465 = vpack.c.b16 %v2455, %v2454
  %2476 = vst [vmem:[#allocation2 + $0x1e0] sm:$0xff] %v2456
  %2477 = vst [vmem:[#allocation2 + $0x1e8] sm:$0xff] %v2457
  %2478 = vst [vmem:[#allocation2 + $0x1f0] sm:$0xff] %v2458
  %2479 = vst [vmem:[#allocation2 + $0x1f8] sm:$0xff] %v2459
  %2480 = vst [vmem:[#allocation2 + $0x200] sm:$0xff] %v2460
  %2481 = vst [vmem:[#allocation2 + $0x208] sm:$0xff] %v2461
  %2482 = vst [vmem:[#allocation2 + $0x210] sm:$0xff] %v2462
  %2483 = vst [vmem:[#allocation2 + $0x218] sm:$0xff] %v2463
  %2484 = vst [vmem:[#allocation2 + $0x220] sm:$0xff] %v2464
  %2485 = vst [vmem:[#allocation2 + $0x228] sm:$0xff] %v2465
  %2486 = vrot.lane.b32.xlu0 %v251, 125
  %v2487 = vpop.permute.xlu0 %2486
  %2488 = vrot.lane.b32.xlu0 %v255, 125
  %v2489 = vpop.permute.xlu0 %2488
  %2490 = vrot.lane.b32.xlu0 %v253, 125
  %v2491 = vpop.permute.xlu0 %2490
  %2492 = vrot.lane.b32.xlu0 %v257, 125
  %v2493 = vpop.permute.xlu0 %2492
  %2494 = vrot.lane.b32.xlu0 %v304, 125
  %v2495 = vpop.permute.xlu0 %2494
  %2496 = vrot.lane.b32.xlu0 %v308, 125
  %v2497 = vpop.permute.xlu0 %2496
  %2498 = vrot.lane.b32.xlu0 %v306, 125
  %v2499 = vpop.permute.xlu0 %2498
  %2500 = vrot.lane.b32.xlu0 %v310, 125
  %v2501 = vpop.permute.xlu0 %2500
  %2502 = vrot.lane.b32.xlu0 %v357, 125
  %v2503 = vpop.permute.xlu0 %2502
  %2504 = vrot.lane.b32.xlu0 %v361, 125
  %v2505 = vpop.permute.xlu0 %2504
  %2506 = vrot.lane.b32.xlu0 %v359, 125
  %v2507 = vpop.permute.xlu0 %2506
  %2508 = vrot.lane.b32.xlu0 %v363, 125
  %v2509 = vpop.permute.xlu0 %2508
  %2510 = vrot.lane.b32.xlu0 %v410, 125
  %v2511 = vpop.permute.xlu0 %2510
  %2512 = vrot.lane.b32.xlu0 %v414, 125
  %v2513 = vpop.permute.xlu0 %2512
  %2514 = vrot.lane.b32.xlu0 %v412, 125
  %v2515 = vpop.permute.xlu0 %2514
  %2516 = vrot.lane.b32.xlu0 %v416, 125
  %v2517 = vpop.permute.xlu0 %2516
  %2518 = vrot.lane.b32.xlu0 %v463, 125
  %v2519 = vpop.permute.xlu0 %2518
  %2520 = vrot.lane.b32.xlu0 %v467, 125
  %v2521 = vpop.permute.xlu0 %2520
  %2522 = vrot.lane.b32.xlu0 %v465, 125
  %v2523 = vpop.permute.xlu0 %2522
  %2524 = vrot.lane.b32.xlu0 %v469, 125
  %v2525 = vpop.permute.xlu0 %2524
  %vm2526 = vcmp.lt.s32.totalorder %v482, 125
  %v2527 = vsel %vm2526, %v2519, %v2523
  %v2528 = vsel %vm2526, %v2521, %v2525
  %v2529 = vsel %vm2526, %v2515, %v2519
  %v2530 = vsel %vm2526, %v2517, %v2521
  %v2531 = vsel %vm2526, %v2511, %v2515
  %v2532 = vsel %vm2526, %v2513, %v2517
  %v2533 = vsel %vm2526, %v2507, %v2511
  %v2534 = vsel %vm2526, %v2509, %v2513
  %v2535 = vsel %vm2526, %v2503, %v2507
  %v2536 = vsel %vm2526, %v2505, %v2509
  %v2537 = vsel %vm2526, %v2499, %v2503
  %v2538 = vsel %vm2526, %v2501, %v2505
  %v2539 = vsel %vm2526, %v2495, %v2499
  %v2540 = vsel %vm2526, %v2497, %v2501
  %v2541 = vsel %vm2526, %v2491, %v2495
  %v2542 = vsel %vm2526, %v2493, %v2497
  %v2543 = vsel %vm2526, %v2487, %v2491
  %v2544 = vsel %vm2526, %v2489, %v2493
  %v2545 = vsel %vm2526, %v2523, %v2487
  %v2546 = vsel %vm2526, %v2525, %v2489
  %2547 = vrot.lane.b32.xlu0 %v261, 126
  %v2548 = vpop.permute.xlu0 %2547
  %2549 = vrot.lane.b32.xlu0 %v265, 126
  %v2550 = vpop.permute.xlu0 %2549
  %2551 = vrot.lane.b32.xlu0 %v263, 126
  %v2552 = vpop.permute.xlu0 %2551
  %2553 = vrot.lane.b32.xlu0 %v267, 126
  %v2554 = vpop.permute.xlu0 %2553
  %2555 = vrot.lane.b32.xlu0 %v314, 126
  %v2556 = vpop.permute.xlu0 %2555
  %2557 = vrot.lane.b32.xlu0 %v318, 126
  %v2558 = vpop.permute.xlu0 %2557
  %2559 = vrot.lane.b32.xlu0 %v316, 126
  %v2560 = vpop.permute.xlu0 %2559
  %2561 = vrot.lane.b32.xlu0 %v320, 126
  %v2562 = vpop.permute.xlu0 %2561
  %2563 = vrot.lane.b32.xlu0 %v367, 126
  %v2564 = vpop.permute.xlu0 %2563
  %2565 = vrot.lane.b32.xlu0 %v371, 126
  %v2566 = vpop.permute.xlu0 %2565
  %2567 = vrot.lane.b32.xlu0 %v369, 126
  %v2568 = vpop.permute.xlu0 %2567
  %2569 = vrot.lane.b32.xlu0 %v373, 126
  %v2570 = vpop.permute.xlu0 %2569
  %2571 = vrot.lane.b32.xlu0 %v420, 126
  %v2572 = vpop.permute.xlu0 %2571
  %2573 = vrot.lane.b32.xlu0 %v424, 126
  %v2574 = vpop.permute.xlu0 %2573
  %2575 = vrot.lane.b32.xlu0 %v422, 126
  %v2576 = vpop.permute.xlu0 %2575
  %2577 = vrot.lane.b32.xlu0 %v426, 126
  %v2578 = vpop.permute.xlu0 %2577
  %2579 = vrot.lane.b32.xlu0 %v473, 126
  %v2580 = vpop.permute.xlu0 %2579
  %2581 = vrot.lane.b32.xlu0 %v477, 126
  %v2582 = vpop.permute.xlu0 %2581
  %2583 = vrot.lane.b32.xlu0 %v475, 126
  %v2584 = vpop.permute.xlu0 %2583
  %2585 = vrot.lane.b32.xlu0 %v479, 126
  %v2586 = vpop.permute.xlu0 %2585
  %v2587 = vsel %vm2234, %v2580, %v2584
  %v2588 = vsel %vm2234, %v2582, %v2586
  %v2589 = vsel %vm2234, %v2576, %v2580
  %v2590 = vsel %vm2234, %v2578, %v2582
  %v2591 = vsel %vm2234, %v2572, %v2576
  %v2592 = vsel %vm2234, %v2574, %v2578
  %v2593 = vsel %vm2234, %v2568, %v2572
  %v2594 = vsel %vm2234, %v2570, %v2574
  %v2595 = vsel %vm2234, %v2564, %v2568
  %v2596 = vsel %vm2234, %v2566, %v2570
  %v2597 = vsel %vm2234, %v2560, %v2564
  %v2598 = vsel %vm2234, %v2562, %v2566
  %v2599 = vsel %vm2234, %v2556, %v2560
  %v2600 = vsel %vm2234, %v2558, %v2562
  %v2601 = vsel %vm2234, %v2552, %v2556
  %v2602 = vsel %vm2234, %v2554, %v2558
  %v2603 = vsel %vm2234, %v2548, %v2552
  %v2604 = vsel %vm2234, %v2550, %v2554
  %v2605 = vsel %vm2234, %v2584, %v2548
  %v2606 = vsel %vm2234, %v2586, %v2550
  %2607 = vrot.lane.b32.xlu0 %v261, 98
  %v2608 = vpop.permute.xlu0 %2607
  %2609 = vrot.lane.b32.xlu0 %v265, 98
  %v2610 = vpop.permute.xlu0 %2609
  %2611 = vrot.lane.b32.xlu0 %v263, 98
  %v2612 = vpop.permute.xlu0 %2611
  %2613 = vrot.lane.b32.xlu0 %v267, 98
  %v2614 = vpop.permute.xlu0 %2613
  %2615 = vrot.lane.b32.xlu0 %v314, 98
  %v2616 = vpop.permute.xlu0 %2615
  %2617 = vrot.lane.b32.xlu0 %v318, 98
  %v2618 = vpop.permute.xlu0 %2617
  %2619 = vrot.lane.b32.xlu0 %v316, 98
  %v2620 = vpop.permute.xlu0 %2619
  %2621 = vrot.lane.b32.xlu0 %v320, 98
  %v2622 = vpop.permute.xlu0 %2621
  %2623 = vrot.lane.b32.xlu0 %v367, 98
  %v2624 = vpop.permute.xlu0 %2623
  %2625 = vrot.lane.b32.xlu0 %v371, 98
  %v2626 = vpop.permute.xlu0 %2625
  %2627 = vrot.lane.b32.xlu0 %v369, 98
  %v2628 = vpop.permute.xlu0 %2627
  %2629 = vrot.lane.b32.xlu0 %v373, 98
  %v2630 = vpop.permute.xlu0 %2629
  %2631 = vrot.lane.b32.xlu0 %v420, 98
  %v2632 = vpop.permute.xlu0 %2631
  %2633 = vrot.lane.b32.xlu0 %v424, 98
  %v2634 = vpop.permute.xlu0 %2633
  %2635 = vrot.lane.b32.xlu0 %v422, 98
  %v2636 = vpop.permute.xlu0 %2635
  %2637 = vrot.lane.b32.xlu0 %v426, 98
  %v2638 = vpop.permute.xlu0 %2637
  %2639 = vrot.lane.b32.xlu0 %v473, 98
  %v2640 = vpop.permute.xlu0 %2639
  %2641 = vrot.lane.b32.xlu0 %v477, 98
  %v2642 = vpop.permute.xlu0 %2641
  %2643 = vrot.lane.b32.xlu0 %v475, 98
  %v2644 = vpop.permute.xlu0 %2643
  %2645 = vrot.lane.b32.xlu0 %v479, 98
  %v2646 = vpop.permute.xlu0 %2645
  %vm2647 = vcmp.lt.s32.totalorder %v482, 98
  %v2648 = vsel %vm2647, %v2640, %v2644
  %v2649 = vsel %vm2647, %v2642, %v2646
  %v2650 = vsel %vm2647, %v2636, %v2640
  %v2651 = vsel %vm2647, %v2638, %v2642
  %v2652 = vsel %vm2647, %v2632, %v2636
  %v2653 = vsel %vm2647, %v2634, %v2638
  %v2654 = vsel %vm2647, %v2628, %v2632
  %v2655 = vsel %vm2647, %v2630, %v2634
  %v2656 = vsel %vm2647, %v2624, %v2628
  %v2657 = vsel %vm2647, %v2626, %v2630
  %v2658 = vsel %vm2647, %v2620, %v2624
  %v2659 = vsel %vm2647, %v2622, %v2626
  %v2660 = vsel %vm2647, %v2616, %v2620
  %v2661 = vsel %vm2647, %v2618, %v2622
  %v2662 = vsel %vm2647, %v2612, %v2616
  %v2663 = vsel %vm2647, %v2614, %v2618
  %v2664 = vsel %vm2647, %v2608, %v2612
  %v2665 = vsel %vm2647, %v2610, %v2614
  %v2666 = vsel %vm2647, %v2644, %v2608
  %v2667 = vsel %vm2647, %v2646, %v2610
  %v2668 = vsel %vm552, %v2664, %v2603
  %v2669 = vsel %vm553, %v2662, %v2601
  %v2670 = vsel %vm554, %v2660, %v2599
  %v2671 = vsel %vm555, %v2658, %v2597
  %v2672 = vsel %vm556, %v2656, %v2595
  %v2673 = vsel %vm557, %v2654, %v2593
  %v2674 = vsel %vm558, %v2652, %v2591
  %v2675 = vsel %vm559, %v2650, %v2589
  %v2676 = vsel %vm560, %v2648, %v2587
  %v2677 = vsel %vm561, %v2666, %v2605
  %v2678 = vsel %vm552, %v2665, %v2604
  %v2679 = vsel %vm553, %v2663, %v2602
  %v2680 = vsel %vm554, %v2661, %v2600
  %v2681 = vsel %vm555, %v2659, %v2598
  %v2682 = vsel %vm556, %v2657, %v2596
  %v2683 = vsel %vm557, %v2655, %v2594
  %v2684 = vsel %vm558, %v2653, %v2592
  %v2685 = vsel %vm559, %v2651, %v2590
  %v2686 = vsel %vm560, %v2649, %v2588
  %v2687 = vsel %vm561, %v2667, %v2606
  %v2688 = vadd.f32 %v2543, %v2668
  %v2689 = vadd.f32 %v2541, %v2669
  %v2690 = vadd.f32 %v2539, %v2670
  %v2691 = vadd.f32 %v2537, %v2671
  %v2692 = vadd.f32 %v2535, %v2672
  %v2693 = vadd.f32 %v2533, %v2673
  %v2694 = vadd.f32 %v2531, %v2674
  %v2695 = vadd.f32 %v2529, %v2675
  %v2696 = vadd.f32 %v2527, %v2676
  %v2697 = vadd.f32 %v2545, %v2677
  %v2698 = vadd.f32 %v2544, %v2678
  %v2699 = vadd.f32 %v2542, %v2679
  %v2700 = vadd.f32 %v2540, %v2680
  %v2701 = vadd.f32 %v2538, %v2681
  %v2702 = vadd.f32 %v2536, %v2682
  %v2703 = vadd.f32 %v2534, %v2683
  %v2704 = vadd.f32 %v2532, %v2684
  %v2705 = vadd.f32 %v2530, %v2685
  %v2706 = vadd.f32 %v2528, %v2686
  %v2707 = vadd.f32 %v2546, %v2687
  %v2708 = vpack.c.bf16 %v2698, %v2688
  %v2709 = vpack.c.bf16 %v2699, %v2689
  %v2710 = vpack.c.bf16 %v2700, %v2690
  %v2711 = vpack.c.bf16 %v2701, %v2691
  %v2712 = vpack.c.bf16 %v2702, %v2692
  %v2713 = vpack.c.bf16 %v2703, %v2693
  %v2714 = vpack.c.bf16 %v2704, %v2694
  %v2715 = vpack.c.bf16 %v2705, %v2695
  %v2716 = vpack.c.bf16 %v2706, %v2696
  %v2717 = vpack.c.bf16 %v2707, %v2697
  %v2728 = vunpack.c.l.b16 %v2708
  %v2729 = vunpack.c.l.b16 %v2709
  %v2730 = vunpack.c.l.b16 %v2710
  %v2731 = vunpack.c.l.b16 %v2711
  %v2732 = vunpack.c.l.b16 %v2712
  %v2733 = vunpack.c.l.b16 %v2713
  %v2734 = vunpack.c.l.b16 %v2714
  %v2735 = vunpack.c.l.b16 %v2715
  %v2736 = vunpack.c.l.b16 %v2716
  %v2737 = vunpack.c.l.b16 %v2717
  %v2738 = vunpack.c.h.b16 %v2708
  %v2739 = vunpack.c.h.b16 %v2709
  %v2740 = vunpack.c.h.b16 %v2710
  %v2741 = vunpack.c.h.b16 %v2711
  %v2742 = vunpack.c.h.b16 %v2712
  %v2743 = vunpack.c.h.b16 %v2713
  %v2744 = vunpack.c.h.b16 %v2714
  %v2745 = vunpack.c.h.b16 %v2715
  %v2746 = vunpack.c.h.b16 %v2716
  %v2747 = vunpack.c.h.b16 %v2717
  %v2748 = vpack.c.b16 %v2729, %v2728
  %v2749 = vpack.c.b16 %v2731, %v2730
  %v2750 = vpack.c.b16 %v2733, %v2732
  %v2751 = vpack.c.b16 %v2735, %v2734
  %v2752 = vpack.c.b16 %v2737, %v2736
  %v2753 = vpack.c.b16 %v2739, %v2738
  %v2754 = vpack.c.b16 %v2741, %v2740
  %v2755 = vpack.c.b16 %v2743, %v2742
  %v2756 = vpack.c.b16 %v2745, %v2744
  %v2757 = vpack.c.b16 %v2747, %v2746
  %2768 = vst [vmem:[#allocation2 + $0x230] sm:$0xff] %v2748
  %2769 = vst [vmem:[#allocation2 + $0x238] sm:$0xff] %v2749
  %2770 = vst [vmem:[#allocation2 + $0x240] sm:$0xff] %v2750
  %2771 = vst [vmem:[#allocation2 + $0x248] sm:$0xff] %v2751
  %2772 = vst [vmem:[#allocation2 + $0x250] sm:$0xff] %v2752
  %2773 = vst [vmem:[#allocation2 + $0x258] sm:$0xff] %v2753
  %2774 = vst [vmem:[#allocation2 + $0x260] sm:$0xff] %v2754
  %2775 = vst [vmem:[#allocation2 + $0x268] sm:$0xff] %v2755
  %2776 = vst [vmem:[#allocation2 + $0x270] sm:$0xff] %v2756
  %2777 = vst [vmem:[#allocation2 + $0x278] sm:$0xff] %v2757
  %2778 = vrot.lane.b32.xlu0 %v251, 124
  %v2779 = vpop.permute.xlu0 %2778
  %2780 = vrot.lane.b32.xlu0 %v255, 124
  %v2781 = vpop.permute.xlu0 %2780
  %2782 = vrot.lane.b32.xlu0 %v253, 124
  %v2783 = vpop.permute.xlu0 %2782
  %2784 = vrot.lane.b32.xlu0 %v257, 124
  %v2785 = vpop.permute.xlu0 %2784
  %2786 = vrot.lane.b32.xlu0 %v304, 124
  %v2787 = vpop.permute.xlu0 %2786
  %2788 = vrot.lane.b32.xlu0 %v308, 124
  %v2789 = vpop.permute.xlu0 %2788
  %2790 = vrot.lane.b32.xlu0 %v306, 124
  %v2791 = vpop.permute.xlu0 %2790
  %2792 = vrot.lane.b32.xlu0 %v310, 124
  %v2793 = vpop.permute.xlu0 %2792
  %2794 = vrot.lane.b32.xlu0 %v357, 124
  %v2795 = vpop.permute.xlu0 %2794
  %2796 = vrot.lane.b32.xlu0 %v361, 124
  %v2797 = vpop.permute.xlu0 %2796
  %2798 = vrot.lane.b32.xlu0 %v359, 124
  %v2799 = vpop.permute.xlu0 %2798
  %2800 = vrot.lane.b32.xlu0 %v363, 124
  %v2801 = vpop.permute.xlu0 %2800
  %2802 = vrot.lane.b32.xlu0 %v410, 124
  %v2803 = vpop.permute.xlu0 %2802
  %2804 = vrot.lane.b32.xlu0 %v414, 124
  %v2805 = vpop.permute.xlu0 %2804
  %2806 = vrot.lane.b32.xlu0 %v412, 124
  %v2807 = vpop.permute.xlu0 %2806
  %2808 = vrot.lane.b32.xlu0 %v416, 124
  %v2809 = vpop.permute.xlu0 %2808
  %2810 = vrot.lane.b32.xlu0 %v463, 124
  %v2811 = vpop.permute.xlu0 %2810
  %2812 = vrot.lane.b32.xlu0 %v467, 124
  %v2813 = vpop.permute.xlu0 %2812
  %2814 = vrot.lane.b32.xlu0 %v465, 124
  %v2815 = vpop.permute.xlu0 %2814
  %2816 = vrot.lane.b32.xlu0 %v469, 124
  %v2817 = vpop.permute.xlu0 %2816
  %vm2818 = vcmp.lt.s32.totalorder %v482, 124
  %v2819 = vsel %vm2818, %v2811, %v2815
  %v2820 = vsel %vm2818, %v2813, %v2817
  %v2821 = vsel %vm2818, %v2807, %v2811
  %v2822 = vsel %vm2818, %v2809, %v2813
  %v2823 = vsel %vm2818, %v2803, %v2807
  %v2824 = vsel %vm2818, %v2805, %v2809
  %v2825 = vsel %vm2818, %v2799, %v2803
  %v2826 = vsel %vm2818, %v2801, %v2805
  %v2827 = vsel %vm2818, %v2795, %v2799
  %v2828 = vsel %vm2818, %v2797, %v2801
  %v2829 = vsel %vm2818, %v2791, %v2795
  %v2830 = vsel %vm2818, %v2793, %v2797
  %v2831 = vsel %vm2818, %v2787, %v2791
  %v2832 = vsel %vm2818, %v2789, %v2793
  %v2833 = vsel %vm2818, %v2783, %v2787
  %v2834 = vsel %vm2818, %v2785, %v2789
  %v2835 = vsel %vm2818, %v2779, %v2783
  %v2836 = vsel %vm2818, %v2781, %v2785
  %v2837 = vsel %vm2818, %v2815, %v2779
  %v2838 = vsel %vm2818, %v2817, %v2781
  %2839 = vrot.lane.b32.xlu0 %v261, 125
  %v2840 = vpop.permute.xlu0 %2839
  %2841 = vrot.lane.b32.xlu0 %v265, 125
  %v2842 = vpop.permute.xlu0 %2841
  %2843 = vrot.lane.b32.xlu0 %v263, 125
  %v2844 = vpop.permute.xlu0 %2843
  %2845 = vrot.lane.b32.xlu0 %v267, 125
  %v2846 = vpop.permute.xlu0 %2845
  %2847 = vrot.lane.b32.xlu0 %v314, 125
  %v2848 = vpop.permute.xlu0 %2847
  %2849 = vrot.lane.b32.xlu0 %v318, 125
  %v2850 = vpop.permute.xlu0 %2849
  %2851 = vrot.lane.b32.xlu0 %v316, 125
  %v2852 = vpop.permute.xlu0 %2851
  %2853 = vrot.lane.b32.xlu0 %v320, 125
  %v2854 = vpop.permute.xlu0 %2853
  %2855 = vrot.lane.b32.xlu0 %v367, 125
  %v2856 = vpop.permute.xlu0 %2855
  %2857 = vrot.lane.b32.xlu0 %v371, 125
  %v2858 = vpop.permute.xlu0 %2857
  %2859 = vrot.lane.b32.xlu0 %v369, 125
  %v2860 = vpop.permute.xlu0 %2859
  %2861 = vrot.lane.b32.xlu0 %v373, 125
  %v2862 = vpop.permute.xlu0 %2861
  %2863 = vrot.lane.b32.xlu0 %v420, 125
  %v2864 = vpop.permute.xlu0 %2863
  %2865 = vrot.lane.b32.xlu0 %v424, 125
  %v2866 = vpop.permute.xlu0 %2865
  %2867 = vrot.lane.b32.xlu0 %v422, 125
  %v2868 = vpop.permute.xlu0 %2867
  %2869 = vrot.lane.b32.xlu0 %v426, 125
  %v2870 = vpop.permute.xlu0 %2869
  %2871 = vrot.lane.b32.xlu0 %v473, 125
  %v2872 = vpop.permute.xlu0 %2871
  %2873 = vrot.lane.b32.xlu0 %v477, 125
  %v2874 = vpop.permute.xlu0 %2873
  %2875 = vrot.lane.b32.xlu0 %v475, 125
  %v2876 = vpop.permute.xlu0 %2875
  %2877 = vrot.lane.b32.xlu0 %v479, 125
  %v2878 = vpop.permute.xlu0 %2877
  %v2879 = vsel %vm2526, %v2872, %v2876
  %v2880 = vsel %vm2526, %v2874, %v2878
  %v2881 = vsel %vm2526, %v2868, %v2872
  %v2882 = vsel %vm2526, %v2870, %v2874
  %v2883 = vsel %vm2526, %v2864, %v2868
  %v2884 = vsel %vm2526, %v2866, %v2870
  %v2885 = vsel %vm2526, %v2860, %v2864
  %v2886 = vsel %vm2526, %v2862, %v2866
  %v2887 = vsel %vm2526, %v2856, %v2860
  %v2888 = vsel %vm2526, %v2858, %v2862
  %v2889 = vsel %vm2526, %v2852, %v2856
  %v2890 = vsel %vm2526, %v2854, %v2858
  %v2891 = vsel %vm2526, %v2848, %v2852
  %v2892 = vsel %vm2526, %v2850, %v2854
  %v2893 = vsel %vm2526, %v2844, %v2848
  %v2894 = vsel %vm2526, %v2846, %v2850
  %v2895 = vsel %vm2526, %v2840, %v2844
  %v2896 = vsel %vm2526, %v2842, %v2846
  %v2897 = vsel %vm2526, %v2876, %v2840
  %v2898 = vsel %vm2526, %v2878, %v2842
  %2899 = vrot.lane.b32.xlu0 %v261, 97
  %v2900 = vpop.permute.xlu0 %2899
  %2901 = vrot.lane.b32.xlu0 %v265, 97
  %v2902 = vpop.permute.xlu0 %2901
  %2903 = vrot.lane.b32.xlu0 %v263, 97
  %v2904 = vpop.permute.xlu0 %2903
  %2905 = vrot.lane.b32.xlu0 %v267, 97
  %v2906 = vpop.permute.xlu0 %2905
  %2907 = vrot.lane.b32.xlu0 %v314, 97
  %v2908 = vpop.permute.xlu0 %2907
  %2909 = vrot.lane.b32.xlu0 %v318, 97
  %v2910 = vpop.permute.xlu0 %2909
  %2911 = vrot.lane.b32.xlu0 %v316, 97
  %v2912 = vpop.permute.xlu0 %2911
  %2913 = vrot.lane.b32.xlu0 %v320, 97
  %v2914 = vpop.permute.xlu0 %2913
  %2915 = vrot.lane.b32.xlu0 %v367, 97
  %v2916 = vpop.permute.xlu0 %2915
  %2917 = vrot.lane.b32.xlu0 %v371, 97
  %v2918 = vpop.permute.xlu0 %2917
  %2919 = vrot.lane.b32.xlu0 %v369, 97
  %v2920 = vpop.permute.xlu0 %2919
  %2921 = vrot.lane.b32.xlu0 %v373, 97
  %v2922 = vpop.permute.xlu0 %2921
  %2923 = vrot.lane.b32.xlu0 %v420, 97
  %v2924 = vpop.permute.xlu0 %2923
  %2925 = vrot.lane.b32.xlu0 %v424, 97
  %v2926 = vpop.permute.xlu0 %2925
  %2927 = vrot.lane.b32.xlu0 %v422, 97
  %v2928 = vpop.permute.xlu0 %2927
  %2929 = vrot.lane.b32.xlu0 %v426, 97
  %v2930 = vpop.permute.xlu0 %2929
  %2931 = vrot.lane.b32.xlu0 %v473, 97
  %v2932 = vpop.permute.xlu0 %2931
  %2933 = vrot.lane.b32.xlu0 %v477, 97
  %v2934 = vpop.permute.xlu0 %2933
  %2935 = vrot.lane.b32.xlu0 %v475, 97
  %v2936 = vpop.permute.xlu0 %2935
  %2937 = vrot.lane.b32.xlu0 %v479, 97
  %v2938 = vpop.permute.xlu0 %2937
  %vm2939 = vcmp.lt.s32.totalorder %v482, 97
  %v2940 = vsel %vm2939, %v2932, %v2936
  %v2941 = vsel %vm2939, %v2934, %v2938
  %v2942 = vsel %vm2939, %v2928, %v2932
  %v2943 = vsel %vm2939, %v2930, %v2934
  %v2944 = vsel %vm2939, %v2924, %v2928
  %v2945 = vsel %vm2939, %v2926, %v2930
  %v2946 = vsel %vm2939, %v2920, %v2924
  %v2947 = vsel %vm2939, %v2922, %v2926
  %v2948 = vsel %vm2939, %v2916, %v2920
  %v2949 = vsel %vm2939, %v2918, %v2922
  %v2950 = vsel %vm2939, %v2912, %v2916
  %v2951 = vsel %vm2939, %v2914, %v2918
  %v2952 = vsel %vm2939, %v2908, %v2912
  %v2953 = vsel %vm2939, %v2910, %v2914
  %v2954 = vsel %vm2939, %v2904, %v2908
  %v2955 = vsel %vm2939, %v2906, %v2910
  %v2956 = vsel %vm2939, %v2900, %v2904
  %v2957 = vsel %vm2939, %v2902, %v2906
  %v2958 = vsel %vm2939, %v2936, %v2900
  %v2959 = vsel %vm2939, %v2938, %v2902
  %v2960 = vsel %vm552, %v2956, %v2895
  %v2961 = vsel %vm553, %v2954, %v2893
  %v2962 = vsel %vm554, %v2952, %v2891
  %v2963 = vsel %vm555, %v2950, %v2889
  %v2964 = vsel %vm556, %v2948, %v2887
  %v2965 = vsel %vm557, %v2946, %v2885
  %v2966 = vsel %vm558, %v2944, %v2883
  %v2967 = vsel %vm559, %v2942, %v2881
  %v2968 = vsel %vm560, %v2940, %v2879
  %v2969 = vsel %vm561, %v2958, %v2897
  %v2970 = vsel %vm552, %v2957, %v2896
  %v2971 = vsel %vm553, %v2955, %v2894
  %v2972 = vsel %vm554, %v2953, %v2892
  %v2973 = vsel %vm555, %v2951, %v2890
  %v2974 = vsel %vm556, %v2949, %v2888
  %v2975 = vsel %vm557, %v2947, %v2886
  %v2976 = vsel %vm558, %v2945, %v2884
  %v2977 = vsel %vm559, %v2943, %v2882
  %v2978 = vsel %vm560, %v2941, %v2880
  %v2979 = vsel %vm561, %v2959, %v2898
  %v2980 = vadd.f32 %v2835, %v2960
  %v2981 = vadd.f32 %v2833, %v2961
  %v2982 = vadd.f32 %v2831, %v2962
  %v2983 = vadd.f32 %v2829, %v2963
  %v2984 = vadd.f32 %v2827, %v2964
  %v2985 = vadd.f32 %v2825, %v2965
  %v2986 = vadd.f32 %v2823, %v2966
  %v2987 = vadd.f32 %v2821, %v2967
  %v2988 = vadd.f32 %v2819, %v2968
  %v2989 = vadd.f32 %v2837, %v2969
  %v2990 = vadd.f32 %v2836, %v2970
  %v2991 = vadd.f32 %v2834, %v2971
  %v2992 = vadd.f32 %v2832, %v2972
  %v2993 = vadd.f32 %v2830, %v2973
  %v2994 = vadd.f32 %v2828, %v2974
  %v2995 = vadd.f32 %v2826, %v2975
  %v2996 = vadd.f32 %v2824, %v2976
  %v2997 = vadd.f32 %v2822, %v2977
  %v2998 = vadd.f32 %v2820, %v2978
  %v2999 = vadd.f32 %v2838, %v2979
  %v3000 = vpack.c.bf16 %v2990, %v2980
  %v3001 = vpack.c.bf16 %v2991, %v2981
  %v3002 = vpack.c.bf16 %v2992, %v2982
  %v3003 = vpack.c.bf16 %v2993, %v2983
  %v3004 = vpack.c.bf16 %v2994, %v2984
  %v3005 = vpack.c.bf16 %v2995, %v2985
  %v3006 = vpack.c.bf16 %v2996, %v2986
  %v3007 = vpack.c.bf16 %v2997, %v2987
  %v3008 = vpack.c.bf16 %v2998, %v2988
  %v3009 = vpack.c.bf16 %v2999, %v2989
  %v3020 = vunpack.c.l.b16 %v3000
  %v3021 = vunpack.c.l.b16 %v3001
  %v3022 = vunpack.c.l.b16 %v3002
  %v3023 = vunpack.c.l.b16 %v3003
  %v3024 = vunpack.c.l.b16 %v3004
  %v3025 = vunpack.c.l.b16 %v3005
  %v3026 = vunpack.c.l.b16 %v3006
  %v3027 = vunpack.c.l.b16 %v3007
  %v3028 = vunpack.c.l.b16 %v3008
  %v3029 = vunpack.c.l.b16 %v3009
  %v3030 = vunpack.c.h.b16 %v3000
  %v3031 = vunpack.c.h.b16 %v3001
  %v3032 = vunpack.c.h.b16 %v3002
  %v3033 = vunpack.c.h.b16 %v3003
  %v3034 = vunpack.c.h.b16 %v3004
  %v3035 = vunpack.c.h.b16 %v3005
  %v3036 = vunpack.c.h.b16 %v3006
  %v3037 = vunpack.c.h.b16 %v3007
  %v3038 = vunpack.c.h.b16 %v3008
  %v3039 = vunpack.c.h.b16 %v3009
  %v3040 = vpack.c.b16 %v3021, %v3020
  %v3041 = vpack.c.b16 %v3023, %v3022
  %v3042 = vpack.c.b16 %v3025, %v3024
  %v3043 = vpack.c.b16 %v3027, %v3026
  %v3044 = vpack.c.b16 %v3029, %v3028
  %v3045 = vpack.c.b16 %v3031, %v3030
  %v3046 = vpack.c.b16 %v3033, %v3032
  %v3047 = vpack.c.b16 %v3035, %v3034
  %v3048 = vpack.c.b16 %v3037, %v3036
  %v3049 = vpack.c.b16 %v3039, %v3038
  %3060 = vst [vmem:[#allocation2 + $0x280] sm:$0xff] %v3040
  %3061 = vst [vmem:[#allocation2 + $0x288] sm:$0xff] %v3041
  %3062 = vst [vmem:[#allocation2 + $0x290] sm:$0xff] %v3042
  %3063 = vst [vmem:[#allocation2 + $0x298] sm:$0xff] %v3043
  %3064 = vst [vmem:[#allocation2 + $0x2a0] sm:$0xff] %v3044
  %3065 = vst [vmem:[#allocation2 + $0x2a8] sm:$0xff] %v3045
  %3066 = vst [vmem:[#allocation2 + $0x2b0] sm:$0xff] %v3046
  %3067 = vst [vmem:[#allocation2 + $0x2b8] sm:$0xff] %v3047
  %3068 = vst [vmem:[#allocation2 + $0x2c0] sm:$0xff] %v3048
  %3069 = vst [vmem:[#allocation2 + $0x2c8] sm:$0xff] %v3049
  %v3070 = vld [vmem:[%s2] sm:$0xff]
  %v3071 = vld [vmem:[%s2 + $0x8] sm:$0xff]
  %v3072 = vld [vmem:[%s2 + $0x10] sm:$0xff]
  %v3073 = vld [vmem:[%s2 + $0x18] sm:$0xff]
  %v3074 = vld [vmem:[%s2 + $0x20] sm:$0xff]
  %v3075 = vld [vmem:[%s2 + $0x28] sm:$0xff]
  %v3076 = vld [vmem:[%s2 + $0x30] sm:$0xff]
  %v3077 = vld [vmem:[%s2 + $0x38] sm:$0xff]
  %v3078 = vld [vmem:[%s2 + $0x40] sm:$0xff]
  %v3079 = vld [vmem:[%s2 + $0x48] sm:$0xff]
  %v3080 = vld [vmem:[%s2 + $0x50] sm:$0xff]
  %v3081 = vld [vmem:[%s2 + $0x58] sm:$0xff]
  %v3082 = vld [vmem:[%s2 + $0x60] sm:$0xff]
  %v3083 = vld [vmem:[%s2 + $0x68] sm:$0xff]
  %v3084 = vld [vmem:[%s2 + $0x70] sm:$0xff]
  %v3085 = vld [vmem:[%s2 + $0x78] sm:$0xff]
  %v3086 = vld [vmem:[%s2 + $0x80] sm:$0xff]
  %v3087 = vld [vmem:[%s2 + $0x88] sm:$0xff]
  %v3088 = vld [vmem:[%s2 + $0x90] sm:$0xff]
  %v3089 = vld [vmem:[%s2 + $0x98] sm:$0xff]
  %v3090 = vld [vmem:[%s2 + $0xa0] sm:$0xff]
  %v3091 = vld [vmem:[%s2 + $0xa8] sm:$0xff]
  %v3092 = vld [vmem:[%s2 + $0xb0] sm:$0xff]
  %v3093 = vld [vmem:[%s2 + $0xb8] sm:$0xff]
  %v3094 = vld [vmem:[#allocation2] sm:$0xff]
  %v3095 = vld [vmem:[#allocation2 + $0x8] sm:$0xff]
  %v3096 = vld [vmem:[#allocation2 + $0x10] sm:$0xff]
  %v3097 = vld [vmem:[#allocation2 + $0x18] sm:$0xff]
  %v3098 = vld [vmem:[#allocation2 + $0x20] sm:$0xff]
  %v3099 = vld [vmem:[#allocation2 + $0x28] sm:$0xff]
  %v3100 = vld [vmem:[#allocation2 + $0x30] sm:$0xff]
  %v3101 = vld [vmem:[#allocation2 + $0x38] sm:$0xff]
  %v3102 = vld [vmem:[#allocation2 + $0x40] sm:$0xff]
  %v3103 = vld [vmem:[#allocation2 + $0x48] sm:$0xff]
  %v3104 = vld [vmem:[#allocation2 + $0x50] sm:$0xff]
  %v3105 = vld [vmem:[#allocation2 + $0x58] sm:$0xff]
  %v3106 = vld [vmem:[#allocation2 + $0x60] sm:$0xff]
  %v3107 = vld [vmem:[#allocation2 + $0x68] sm:$0xff]
  %v3108 = vld [vmem:[#allocation2 + $0x70] sm:$0xff]
  %v3109 = vld [vmem:[#allocation2 + $0x78] sm:$0xff]
  %v3110 = vld [vmem:[#allocation2 + $0x80] sm:$0xff]
  %v3111 = vld [vmem:[#allocation2 + $0x88] sm:$0xff]
  %v3112 = vld [vmem:[#allocation2 + $0x90] sm:$0xff]
  %v3113 = vld [vmem:[#allocation2 + $0x98] sm:$0xff]
  %v3114 = vld [vmem:[#allocation2 + $0xa0] sm:$0xff]
  %v3115 = vld [vmem:[#allocation2 + $0xa8] sm:$0xff]
  %v3116 = vld [vmem:[#allocation2 + $0xb0] sm:$0xff]
  %v3117 = vld [vmem:[#allocation2 + $0xb8] sm:$0xff]
  %v3118 = vld [vmem:[#allocation2 + $0xc0] sm:$0xff]
  %v3119 = vld [vmem:[#allocation2 + $0xc8] sm:$0xff]
  %v3120 = vld [vmem:[#allocation2 + $0xd0] sm:$0xff]
  %v3121 = vld [vmem:[#allocation2 + $0xd8] sm:$0xff]
  %v3122 = vld [vmem:[#allocation2 + $0xe0] sm:$0xff]
  %v3123 = vld [vmem:[#allocation2 + $0xe8] sm:$0xff]
  %v3124 = vld [vmem:[#allocation2 + $0xf0] sm:$0xff]
  %v3125 = vld [vmem:[#allocation2 + $0xf8] sm:$0xff]
  %v3126 = vld [vmem:[#allocation2 + $0x100] sm:$0xff]
  %v3127 = vld [vmem:[#allocation2 + $0x108] sm:$0xff]
  %v3128 = vld [vmem:[#allocation2 + $0x110] sm:$0xff]
  %v3129 = vld [vmem:[#allocation2 + $0x118] sm:$0xff]
  %v3130 = vld [vmem:[#allocation2 + $0x120] sm:$0xff]
  %v3131 = vld [vmem:[#allocation2 + $0x128] sm:$0xff]
  %v3132 = vld [vmem:[#allocation2 + $0x130] sm:$0xff]
  %v3133 = vld [vmem:[#allocation2 + $0x138] sm:$0xff]
  %v3134 = vld [vmem:[#allocation2 + $0x140] sm:$0xff]
  %v3135 = vld [vmem:[#allocation2 + $0x148] sm:$0xff]
  %v3136 = vld [vmem:[#allocation2 + $0x150] sm:$0xff]
  %v3137 = vld [vmem:[#allocation2 + $0x158] sm:$0xff]
  %v3138 = vld [vmem:[#allocation2 + $0x160] sm:$0xff]
  %v3139 = vld [vmem:[#allocation2 + $0x168] sm:$0xff]
  %v3140 = vld [vmem:[#allocation2 + $0x170] sm:$0xff]
  %v3141 = vld [vmem:[#allocation2 + $0x178] sm:$0xff]
  %v3142 = vld [vmem:[#allocation2 + $0x180] sm:$0xff]
  %v3143 = vld [vmem:[#allocation2 + $0x188] sm:$0xff]
  %v3144 = vld [vmem:[#allocation2 + $0x190] sm:$0xff]
  %v3145 = vld [vmem:[#allocation2 + $0x198] sm:$0xff]
  %v3146 = vld [vmem:[#allocation2 + $0x1a0] sm:$0xff]
  %v3147 = vld [vmem:[#allocation2 + $0x1a8] sm:$0xff]
  %v3148 = vld [vmem:[#allocation2 + $0x1b0] sm:$0xff]
  %v3149 = vld [vmem:[#allocation2 + $0x1b8] sm:$0xff]
  %v3150 = vld [vmem:[#allocation2 + $0x1c0] sm:$0xff]
  %v3151 = vld [vmem:[#allocation2 + $0x1c8] sm:$0xff]
  %v3152 = vld [vmem:[#allocation2 + $0x1d0] sm:$0xff]
  %v3153 = vld [vmem:[#allocation2 + $0x1d8] sm:$0xff]
  %v3154 = vld [vmem:[#allocation2 + $0x1e0] sm:$0xff]
  %v3155 = vld [vmem:[#allocation2 + $0x1e8] sm:$0xff]
  %v3156 = vld [vmem:[#allocation2 + $0x1f0] sm:$0xff]
  %v3157 = vld [vmem:[#allocation2 + $0x1f8] sm:$0xff]
  %v3158 = vld [vmem:[#allocation2 + $0x200] sm:$0xff]
  %v3159 = vld [vmem:[#allocation2 + $0x208] sm:$0xff]
  %v3160 = vld [vmem:[#allocation2 + $0x210] sm:$0xff]
  %v3161 = vld [vmem:[#allocation2 + $0x218] sm:$0xff]
  %v3162 = vld [vmem:[#allocation2 + $0x220] sm:$0xff]
  %v3163 = vld [vmem:[#allocation2 + $0x228] sm:$0xff]
  %v3164 = vld [vmem:[#allocation2 + $0x230] sm:$0xff]
  %v3165 = vld [vmem:[#allocation2 + $0x238] sm:$0xff]
  %v3166 = vld [vmem:[#allocation2 + $0x240] sm:$0xff]
  %v3167 = vld [vmem:[#allocation2 + $0x248] sm:$0xff]
  %v3168 = vld [vmem:[#allocation2 + $0x250] sm:$0xff]
  %v3169 = vld [vmem:[#allocation2 + $0x258] sm:$0xff]
  %v3170 = vld [vmem:[#allocation2 + $0x260] sm:$0xff]
  %v3171 = vld [vmem:[#allocation2 + $0x268] sm:$0xff]
  %v3172 = vld [vmem:[#allocation2 + $0x270] sm:$0xff]
  %v3173 = vld [vmem:[#allocation2 + $0x278] sm:$0xff]
  %v3174 = vld [vmem:[#allocation2 + $0x280] sm:$0xff]
  %v3175 = vld [vmem:[#allocation2 + $0x288] sm:$0xff]
  %v3176 = vld [vmem:[#allocation2 + $0x290] sm:$0xff]
  %v3177 = vld [vmem:[#allocation2 + $0x298] sm:$0xff]
  %v3178 = vld [vmem:[#allocation2 + $0x2a0] sm:$0xff]
  %v3179 = vld [vmem:[#allocation2 + $0x2a8] sm:$0xff]
  %v3180 = vld [vmem:[#allocation2 + $0x2b0] sm:$0xff]
  %v3181 = vld [vmem:[#allocation2 + $0x2b8] sm:$0xff]
  %v3182 = vld [vmem:[#allocation2 + $0x2c0] sm:$0xff]
  %v3183 = vld [vmem:[#allocation2 + $0x2c8] sm:$0xff]
  %v3208 = vunpack.c.l.b16 %v3070
  %v3209 = vunpack.c.h.b16 %v3070
  %v3210 = vunpack.c.l.b16 %v3071
  %v3211 = vunpack.c.h.b16 %v3071
  %v3212 = vunpack.c.l.b16 %v3072
  %v3213 = vunpack.c.h.b16 %v3072
  %v3214 = vunpack.c.l.b16 %v3073
  %v3215 = vunpack.c.h.b16 %v3073
  %v3216 = vunpack.c.l.b16 %v3074
  %v3217 = vunpack.c.h.b16 %v3074
  %v3218 = vunpack.c.l.b16 %v3075
  %v3219 = vunpack.c.h.b16 %v3075
  %v3220 = vunpack.c.l.b16 %v3076
  %v3221 = vunpack.c.h.b16 %v3076
  %v3222 = vunpack.c.l.b16 %v3077
  %v3223 = vunpack.c.h.b16 %v3077
  %v3224 = vunpack.c.l.b16 %v3078
  %v3225 = vunpack.c.h.b16 %v3078
  %v3226 = vunpack.c.l.b16 %v3079
  %v3227 = vunpack.c.h.b16 %v3079
  %v3228 = vunpack.c.l.b16 %v3080
  %v3229 = vunpack.c.h.b16 %v3080
  %v3230 = vunpack.c.l.b16 %v3081
  %v3231 = vunpack.c.h.b16 %v3081
  %v3232 = vunpack.c.l.b16 %v3082
  %v3233 = vunpack.c.h.b16 %v3082
  %v3234 = vunpack.c.l.b16 %v3083
  %v3235 = vunpack.c.h.b16 %v3083
  %v3236 = vunpack.c.l.b16 %v3084
  %v3237 = vunpack.c.h.b16 %v3084
  %v3238 = vunpack.c.l.b16 %v3085
  %v3239 = vunpack.c.h.b16 %v3085
  %v3240 = vunpack.c.l.b16 %v3086
  %v3241 = vunpack.c.h.b16 %v3086
  %v3242 = vunpack.c.l.b16 %v3087
  %v3243 = vunpack.c.h.b16 %v3087
  %v3244 = vunpack.c.l.b16 %v3088
  %v3245 = vunpack.c.h.b16 %v3088
  %v3246 = vunpack.c.l.b16 %v3089
  %v3247 = vunpack.c.h.b16 %v3089
  %v3248 = vunpack.c.l.b16 %v3090
  %v3249 = vunpack.c.h.b16 %v3090
  %v3250 = vunpack.c.l.b16 %v3091
  %v3251 = vunpack.c.h.b16 %v3091
  %v3252 = vunpack.c.l.b16 %v3092
  %v3253 = vunpack.c.h.b16 %v3092
  %v3254 = vunpack.c.l.b16 %v3093
  %v3255 = vunpack.c.h.b16 %v3093
  %v3256 = vpack.c.b16 %v3210, %v3208
  %v3257 = vpack.c.b16 %v3211, %v3209
  %v3258 = vpack.c.b16 %v3214, %v3212
  %v3259 = vpack.c.b16 %v3215, %v3213
  %v3260 = vpack.c.b16 %v3218, %v3216
  %v3261 = vpack.c.b16 %v3219, %v3217
  %v3262 = vpack.c.b16 %v3222, %v3220
  %v3263 = vpack.c.b16 %v3223, %v3221
  %v3264 = vpack.c.b16 %v3226, %v3224
  %v3265 = vpack.c.b16 %v3227, %v3225
  %v3266 = vpack.c.b16 %v3230, %v3228
  %v3267 = vpack.c.b16 %v3231, %v3229
  %v3268 = vpack.c.b16 %v3234, %v3232
  %v3269 = vpack.c.b16 %v3235, %v3233
  %v3270 = vpack.c.b16 %v3238, %v3236
  %v3271 = vpack.c.b16 %v3239, %v3237
  %v3272 = vpack.c.b16 %v3242, %v3240
  %v3273 = vpack.c.b16 %v3243, %v3241
  %v3274 = vpack.c.b16 %v3246, %v3244
  %v3275 = vpack.c.b16 %v3247, %v3245
  %v3276 = vpack.c.b16 %v3250, %v3248
  %v3277 = vpack.c.b16 %v3251, %v3249
  %v3278 = vpack.c.b16 %v3254, %v3252
  %v3279 = vpack.c.b16 %v3255, %v3253
  %v3382 = vunpack.c.l.b16 %v3094
  %v3383 = vunpack.c.h.b16 %v3094
  %v3384 = vunpack.c.l.b16 %v3095
  %v3385 = vunpack.c.h.b16 %v3095
  %v3386 = vunpack.c.l.b16 %v3096
  %v3387 = vunpack.c.h.b16 %v3096
  %v3388 = vunpack.c.l.b16 %v3097
  %v3389 = vunpack.c.h.b16 %v3097
  %v3390 = vunpack.c.l.b16 %v3098
  %v3391 = vunpack.c.h.b16 %v3098
  %v3392 = vunpack.c.l.b16 %v3099
  %v3393 = vunpack.c.h.b16 %v3099
  %v3394 = vunpack.c.l.b16 %v3100
  %v3395 = vunpack.c.h.b16 %v3100
  %v3396 = vunpack.c.l.b16 %v3101
  %v3397 = vunpack.c.h.b16 %v3101
  %v3398 = vunpack.c.l.b16 %v3102
  %v3399 = vunpack.c.h.b16 %v3102
  %v3400 = vunpack.c.l.b16 %v3103
  %v3401 = vunpack.c.h.b16 %v3103
  %v3402 = vunpack.c.l.b16 %v3104
  %v3403 = vunpack.c.h.b16 %v3104
  %v3404 = vunpack.c.l.b16 %v3105
  %v3405 = vunpack.c.h.b16 %v3105
  %v3406 = vunpack.c.l.b16 %v3106
  %v3407 = vunpack.c.h.b16 %v3106
  %v3408 = vunpack.c.l.b16 %v3107
  %v3409 = vunpack.c.h.b16 %v3107
  %v3410 = vunpack.c.l.b16 %v3108
  %v3411 = vunpack.c.h.b16 %v3108
  %v3412 = vunpack.c.l.b16 %v3109
  %v3413 = vunpack.c.h.b16 %v3109
  %v3414 = vunpack.c.l.b16 %v3110
  %v3415 = vunpack.c.h.b16 %v3110
  %v3416 = vunpack.c.l.b16 %v3111
  %v3417 = vunpack.c.h.b16 %v3111
  %v3418 = vunpack.c.l.b16 %v3112
  %v3419 = vunpack.c.h.b16 %v3112
  %v3420 = vunpack.c.l.b16 %v3113
  %v3421 = vunpack.c.h.b16 %v3113
  %v3422 = vunpack.c.l.b16 %v3114
  %v3423 = vunpack.c.h.b16 %v3114
  %v3424 = vunpack.c.l.b16 %v3115
  %v3425 = vunpack.c.h.b16 %v3115
  %v3426 = vunpack.c.l.b16 %v3116
  %v3427 = vunpack.c.h.b16 %v3116
  %v3428 = vunpack.c.l.b16 %v3117
  %v3429 = vunpack.c.h.b16 %v3117
  %v3430 = vunpack.c.l.b16 %v3118
  %v3431 = vunpack.c.h.b16 %v3118
  %v3432 = vunpack.c.l.b16 %v3119
  %v3433 = vunpack.c.h.b16 %v3119
  %v3434 = vunpack.c.l.b16 %v3120
  %v3435 = vunpack.c.h.b16 %v3120
  %v3436 = vunpack.c.l.b16 %v3121
  %v3437 = vunpack.c.h.b16 %v3121
  %v3438 = vunpack.c.l.b16 %v3122
  %v3439 = vunpack.c.h.b16 %v3122
  %v3440 = vunpack.c.l.b16 %v3123
  %v3441 = vunpack.c.h.b16 %v3123
  %v3442 = vunpack.c.l.b16 %v3124
  %v3443 = vunpack.c.h.b16 %v3124
  %v3444 = vunpack.c.l.b16 %v3125
  %v3445 = vunpack.c.h.b16 %v3125
  %v3446 = vunpack.c.l.b16 %v3126
  %v3447 = vunpack.c.h.b16 %v3126
  %v3448 = vunpack.c.l.b16 %v3127
  %v3449 = vunpack.c.h.b16 %v3127
  %v3450 = vunpack.c.l.b16 %v3128
  %v3451 = vunpack.c.h.b16 %v3128
  %v3452 = vunpack.c.l.b16 %v3129
  %v3453 = vunpack.c.h.b16 %v3129
  %v3454 = vunpack.c.l.b16 %v3130
  %v3455 = vunpack.c.h.b16 %v3130
  %v3456 = vunpack.c.l.b16 %v3131
  %v3457 = vunpack.c.h.b16 %v3131
  %v3458 = vunpack.c.l.b16 %v3132
  %v3459 = vunpack.c.h.b16 %v3132
  %v3460 = vunpack.c.l.b16 %v3133
  %v3461 = vunpack.c.h.b16 %v3133
  %v3462 = vunpack.c.l.b16 %v3134
  %v3463 = vunpack.c.h.b16 %v3134
  %v3464 = vunpack.c.l.b16 %v3135
  %v3465 = vunpack.c.h.b16 %v3135
  %v3466 = vunpack.c.l.b16 %v3136
  %v3467 = vunpack.c.h.b16 %v3136
  %v3468 = vunpack.c.l.b16 %v3137
  %v3469 = vunpack.c.h.b16 %v3137
  %v3470 = vunpack.c.l.b16 %v3138
  %v3471 = vunpack.c.h.b16 %v3138
  %v3472 = vunpack.c.l.b16 %v3139
  %v3473 = vunpack.c.h.b16 %v3139
  %v3474 = vunpack.c.l.b16 %v3140
  %v3475 = vunpack.c.h.b16 %v3140
  %v3476 = vunpack.c.l.b16 %v3141
  %v3477 = vunpack.c.h.b16 %v3141
  %v3478 = vunpack.c.l.b16 %v3142
  %v3479 = vunpack.c.h.b16 %v3142
  %v3480 = vunpack.c.l.b16 %v3143
  %v3481 = vunpack.c.h.b16 %v3143
  %v3482 = vunpack.c.l.b16 %v3144
  %v3483 = vunpack.c.h.b16 %v3144
  %v3484 = vunpack.c.l.b16 %v3145
  %v3485 = vunpack.c.h.b16 %v3145
  %v3486 = vunpack.c.l.b16 %v3146
  %v3487 = vunpack.c.h.b16 %v3146
  %v3488 = vunpack.c.l.b16 %v3147
  %v3489 = vunpack.c.h.b16 %v3147
  %v3490 = vunpack.c.l.b16 %v3148
  %v3491 = vunpack.c.h.b16 %v3148
  %v3492 = vunpack.c.l.b16 %v3149
  %v3493 = vunpack.c.h.b16 %v3149
  %v3494 = vunpack.c.l.b16 %v3150
  %v3495 = vunpack.c.h.b16 %v3150
  %v3496 = vunpack.c.l.b16 %v3151
  %v3497 = vunpack.c.h.b16 %v3151
  %v3498 = vunpack.c.l.b16 %v3152
  %v3499 = vunpack.c.h.b16 %v3152
  %v3500 = vunpack.c.l.b16 %v3153
  %v3501 = vunpack.c.h.b16 %v3153
  %v3502 = vunpack.c.l.b16 %v3154
  %v3503 = vunpack.c.h.b16 %v3154
  %v3504 = vunpack.c.l.b16 %v3155
  %v3505 = vunpack.c.h.b16 %v3155
  %v3506 = vunpack.c.l.b16 %v3156
  %v3507 = vunpack.c.h.b16 %v3156
  %v3508 = vunpack.c.l.b16 %v3157
  %v3509 = vunpack.c.h.b16 %v3157
  %v3510 = vunpack.c.l.b16 %v3158
  %v3511 = vunpack.c.h.b16 %v3158
  %v3512 = vunpack.c.l.b16 %v3159
  %v3513 = vunpack.c.h.b16 %v3159
  %v3514 = vunpack.c.l.b16 %v3160
  %v3515 = vunpack.c.h.b16 %v3160
  %v3516 = vunpack.c.l.b16 %v3161
  %v3517 = vunpack.c.h.b16 %v3161
  %v3518 = vunpack.c.l.b16 %v3162
  %v3519 = vunpack.c.h.b16 %v3162
  %v3520 = vunpack.c.l.b16 %v3163
  %v3521 = vunpack.c.h.b16 %v3163
  %v3522 = vunpack.c.l.b16 %v3164
  %v3523 = vunpack.c.h.b16 %v3164
  %v3524 = vunpack.c.l.b16 %v3165
  %v3525 = vunpack.c.h.b16 %v3165
  %v3526 = vunpack.c.l.b16 %v3166
  %v3527 = vunpack.c.h.b16 %v3166
  %v3528 = vunpack.c.l.b16 %v3167
  %v3529 = vunpack.c.h.b16 %v3167
  %v3530 = vunpack.c.l.b16 %v3168
  %v3531 = vunpack.c.h.b16 %v3168
  %v3532 = vunpack.c.l.b16 %v3169
  %v3533 = vunpack.c.h.b16 %v3169
  %v3534 = vunpack.c.l.b16 %v3170
  %v3535 = vunpack.c.h.b16 %v3170
  %v3536 = vunpack.c.l.b16 %v3171
  %v3537 = vunpack.c.h.b16 %v3171
  %v3538 = vunpack.c.l.b16 %v3172
  %v3539 = vunpack.c.h.b16 %v3172
  %v3540 = vunpack.c.l.b16 %v3173
  %v3541 = vunpack.c.h.b16 %v3173
  %v3542 = vunpack.c.l.b16 %v3174
  %v3543 = vunpack.c.h.b16 %v3174
  %v3544 = vunpack.c.l.b16 %v3175
  %v3545 = vunpack.c.h.b16 %v3175
  %v3546 = vunpack.c.l.b16 %v3176
  %v3547 = vunpack.c.h.b16 %v3176
  %v3548 = vunpack.c.l.b16 %v3177
  %v3549 = vunpack.c.h.b16 %v3177
  %v3550 = vunpack.c.l.b16 %v3178
  %v3551 = vunpack.c.h.b16 %v3178
  %v3552 = vunpack.c.l.b16 %v3179
  %v3553 = vunpack.c.h.b16 %v3179
  %v3554 = vunpack.c.l.b16 %v3180
  %v3555 = vunpack.c.h.b16 %v3180
  %v3556 = vunpack.c.l.b16 %v3181
  %v3557 = vunpack.c.h.b16 %v3181
  %v3558 = vunpack.c.l.b16 %v3182
  %v3559 = vunpack.c.h.b16 %v3182
  %v3560 = vunpack.c.l.b16 %v3183
  %v3561 = vunpack.c.h.b16 %v3183
  %v3562 = vpack.c.b16 %v3392, %v3382
  %v3563 = vpack.c.b16 %v3393, %v3383
  %v3564 = vpack.c.b16 %v3394, %v3384
  %v3565 = vpack.c.b16 %v3395, %v3385
  %v3566 = vpack.c.b16 %v3396, %v3386
  %v3567 = vpack.c.b16 %v3397, %v3387
  %v3568 = vpack.c.b16 %v3398, %v3388
  %v3569 = vpack.c.b16 %v3399, %v3389
  %v3570 = vpack.c.b16 %v3400, %v3390
  %v3571 = vpack.c.b16 %v3401, %v3391
  %v3572 = vpack.c.b16 %v3412, %v3402
  %v3573 = vpack.c.b16 %v3413, %v3403
  %v3574 = vpack.c.b16 %v3414, %v3404
  %v3575 = vpack.c.b16 %v3415, %v3405
  %v3576 = vpack.c.b16 %v3416, %v3406
  %v3577 = vpack.c.b16 %v3417, %v3407
  %v3578 = vpack.c.b16 %v3418, %v3408
  %v3579 = vpack.c.b16 %v3419, %v3409
  %v3580 = vpack.c.b16 %v3420, %v3410
  %v3581 = vpack.c.b16 %v3421, %v3411
  %v3582 = vpack.c.b16 %v3432, %v3422
  %v3583 = vpack.c.b16 %v3433, %v3423
  %v3584 = vpack.c.b16 %v3434, %v3424
  %v3585 = vpack.c.b16 %v3435, %v3425
  %v3586 = vpack.c.b16 %v3436, %v3426
  %v3587 = vpack.c.b16 %v3437, %v3427
  %v3588 = vpack.c.b16 %v3438, %v3428
  %v3589 = vpack.c.b16 %v3439, %v3429
  %v3590 = vpack.c.b16 %v3440, %v3430
  %v3591 = vpack.c.b16 %v3441, %v3431
  %v3592 = vpack.c.b16 %v3452, %v3442
  %v3593 = vpack.c.b16 %v3453, %v3443
  %v3594 = vpack.c.b16 %v3454, %v3444
  %v3595 = vpack.c.b16 %v3455, %v3445
  %v3596 = vpack.c.b16 %v3456, %v3446
  %v3597 = vpack.c.b16 %v3457, %v3447
  %v3598 = vpack.c.b16 %v3458, %v3448
  %v3599 = vpack.c.b16 %v3459, %v3449
  %v3600 = vpack.c.b16 %v3460, %v3450
  %v3601 = vpack.c.b16 %v3461, %v3451
  %v3602 = vpack.c.b16 %v3472, %v3462
  %v3603 = vpack.c.b16 %v3473, %v3463
  %v3604 = vpack.c.b16 %v3474, %v3464
  %v3605 = vpack.c.b16 %v3475, %v3465
  %v3606 = vpack.c.b16 %v3476, %v3466
  %v3607 = vpack.c.b16 %v3477, %v3467
  %v3608 = vpack.c.b16 %v3478, %v3468
  %v3609 = vpack.c.b16 %v3479, %v3469
  %v3610 = vpack.c.b16 %v3480, %v3470
  %v3611 = vpack.c.b16 %v3481, %v3471
  %v3612 = vpack.c.b16 %v3492, %v3482
  %v3613 = vpack.c.b16 %v3493, %v3483
  %v3614 = vpack.c.b16 %v3494, %v3484
  %v3615 = vpack.c.b16 %v3495, %v3485
  %v3616 = vpack.c.b16 %v3496, %v3486
  %v3617 = vpack.c.b16 %v3497, %v3487
  %v3618 = vpack.c.b16 %v3498, %v3488
  %v3619 = vpack.c.b16 %v3499, %v3489
  %v3620 = vpack.c.b16 %v3500, %v3490
  %v3621 = vpack.c.b16 %v3501, %v3491
  %v3622 = vpack.c.b16 %v3512, %v3502
  %v3623 = vpack.c.b16 %v3513, %v3503
  %v3624 = vpack.c.b16 %v3514, %v3504
  %v3625 = vpack.c.b16 %v3515, %v3505
  %v3626 = vpack.c.b16 %v3516, %v3506
  %v3627 = vpack.c.b16 %v3517, %v3507
  %v3628 = vpack.c.b16 %v3518, %v3508
  %v3629 = vpack.c.b16 %v3519, %v3509
  %v3630 = vpack.c.b16 %v3520, %v3510
  %v3631 = vpack.c.b16 %v3521, %v3511
  %v3632 = vpack.c.b16 %v3532, %v3522
  %v3633 = vpack.c.b16 %v3533, %v3523
  %v3634 = vpack.c.b16 %v3534, %v3524
  %v3635 = vpack.c.b16 %v3535, %v3525
  %v3636 = vpack.c.b16 %v3536, %v3526
  %v3637 = vpack.c.b16 %v3537, %v3527
  %v3638 = vpack.c.b16 %v3538, %v3528
  %v3639 = vpack.c.b16 %v3539, %v3529
  %v3640 = vpack.c.b16 %v3540, %v3530
  %v3641 = vpack.c.b16 %v3541, %v3531
  %v3642 = vpack.c.b16 %v3552, %v3542
  %v3643 = vpack.c.b16 %v3553, %v3543
  %v3644 = vpack.c.b16 %v3554, %v3544
  %v3645 = vpack.c.b16 %v3555, %v3545
  %v3646 = vpack.c.b16 %v3556, %v3546
  %v3647 = vpack.c.b16 %v3557, %v3547
  %v3648 = vpack.c.b16 %v3558, %v3548
  %v3649 = vpack.c.b16 %v3559, %v3549
  %v3650 = vpack.c.b16 %v3560, %v3550
  %v3651 = vpack.c.b16 %v3561, %v3551
  %vm3742 = vcmask 130048
  %v3744 = vsel %vm3742, %v3257, 0
  %v3747 = vsel %vm3742, %v3259, 0
  %v3750 = vsel %vm3742, %v3261, 0
  %v3753 = vsel %vm3742, %v3263, 0
  %v3756 = vsel %vm3742, %v3265, 0
  %v3759 = vsel %vm3742, %v3267, 0
  %v3762 = vsel %vm3742, %v3269, 0
  %v3765 = vsel %vm3742, %v3271, 0
  %v3768 = vsel %vm3742, %v3273, 0
  %v3771 = vsel %vm3742, %v3275, 0
  %v3774 = vsel %vm3742, %v3277, 0
  %v3777 = vsel %vm3742, %v3279, 0
  %3779 = vmatprep.subr.bf16.mxu0 %v3633
  %3780 = vmatpush1.bf16.msra.mxu0 %v3632
  %3781 = vmatprep.subr.bf16.mxu0 %v3623
  %3782 = vmatpush1.bf16.msra.mxu0 %v3622
  %3783 = vmatprep.subr.bf16.mxu0 %v3613
  %3784 = vmatpush1.bf16.msra.mxu0 %v3612
  %3785 = vmatprep.subr.bf16.mxu0 %v3603
  %3786 = vmatpush1.bf16.msra.mxu0 %v3602
  %3787 = vmatprep.subr.bf16.mxu0 %v3593
  %3788 = vmatpush1.bf16.msra.mxu0 %v3592
  %3789 = vmatprep.subr.bf16.mxu0 %v3583
  %3790 = vmatpush1.bf16.msra.mxu0 %v3582
  %3791 = vmatprep.subr.bf16.mxu0 %v3573
  %3792 = vmatpush1.bf16.msra.mxu0 %v3572
  %3793 = vmatprep.subr.bf16.mxu0 %v3563
  %3794 = vmatpush1.bf16.msra.mxu0 %v3562
  %3795 = vmatprep.subr.bf16.mxu0 0
  %3796 = vmatpush2.bf16.msra.mxu0 0
  %3797 = vmatprep.subr.bf16.mxu0 0
  %3798 = vmatpush2.bf16.msra.mxu0 0
  %3799 = vmatprep.subr.bf16.mxu0 0
  %3800 = vmatpush2.bf16.msra.mxu0 0
  %3801 = vmatprep.subr.bf16.mxu0 0
  %3802 = vmatpush2.bf16.msra.mxu0 0
  %3803 = vmatprep.subr.bf16.mxu0 0
  %3804 = vmatpush2.bf16.msra.mxu0 0
  %3805 = vmatprep.subr.bf16.mxu0 0
  %3806 = vmatpush2.bf16.msra.mxu0 0
  %3807 = vmatprep.subr.bf16.mxu0 0
  %3808 = vmatpush2.bf16.msra.mxu0 0
  %3809 = vmatprep.subr.bf16.mxu0 %v3643
  %3810 = vmatpush2.bf16.msra.mxu0 %v3642
  %3811 = vmatprep.mubr.bf16.mxu0 %v3744
  %3812 = vmatmul.mubr.bf16.gmra.mxu0 %v3256
  %v3813 = vpop.f32.mrf.mxu0
  %v3814 = vadd.f32 0.0, %v3813
  %v3815 = vpop.f32.mrf.mxu0
  %v3816 = vadd.f32 0.0, %v3815
  %v3817 = vpop.f32.mrf.mxu0
  %v3818 = vadd.f32 0.0, %v3817
  %v3819 = vpop.f32.mrf.mxu0
  %v3820 = vadd.f32 0.0, %v3819
  %3821 = vmatprep.mubr.bf16.mxu0 %v3747
  %3822 = vmatmul.mubr.bf16.gmra.mxu0 %v3258
  %v3823 = vpop.f32.mrf.mxu0
  %v3824 = vadd.f32 0.0, %v3823
  %v3825 = vpop.f32.mrf.mxu0
  %v3826 = vadd.f32 0.0, %v3825
  %v3827 = vpop.f32.mrf.mxu0
  %v3828 = vadd.f32 0.0, %v3827
  %v3829 = vpop.f32.mrf.mxu0
  %v3830 = vadd.f32 0.0, %v3829
  %3831 = vmatprep.mubr.bf16.mxu0 %v3750
  %3832 = vmatmul.mubr.bf16.gmra.mxu0 %v3260
  %v3833 = vpop.f32.mrf.mxu0
  %v3834 = vadd.f32 0.0, %v3833
  %v3835 = vpop.f32.mrf.mxu0
  %v3836 = vadd.f32 0.0, %v3835
  %v3837 = vpop.f32.mrf.mxu0
  %v3838 = vadd.f32 0.0, %v3837
  %v3839 = vpop.f32.mrf.mxu0
  %v3840 = vadd.f32 0.0, %v3839
  %3841 = vmatprep.mubr.bf16.mxu0 %v3753
  %3842 = vmatmul.mubr.bf16.gmra.mxu0 %v3262
  %v3843 = vpop.f32.mrf.mxu0
  %v3844 = vadd.f32 0.0, %v3843
  %v3845 = vpop.f32.mrf.mxu0
  %v3846 = vadd.f32 0.0, %v3845
  %v3847 = vpop.f32.mrf.mxu0
  %v3848 = vadd.f32 0.0, %v3847
  %v3849 = vpop.f32.mrf.mxu0
  %v3850 = vadd.f32 0.0, %v3849
  %3851 = vmatprep.mubr.bf16.mxu0 %v3756
  %3852 = vmatmul.mubr.bf16.gmra.mxu0 %v3264
  %v3853 = vpop.f32.mrf.mxu0
  %v3854 = vadd.f32 0.0, %v3853
  %v3855 = vpop.f32.mrf.mxu0
  %v3856 = vadd.f32 0.0, %v3855
  %v3857 = vpop.f32.mrf.mxu0
  %v3858 = vadd.f32 0.0, %v3857
  %v3859 = vpop.f32.mrf.mxu0
  %v3860 = vadd.f32 0.0, %v3859
  %3861 = vmatprep.mubr.bf16.mxu0 %v3759
  %3862 = vmatmul.mubr.bf16.gmra.mxu0 %v3266
  %v3863 = vpop.f32.mrf.mxu0
  %v3864 = vadd.f32 0.0, %v3863
  %v3865 = vpop.f32.mrf.mxu0
  %v3866 = vadd.f32 0.0, %v3865
  %v3867 = vpop.f32.mrf.mxu0
  %v3868 = vadd.f32 0.0, %v3867
  %v3869 = vpop.f32.mrf.mxu0
  %v3870 = vadd.f32 0.0, %v3869
  %3871 = vmatprep.mubr.bf16.mxu0 %v3762
  %3872 = vmatmul.mubr.bf16.gmra.mxu0 %v3268
  %v3873 = vpop.f32.mrf.mxu0
  %v3874 = vadd.f32 0.0, %v3873
  %v3875 = vpop.f32.mrf.mxu0
  %v3876 = vadd.f32 0.0, %v3875
  %v3877 = vpop.f32.mrf.mxu0
  %v3878 = vadd.f32 0.0, %v3877
  %v3879 = vpop.f32.mrf.mxu0
  %v3880 = vadd.f32 0.0, %v3879
  %3881 = vmatprep.mubr.bf16.mxu0 %v3765
  %3882 = vmatmul.mubr.bf16.gmra.mxu0 %v3270
  %v3883 = vpop.f32.mrf.mxu0
  %v3884 = vadd.f32 0.0, %v3883
  %v3885 = vpop.f32.mrf.mxu0
  %v3886 = vadd.f32 0.0, %v3885
  %v3887 = vpop.f32.mrf.mxu0
  %v3888 = vadd.f32 0.0, %v3887
  %v3889 = vpop.f32.mrf.mxu0
  %v3890 = vadd.f32 0.0, %v3889
  %3891 = vmatprep.mubr.bf16.mxu0 %v3768
  %3892 = vmatmul.mubr.bf16.gmra.mxu0 %v3272
  %v3893 = vpop.f32.mrf.mxu0
  %v3894 = vadd.f32 0.0, %v3893
  %v3895 = vpop.f32.mrf.mxu0
  %v3896 = vadd.f32 0.0, %v3895
  %v3897 = vpop.f32.mrf.mxu0
  %v3898 = vadd.f32 0.0, %v3897
  %v3899 = vpop.f32.mrf.mxu0
  %v3900 = vadd.f32 0.0, %v3899
  %3901 = vmatprep.mubr.bf16.mxu0 %v3771
  %3902 = vmatmul.mubr.bf16.gmra.mxu0 %v3274
  %v3903 = vpop.f32.mrf.mxu0
  %v3904 = vadd.f32 0.0, %v3903
  %v3905 = vpop.f32.mrf.mxu0
  %v3906 = vadd.f32 0.0, %v3905
  %v3907 = vpop.f32.mrf.mxu0
  %v3908 = vadd.f32 0.0, %v3907
  %v3909 = vpop.f32.mrf.mxu0
  %v3910 = vadd.f32 0.0, %v3909
  %3911 = vmatprep.mubr.bf16.mxu0 %v3774
  %3912 = vmatmul.mubr.bf16.gmra.mxu0 %v3276
  %v3913 = vpop.f32.mrf.mxu0
  %v3914 = vadd.f32 0.0, %v3913
  %v3915 = vpop.f32.mrf.mxu0
  %v3916 = vadd.f32 0.0, %v3915
  %v3917 = vpop.f32.mrf.mxu0
  %v3918 = vadd.f32 0.0, %v3917
  %v3919 = vpop.f32.mrf.mxu0
  %v3920 = vadd.f32 0.0, %v3919
  %3921 = vmatprep.mubr.bf16.mxu0 %v3777
  %3922 = vmatmul.mubr.bf16.gmra.mxu0 %v3278
  %v3923 = vpop.f32.mrf.mxu0
  %v3924 = vadd.f32 0.0, %v3923
  %v3925 = vpop.f32.mrf.mxu0
  %v3926 = vadd.f32 0.0, %v3925
  %v3927 = vpop.f32.mrf.mxu0
  %v3928 = vadd.f32 0.0, %v3927
  %v3929 = vpop.f32.mrf.mxu0
  %v3930 = vadd.f32 0.0, %v3929
  %3931 = vdwg.mxu0
  %3932 = vmatprep.subr.bf16.mxu0 %v3635
  %3933 = vmatpush1.bf16.msra.mxu0 %v3634
  %3934 = vmatprep.subr.bf16.mxu0 %v3625
  %3935 = vmatpush1.bf16.msra.mxu0 %v3624
  %3936 = vmatprep.subr.bf16.mxu0 %v3615
  %3937 = vmatpush1.bf16.msra.mxu0 %v3614
  %3938 = vmatprep.subr.bf16.mxu0 %v3605
  %3939 = vmatpush1.bf16.msra.mxu0 %v3604
  %3940 = vmatprep.subr.bf16.mxu0 %v3595
  %3941 = vmatpush1.bf16.msra.mxu0 %v3594
  %3942 = vmatprep.subr.bf16.mxu0 %v3585
  %3943 = vmatpush1.bf16.msra.mxu0 %v3584
  %3944 = vmatprep.subr.bf16.mxu0 %v3575
  %3945 = vmatpush1.bf16.msra.mxu0 %v3574
  %3946 = vmatprep.subr.bf16.mxu0 %v3565
  %3947 = vmatpush1.bf16.msra.mxu0 %v3564
  %3948 = vmatprep.subr.bf16.mxu0 0
  %3949 = vmatpush2.bf16.msra.mxu0 0
  %3950 = vmatprep.subr.bf16.mxu0 0
  %3951 = vmatpush2.bf16.msra.mxu0 0
  %3952 = vmatprep.subr.bf16.mxu0 0
  %3953 = vmatpush2.bf16.msra.mxu0 0
  %3954 = vmatprep.subr.bf16.mxu0 0
  %3955 = vmatpush2.bf16.msra.mxu0 0
  %3956 = vmatprep.subr.bf16.mxu0 0
  %3957 = vmatpush2.bf16.msra.mxu0 0
  %3958 = vmatprep.subr.bf16.mxu0 0
  %3959 = vmatpush2.bf16.msra.mxu0 0
  %3960 = vmatprep.subr.bf16.mxu0 0
  %3961 = vmatpush2.bf16.msra.mxu0 0
  %3962 = vmatprep.subr.bf16.mxu0 %v3645
  %3963 = vmatpush2.bf16.msra.mxu0 %v3644
  %3964 = vmatprep.mubr.bf16.mxu0 %v3744
  %3965 = vmatmul.mubr.bf16.gmra.mxu0 %v3256
  %v3966 = vpop.f32.mrf.mxu0
  %v3967 = vadd.f32 0.0, %v3966
  %v3968 = vpop.f32.mrf.mxu0
  %v3969 = vadd.f32 0.0, %v3968
  %v3970 = vpop.f32.mrf.mxu0
  %v3971 = vadd.f32 0.0, %v3970
  %v3972 = vpop.f32.mrf.mxu0
  %v3973 = vadd.f32 0.0, %v3972
  %3974 = vmatprep.mubr.bf16.mxu0 %v3747
  %3975 = vmatmul.mubr.bf16.gmra.mxu0 %v3258
  %v3976 = vpop.f32.mrf.mxu0
  %v3977 = vadd.f32 0.0, %v3976
  %v3978 = vpop.f32.mrf.mxu0
  %v3979 = vadd.f32 0.0, %v3978
  %v3980 = vpop.f32.mrf.mxu0
  %v3981 = vadd.f32 0.0, %v3980
  %v3982 = vpop.f32.mrf.mxu0
  %v3983 = vadd.f32 0.0, %v3982
  %3984 = vmatprep.mubr.bf16.mxu0 %v3750
  %3985 = vmatmul.mubr.bf16.gmra.mxu0 %v3260
  %v3986 = vpop.f32.mrf.mxu0
  %v3987 = vadd.f32 0.0, %v3986
  %v3988 = vpop.f32.mrf.mxu0
  %v3989 = vadd.f32 0.0, %v3988
  %v3990 = vpop.f32.mrf.mxu0
  %v3991 = vadd.f32 0.0, %v3990
  %v3992 = vpop.f32.mrf.mxu0
  %v3993 = vadd.f32 0.0, %v3992
  %3994 = vmatprep.mubr.bf16.mxu0 %v3753
  %3995 = vmatmul.mubr.bf16.gmra.mxu0 %v3262
  %v3996 = vpop.f32.mrf.mxu0
  %v3997 = vadd.f32 0.0, %v3996
  %v3998 = vpop.f32.mrf.mxu0
  %v3999 = vadd.f32 0.0, %v3998
  %v4000 = vpop.f32.mrf.mxu0
  %v4001 = vadd.f32 0.0, %v4000
  %v4002 = vpop.f32.mrf.mxu0
  %v4003 = vadd.f32 0.0, %v4002
  %4004 = vmatprep.mubr.bf16.mxu0 %v3756
  %4005 = vmatmul.mubr.bf16.gmra.mxu0 %v3264
  %v4006 = vpop.f32.mrf.mxu0
  %v4007 = vadd.f32 0.0, %v4006
  %v4008 = vpop.f32.mrf.mxu0
  %v4009 = vadd.f32 0.0, %v4008
  %v4010 = vpop.f32.mrf.mxu0
  %v4011 = vadd.f32 0.0, %v4010
  %v4012 = vpop.f32.mrf.mxu0
  %v4013 = vadd.f32 0.0, %v4012
  %4014 = vmatprep.mubr.bf16.mxu0 %v3759
  %4015 = vmatmul.mubr.bf16.gmra.mxu0 %v3266
  %v4016 = vpop.f32.mrf.mxu0
  %v4017 = vadd.f32 0.0, %v4016
  %v4018 = vpop.f32.mrf.mxu0
  %v4019 = vadd.f32 0.0, %v4018
  %v4020 = vpop.f32.mrf.mxu0
  %v4021 = vadd.f32 0.0, %v4020
  %v4022 = vpop.f32.mrf.mxu0
  %v4023 = vadd.f32 0.0, %v4022
  %4024 = vmatprep.mubr.bf16.mxu0 %v3762
  %4025 = vmatmul.mubr.bf16.gmra.mxu0 %v3268
  %v4026 = vpop.f32.mrf.mxu0
  %v4027 = vadd.f32 0.0, %v4026
  %v4028 = vpop.f32.mrf.mxu0
  %v4029 = vadd.f32 0.0, %v4028
  %v4030 = vpop.f32.mrf.mxu0
  %v4031 = vadd.f32 0.0, %v4030
  %v4032 = vpop.f32.mrf.mxu0
  %v4033 = vadd.f32 0.0, %v4032
  %4034 = vmatprep.mubr.bf16.mxu0 %v3765
  %4035 = vmatmul.mubr.bf16.gmra.mxu0 %v3270
  %v4036 = vpop.f32.mrf.mxu0
  %v4037 = vadd.f32 0.0, %v4036
  %v4038 = vpop.f32.mrf.mxu0
  %v4039 = vadd.f32 0.0, %v4038
  %v4040 = vpop.f32.mrf.mxu0
  %v4041 = vadd.f32 0.0, %v4040
  %v4042 = vpop.f32.mrf.mxu0
  %v4043 = vadd.f32 0.0, %v4042
  %4044 = vmatprep.mubr.bf16.mxu0 %v3768
  %4045 = vmatmul.mubr.bf16.gmra.mxu0 %v3272
  %v4046 = vpop.f32.mrf.mxu0
  %v4047 = vadd.f32 0.0, %v4046
  %v4048 = vpop.f32.mrf.mxu0
  %v4049 = vadd.f32 0.0, %v4048
  %v4050 = vpop.f32.mrf.mxu0
  %v4051 = vadd.f32 0.0, %v4050
  %v4052 = vpop.f32.mrf.mxu0
  %v4053 = vadd.f32 0.0, %v4052
  %4054 = vmatprep.mubr.bf16.mxu0 %v3771
  %4055 = vmatmul.mubr.bf16.gmra.mxu0 %v3274
  %v4056 = vpop.f32.mrf.mxu0
  %v4057 = vadd.f32 0.0, %v4056
  %v4058 = vpop.f32.mrf.mxu0
  %v4059 = vadd.f32 0.0, %v4058
  %v4060 = vpop.f32.mrf.mxu0
  %v4061 = vadd.f32 0.0, %v4060
  %v4062 = vpop.f32.mrf.mxu0
  %v4063 = vadd.f32 0.0, %v4062
  %4064 = vmatprep.mubr.bf16.mxu0 %v3774
  %4065 = vmatmul.mubr.bf16.gmra.mxu0 %v3276
  %v4066 = vpop.f32.mrf.mxu0
  %v4067 = vadd.f32 0.0, %v4066
  %v4068 = vpop.f32.mrf.mxu0
  %v4069 = vadd.f32 0.0, %v4068
  %v4070 = vpop.f32.mrf.mxu0
  %v4071 = vadd.f32 0.0, %v4070
  %v4072 = vpop.f32.mrf.mxu0
  %v4073 = vadd.f32 0.0, %v4072
  %4074 = vmatprep.mubr.bf16.mxu0 %v3777
  %4075 = vmatmul.mubr.bf16.gmra.mxu0 %v3278
  %v4076 = vpop.f32.mrf.mxu0
  %v4077 = vadd.f32 0.0, %v4076
  %v4078 = vpop.f32.mrf.mxu0
  %v4079 = vadd.f32 0.0, %v4078
  %v4080 = vpop.f32.mrf.mxu0
  %v4081 = vadd.f32 0.0, %v4080
  %v4082 = vpop.f32.mrf.mxu0
  %v4083 = vadd.f32 0.0, %v4082
  %4084 = vdwg.mxu0
  %4085 = vmatprep.subr.bf16.mxu0 %v3637
  %4086 = vmatpush1.bf16.msra.mxu0 %v3636
  %4087 = vmatprep.subr.bf16.mxu0 %v3627
  %4088 = vmatpush1.bf16.msra.mxu0 %v3626
  %4089 = vmatprep.subr.bf16.mxu0 %v3617
  %4090 = vmatpush1.bf16.msra.mxu0 %v3616
  %4091 = vmatprep.subr.bf16.mxu0 %v3607
  %4092 = vmatpush1.bf16.msra.mxu0 %v3606
  %4093 = vmatprep.subr.bf16.mxu0 %v3597
  %4094 = vmatpush1.bf16.msra.mxu0 %v3596
  %4095 = vmatprep.subr.bf16.mxu0 %v3587
  %4096 = vmatpush1.bf16.msra.mxu0 %v3586
  %4097 = vmatprep.subr.bf16.mxu0 %v3577
  %4098 = vmatpush1.bf16.msra.mxu0 %v3576
  %4099 = vmatprep.subr.bf16.mxu0 %v3567
  %4100 = vmatpush1.bf16.msra.mxu0 %v3566
  %4101 = vmatprep.subr.bf16.mxu0 0
  %4102 = vmatpush2.bf16.msra.mxu0 0
  %4103 = vmatprep.subr.bf16.mxu0 0
  %4104 = vmatpush2.bf16.msra.mxu0 0
  %4105 = vmatprep.subr.bf16.mxu0 0
  %4106 = vmatpush2.bf16.msra.mxu0 0
  %4107 = vmatprep.subr.bf16.mxu0 0
  %4108 = vmatpush2.bf16.msra.mxu0 0
  %4109 = vmatprep.subr.bf16.mxu0 0
  %4110 = vmatpush2.bf16.msra.mxu0 0
  %4111 = vmatprep.subr.bf16.mxu0 0
  %4112 = vmatpush2.bf16.msra.mxu0 0
  %4113 = vmatprep.subr.bf16.mxu0 0
  %4114 = vmatpush2.bf16.msra.mxu0 0
  %4115 = vmatprep.subr.bf16.mxu0 %v3647
  %4116 = vmatpush2.bf16.msra.mxu0 %v3646
  %4117 = vmatprep.mubr.bf16.mxu0 %v3744
  %4118 = vmatmul.mubr.bf16.gmra.mxu0 %v3256
  %v4119 = vpop.f32.mrf.mxu0
  %v4120 = vadd.f32 0.0, %v4119
  %v4121 = vpop.f32.mrf.mxu0
  %v4122 = vadd.f32 0.0, %v4121
  %v4123 = vpop.f32.mrf.mxu0
  %v4124 = vadd.f32 0.0, %v4123
  %v4125 = vpop.f32.mrf.mxu0
  %v4126 = vadd.f32 0.0, %v4125
  %4127 = vmatprep.mubr.bf16.mxu0 %v3747
  %4128 = vmatmul.mubr.bf16.gmra.mxu0 %v3258
  %v4129 = vpop.f32.mrf.mxu0
  %v4130 = vadd.f32 0.0, %v4129
  %v4131 = vpop.f32.mrf.mxu0
  %v4132 = vadd.f32 0.0, %v4131
  %v4133 = vpop.f32.mrf.mxu0
  %v4134 = vadd.f32 0.0, %v4133
  %v4135 = vpop.f32.mrf.mxu0
  %v4136 = vadd.f32 0.0, %v4135
  %4137 = vmatprep.mubr.bf16.mxu0 %v3750
  %4138 = vmatmul.mubr.bf16.gmra.mxu0 %v3260
  %v4139 = vpop.f32.mrf.mxu0
  %v4140 = vadd.f32 0.0, %v4139
  %v4141 = vpop.f32.mrf.mxu0
  %v4142 = vadd.f32 0.0, %v4141
  %v4143 = vpop.f32.mrf.mxu0
  %v4144 = vadd.f32 0.0, %v4143
  %v4145 = vpop.f32.mrf.mxu0
  %v4146 = vadd.f32 0.0, %v4145
  %4147 = vmatprep.mubr.bf16.mxu0 %v3753
  %4148 = vmatmul.mubr.bf16.gmra.mxu0 %v3262
  %v4149 = vpop.f32.mrf.mxu0
  %v4150 = vadd.f32 0.0, %v4149
  %v4151 = vpop.f32.mrf.mxu0
  %v4152 = vadd.f32 0.0, %v4151
  %v4153 = vpop.f32.mrf.mxu0
  %v4154 = vadd.f32 0.0, %v4153
  %v4155 = vpop.f32.mrf.mxu0
  %v4156 = vadd.f32 0.0, %v4155
  %4157 = vmatprep.mubr.bf16.mxu0 %v3756
  %4158 = vmatmul.mubr.bf16.gmra.mxu0 %v3264
  %v4159 = vpop.f32.mrf.mxu0
  %v4160 = vadd.f32 0.0, %v4159
  %v4161 = vpop.f32.mrf.mxu0
  %v4162 = vadd.f32 0.0, %v4161
  %v4163 = vpop.f32.mrf.mxu0
  %v4164 = vadd.f32 0.0, %v4163
  %v4165 = vpop.f32.mrf.mxu0
  %v4166 = vadd.f32 0.0, %v4165
  %4167 = vmatprep.mubr.bf16.mxu0 %v3759
  %4168 = vmatmul.mubr.bf16.gmra.mxu0 %v3266
  %v4169 = vpop.f32.mrf.mxu0
  %v4170 = vadd.f32 0.0, %v4169
  %v4171 = vpop.f32.mrf.mxu0
  %v4172 = vadd.f32 0.0, %v4171
  %v4173 = vpop.f32.mrf.mxu0
  %v4174 = vadd.f32 0.0, %v4173
  %v4175 = vpop.f32.mrf.mxu0
  %v4176 = vadd.f32 0.0, %v4175
  %4177 = vmatprep.mubr.bf16.mxu0 %v3762
  %4178 = vmatmul.mubr.bf16.gmra.mxu0 %v3268
  %v4179 = vpop.f32.mrf.mxu0
  %v4180 = vadd.f32 0.0, %v4179
  %v4181 = vpop.f32.mrf.mxu0
  %v4182 = vadd.f32 0.0, %v4181
  %v4183 = vpop.f32.mrf.mxu0
  %v4184 = vadd.f32 0.0, %v4183
  %v4185 = vpop.f32.mrf.mxu0
  %v4186 = vadd.f32 0.0, %v4185
  %4187 = vmatprep.mubr.bf16.mxu0 %v3765
  %4188 = vmatmul.mubr.bf16.gmra.mxu0 %v3270
  %v4189 = vpop.f32.mrf.mxu0
  %v4190 = vadd.f32 0.0, %v4189
  %v4191 = vpop.f32.mrf.mxu0
  %v4192 = vadd.f32 0.0, %v4191
  %v4193 = vpop.f32.mrf.mxu0
  %v4194 = vadd.f32 0.0, %v4193
  %v4195 = vpop.f32.mrf.mxu0
  %v4196 = vadd.f32 0.0, %v4195
  %4197 = vmatprep.mubr.bf16.mxu0 %v3768
  %4198 = vmatmul.mubr.bf16.gmra.mxu0 %v3272
  %v4199 = vpop.f32.mrf.mxu0
  %v4200 = vadd.f32 0.0, %v4199
  %v4201 = vpop.f32.mrf.mxu0
  %v4202 = vadd.f32 0.0, %v4201
  %v4203 = vpop.f32.mrf.mxu0
  %v4204 = vadd.f32 0.0, %v4203
  %v4205 = vpop.f32.mrf.mxu0
  %v4206 = vadd.f32 0.0, %v4205
  %4207 = vmatprep.mubr.bf16.mxu0 %v3771
  %4208 = vmatmul.mubr.bf16.gmra.mxu0 %v3274
  %v4209 = vpop.f32.mrf.mxu0
  %v4210 = vadd.f32 0.0, %v4209
  %v4211 = vpop.f32.mrf.mxu0
  %v4212 = vadd.f32 0.0, %v4211
  %v4213 = vpop.f32.mrf.mxu0
  %v4214 = vadd.f32 0.0, %v4213
  %v4215 = vpop.f32.mrf.mxu0
  %v4216 = vadd.f32 0.0, %v4215
  %4217 = vmatprep.mubr.bf16.mxu0 %v3774
  %4218 = vmatmul.mubr.bf16.gmra.mxu0 %v3276
  %v4219 = vpop.f32.mrf.mxu0
  %v4220 = vadd.f32 0.0, %v4219
  %v4221 = vpop.f32.mrf.mxu0
  %v4222 = vadd.f32 0.0, %v4221
  %v4223 = vpop.f32.mrf.mxu0
  %v4224 = vadd.f32 0.0, %v4223
  %v4225 = vpop.f32.mrf.mxu0
  %v4226 = vadd.f32 0.0, %v4225
  %4227 = vmatprep.mubr.bf16.mxu0 %v3777
  %4228 = vmatmul.mubr.bf16.gmra.mxu0 %v3278
  %v4229 = vpop.f32.mrf.mxu0
  %v4230 = vadd.f32 0.0, %v4229
  %v4231 = vpop.f32.mrf.mxu0
  %v4232 = vadd.f32 0.0, %v4231
  %v4233 = vpop.f32.mrf.mxu0
  %v4234 = vadd.f32 0.0, %v4233
  %v4235 = vpop.f32.mrf.mxu0
  %v4236 = vadd.f32 0.0, %v4235
  %4237 = vdwg.mxu0
  %4238 = vmatprep.subr.bf16.mxu0 %v3639
  %4239 = vmatpush1.bf16.msra.mxu0 %v3638
  %4240 = vmatprep.subr.bf16.mxu0 %v3629
  %4241 = vmatpush1.bf16.msra.mxu0 %v3628
  %4242 = vmatprep.subr.bf16.mxu0 %v3619
  %4243 = vmatpush1.bf16.msra.mxu0 %v3618
  %4244 = vmatprep.subr.bf16.mxu0 %v3609
  %4245 = vmatpush1.bf16.msra.mxu0 %v3608
  %4246 = vmatprep.subr.bf16.mxu0 %v3599
  %4247 = vmatpush1.bf16.msra.mxu0 %v3598
  %4248 = vmatprep.subr.bf16.mxu0 %v3589
  %4249 = vmatpush1.bf16.msra.mxu0 %v3588
  %4250 = vmatprep.subr.bf16.mxu0 %v3579
  %4251 = vmatpush1.bf16.msra.mxu0 %v3578
  %4252 = vmatprep.subr.bf16.mxu0 %v3569
  %4253 = vmatpush1.bf16.msra.mxu0 %v3568
  %4254 = vmatprep.subr.bf16.mxu0 0
  %4255 = vmatpush2.bf16.msra.mxu0 0
  %4256 = vmatprep.subr.bf16.mxu0 0
  %4257 = vmatpush2.bf16.msra.mxu0 0
  %4258 = vmatprep.subr.bf16.mxu0 0
  %4259 = vmatpush2.bf16.msra.mxu0 0
  %4260 = vmatprep.subr.bf16.mxu0 0
  %4261 = vmatpush2.bf16.msra.mxu0 0
  %4262 = vmatprep.subr.bf16.mxu0 0
  %4263 = vmatpush2.bf16.msra.mxu0 0
  %4264 = vmatprep.subr.bf16.mxu0 0
  %4265 = vmatpush2.bf16.msra.mxu0 0
  %4266 = vmatprep.subr.bf16.mxu0 0
  %4267 = vmatpush2.bf16.msra.mxu0 0
  %4268 = vmatprep.subr.bf16.mxu0 %v3649
  %4269 = vmatpush2.bf16.msra.mxu0 %v3648
  %4270 = vmatprep.mubr.bf16.mxu0 %v3744
  %4271 = vmatmul.mubr.bf16.gmra.mxu0 %v3256
  %v4272 = vpop.f32.mrf.mxu0
  %v4273 = vadd.f32 0.0, %v4272
  %v4274 = vpop.f32.mrf.mxu0
  %v4275 = vadd.f32 0.0, %v4274
  %v4276 = vpop.f32.mrf.mxu0
  %v4277 = vadd.f32 0.0, %v4276
  %v4278 = vpop.f32.mrf.mxu0
  %v4279 = vadd.f32 0.0, %v4278
  %4280 = vmatprep.mubr.bf16.mxu0 %v3747
  %4281 = vmatmul.mubr.bf16.gmra.mxu0 %v3258
  %v4282 = vpop.f32.mrf.mxu0
  %v4283 = vadd.f32 0.0, %v4282
  %v4284 = vpop.f32.mrf.mxu0
  %v4285 = vadd.f32 0.0, %v4284
  %v4286 = vpop.f32.mrf.mxu0
  %v4287 = vadd.f32 0.0, %v4286
  %v4288 = vpop.f32.mrf.mxu0
  %v4289 = vadd.f32 0.0, %v4288
  %4290 = vmatprep.mubr.bf16.mxu0 %v3750
  %4291 = vmatmul.mubr.bf16.gmra.mxu0 %v3260
  %v4292 = vpop.f32.mrf.mxu0
  %v4293 = vadd.f32 0.0, %v4292
  %v4294 = vpop.f32.mrf.mxu0
  %v4295 = vadd.f32 0.0, %v4294
  %v4296 = vpop.f32.mrf.mxu0
  %v4297 = vadd.f32 0.0, %v4296
  %v4298 = vpop.f32.mrf.mxu0
  %v4299 = vadd.f32 0.0, %v4298
  %4300 = vmatprep.mubr.bf16.mxu0 %v3753
  %4301 = vmatmul.mubr.bf16.gmra.mxu0 %v3262
  %v4302 = vpop.f32.mrf.mxu0
  %v4303 = vadd.f32 0.0, %v4302
  %v4304 = vpop.f32.mrf.mxu0
  %v4305 = vadd.f32 0.0, %v4304
  %v4306 = vpop.f32.mrf.mxu0
  %v4307 = vadd.f32 0.0, %v4306
  %v4308 = vpop.f32.mrf.mxu0
  %v4309 = vadd.f32 0.0, %v4308
  %4310 = vmatprep.mubr.bf16.mxu0 %v3756
  %4311 = vmatmul.mubr.bf16.gmra.mxu0 %v3264
  %v4312 = vpop.f32.mrf.mxu0
  %v4313 = vadd.f32 0.0, %v4312
  %v4314 = vpop.f32.mrf.mxu0
  %v4315 = vadd.f32 0.0, %v4314
  %v4316 = vpop.f32.mrf.mxu0
  %v4317 = vadd.f32 0.0, %v4316
  %v4318 = vpop.f32.mrf.mxu0
  %v4319 = vadd.f32 0.0, %v4318
  %4320 = vmatprep.mubr.bf16.mxu0 %v3759
  %4321 = vmatmul.mubr.bf16.gmra.mxu0 %v3266
  %v4322 = vpop.f32.mrf.mxu0
  %v4323 = vadd.f32 0.0, %v4322
  %v4324 = vpop.f32.mrf.mxu0
  %v4325 = vadd.f32 0.0, %v4324
  %v4326 = vpop.f32.mrf.mxu0
  %v4327 = vadd.f32 0.0, %v4326
  %v4328 = vpop.f32.mrf.mxu0
  %v4329 = vadd.f32 0.0, %v4328
  %4330 = vmatprep.mubr.bf16.mxu0 %v3762
  %4331 = vmatmul.mubr.bf16.gmra.mxu0 %v3268
  %v4332 = vpop.f32.mrf.mxu0
  %v4333 = vadd.f32 0.0, %v4332
  %v4334 = vpop.f32.mrf.mxu0
  %v4335 = vadd.f32 0.0, %v4334
  %v4336 = vpop.f32.mrf.mxu0
  %v4337 = vadd.f32 0.0, %v4336
  %v4338 = vpop.f32.mrf.mxu0
  %v4339 = vadd.f32 0.0, %v4338
  %4340 = vmatprep.mubr.bf16.mxu0 %v3765
  %4341 = vmatmul.mubr.bf16.gmra.mxu0 %v3270
  %v4342 = vpop.f32.mrf.mxu0
  %v4343 = vadd.f32 0.0, %v4342
  %v4344 = vpop.f32.mrf.mxu0
  %v4345 = vadd.f32 0.0, %v4344
  %v4346 = vpop.f32.mrf.mxu0
  %v4347 = vadd.f32 0.0, %v4346
  %v4348 = vpop.f32.mrf.mxu0
  %v4349 = vadd.f32 0.0, %v4348
  %4350 = vmatprep.mubr.bf16.mxu0 %v3768
  %4351 = vmatmul.mubr.bf16.gmra.mxu0 %v3272
  %v4352 = vpop.f32.mrf.mxu0
  %v4353 = vadd.f32 0.0, %v4352
  %v4354 = vpop.f32.mrf.mxu0
  %v4355 = vadd.f32 0.0, %v4354
  %v4356 = vpop.f32.mrf.mxu0
  %v4357 = vadd.f32 0.0, %v4356
  %v4358 = vpop.f32.mrf.mxu0
  %v4359 = vadd.f32 0.0, %v4358
  %4360 = vmatprep.mubr.bf16.mxu0 %v3771
  %4361 = vmatmul.mubr.bf16.gmra.mxu0 %v3274
  %v4362 = vpop.f32.mrf.mxu0
  %v4363 = vadd.f32 0.0, %v4362
  %v4364 = vpop.f32.mrf.mxu0
  %v4365 = vadd.f32 0.0, %v4364
  %v4366 = vpop.f32.mrf.mxu0
  %v4367 = vadd.f32 0.0, %v4366
  %v4368 = vpop.f32.mrf.mxu0
  %v4369 = vadd.f32 0.0, %v4368
  %4370 = vmatprep.mubr.bf16.mxu0 %v3774
  %4371 = vmatmul.mubr.bf16.gmra.mxu0 %v3276
  %v4372 = vpop.f32.mrf.mxu0
  %v4373 = vadd.f32 0.0, %v4372
  %v4374 = vpop.f32.mrf.mxu0
  %v4375 = vadd.f32 0.0, %v4374
  %v4376 = vpop.f32.mrf.mxu0
  %v4377 = vadd.f32 0.0, %v4376
  %v4378 = vpop.f32.mrf.mxu0
  %v4379 = vadd.f32 0.0, %v4378
  %4380 = vmatprep.mubr.bf16.mxu0 %v3777
  %4381 = vmatmul.mubr.bf16.gmra.mxu0 %v3278
  %v4382 = vpop.f32.mrf.mxu0
  %v4383 = vadd.f32 0.0, %v4382
  %v4384 = vpop.f32.mrf.mxu0
  %v4385 = vadd.f32 0.0, %v4384
  %v4386 = vpop.f32.mrf.mxu0
  %v4387 = vadd.f32 0.0, %v4386
  %v4388 = vpop.f32.mrf.mxu0
  %v4389 = vadd.f32 0.0, %v4388
  %4390 = vdwg.mxu0
  %4391 = vmatprep.subr.bf16.mxu0 %v3641
  %4392 = vmatpush1.bf16.msra.mxu0 %v3640
  %4393 = vmatprep.subr.bf16.mxu0 %v3631
  %4394 = vmatpush1.bf16.msra.mxu0 %v3630
  %4395 = vmatprep.subr.bf16.mxu0 %v3621
  %4396 = vmatpush1.bf16.msra.mxu0 %v3620
  %4397 = vmatprep.subr.bf16.mxu0 %v3611
  %4398 = vmatpush1.bf16.msra.mxu0 %v3610
  %4399 = vmatprep.subr.bf16.mxu0 %v3601
  %4400 = vmatpush1.bf16.msra.mxu0 %v3600
  %4401 = vmatprep.subr.bf16.mxu0 %v3591
  %4402 = vmatpush1.bf16.msra.mxu0 %v3590
  %4403 = vmatprep.subr.bf16.mxu0 %v3581
  %4404 = vmatpush1.bf16.msra.mxu0 %v3580
  %4405 = vmatprep.subr.bf16.mxu0 %v3571
  %4406 = vmatpush1.bf16.msra.mxu0 %v3570
  %4407 = vmatprep.subr.bf16.mxu0 0
  %4408 = vmatpush2.bf16.msra.mxu0 0
  %4409 = vmatprep.subr.bf16.mxu0 0
  %4410 = vmatpush2.bf16.msra.mxu0 0
  %4411 = vmatprep.subr.bf16.mxu0 0
  %4412 = vmatpush2.bf16.msra.mxu0 0
  %4413 = vmatprep.subr.bf16.mxu0 0
  %4414 = vmatpush2.bf16.msra.mxu0 0
  %4415 = vmatprep.subr.bf16.mxu0 0
  %4416 = vmatpush2.bf16.msra.mxu0 0
  %4417 = vmatprep.subr.bf16.mxu0 0
  %4418 = vmatpush2.bf16.msra.mxu0 0
  %4419 = vmatprep.subr.bf16.mxu0 0
  %4420 = vmatpush2.bf16.msra.mxu0 0
  %4421 = vmatprep.subr.bf16.mxu0 %v3651
  %4422 = vmatpush2.bf16.msra.mxu0 %v3650
  %4423 = vmatprep.mubr.bf16.mxu0 %v3744
  %4424 = vmatmul.mubr.bf16.gmra.mxu0 %v3256
  %v4425 = vpop.f32.mrf.mxu0
  %v4426 = vadd.f32 0.0, %v4425
  %v4427 = vpop.f32.mrf.mxu0
  %v4428 = vadd.f32 0.0, %v4427
  %v4429 = vpop.f32.mrf.mxu0
  %v4430 = vadd.f32 0.0, %v4429
  %v4431 = vpop.f32.mrf.mxu0
  %v4432 = vadd.f32 0.0, %v4431
  %4433 = vmatprep.mubr.bf16.mxu0 %v3747
  %4434 = vmatmul.mubr.bf16.gmra.mxu0 %v3258
  %v4435 = vpop.f32.mrf.mxu0
  %v4436 = vadd.f32 0.0, %v4435
  %v4437 = vpop.f32.mrf.mxu0
  %v4438 = vadd.f32 0.0, %v4437
  %v4439 = vpop.f32.mrf.mxu0
  %v4440 = vadd.f32 0.0, %v4439
  %v4441 = vpop.f32.mrf.mxu0
  %v4442 = vadd.f32 0.0, %v4441
  %4443 = vmatprep.mubr.bf16.mxu0 %v3750
  %4444 = vmatmul.mubr.bf16.gmra.mxu0 %v3260
  %v4445 = vpop.f32.mrf.mxu0
  %v4446 = vadd.f32 0.0, %v4445
  %v4447 = vpop.f32.mrf.mxu0
  %v4448 = vadd.f32 0.0, %v4447
  %v4449 = vpop.f32.mrf.mxu0
  %v4450 = vadd.f32 0.0, %v4449
  %v4451 = vpop.f32.mrf.mxu0
  %v4452 = vadd.f32 0.0, %v4451
  %4453 = vmatprep.mubr.bf16.mxu0 %v3753
  %4454 = vmatmul.mubr.bf16.gmra.mxu0 %v3262
  %v4455 = vpop.f32.mrf.mxu0
  %v4456 = vadd.f32 0.0, %v4455
  %v4457 = vpop.f32.mrf.mxu0
  %v4458 = vadd.f32 0.0, %v4457
  %v4459 = vpop.f32.mrf.mxu0
  %v4460 = vadd.f32 0.0, %v4459
  %v4461 = vpop.f32.mrf.mxu0
  %v4462 = vadd.f32 0.0, %v4461
  %4463 = vmatprep.mubr.bf16.mxu0 %v3756
  %4464 = vmatmul.mubr.bf16.gmra.mxu0 %v3264
  %v4465 = vpop.f32.mrf.mxu0
  %v4466 = vadd.f32 0.0, %v4465
  %v4467 = vpop.f32.mrf.mxu0
  %v4468 = vadd.f32 0.0, %v4467
  %v4469 = vpop.f32.mrf.mxu0
  %v4470 = vadd.f32 0.0, %v4469
  %v4471 = vpop.f32.mrf.mxu0
  %v4472 = vadd.f32 0.0, %v4471
  %4473 = vmatprep.mubr.bf16.mxu0 %v3759
  %4474 = vmatmul.mubr.bf16.gmra.mxu0 %v3266
  %v4475 = vpop.f32.mrf.mxu0
  %v4476 = vadd.f32 0.0, %v4475
  %v4477 = vpop.f32.mrf.mxu0
  %v4478 = vadd.f32 0.0, %v4477
  %v4479 = vpop.f32.mrf.mxu0
  %v4480 = vadd.f32 0.0, %v4479
  %v4481 = vpop.f32.mrf.mxu0
  %v4482 = vadd.f32 0.0, %v4481
  %4483 = vmatprep.mubr.bf16.mxu0 %v3762
  %4484 = vmatmul.mubr.bf16.gmra.mxu0 %v3268
  %v4485 = vpop.f32.mrf.mxu0
  %v4486 = vadd.f32 0.0, %v4485
  %v4487 = vpop.f32.mrf.mxu0
  %v4488 = vadd.f32 0.0, %v4487
  %v4489 = vpop.f32.mrf.mxu0
  %v4490 = vadd.f32 0.0, %v4489
  %v4491 = vpop.f32.mrf.mxu0
  %v4492 = vadd.f32 0.0, %v4491
  %4493 = vmatprep.mubr.bf16.mxu0 %v3765
  %4494 = vmatmul.mubr.bf16.gmra.mxu0 %v3270
  %v4495 = vpop.f32.mrf.mxu0
  %v4496 = vadd.f32 0.0, %v4495
  %v4497 = vpop.f32.mrf.mxu0
  %v4498 = vadd.f32 0.0, %v4497
  %v4499 = vpop.f32.mrf.mxu0
  %v4500 = vadd.f32 0.0, %v4499
  %v4501 = vpop.f32.mrf.mxu0
  %v4502 = vadd.f32 0.0, %v4501
  %4503 = vmatprep.mubr.bf16.mxu0 %v3768
  %4504 = vmatmul.mubr.bf16.gmra.mxu0 %v3272
  %v4505 = vpop.f32.mrf.mxu0
  %v4506 = vadd.f32 0.0, %v4505
  %v4507 = vpop.f32.mrf.mxu0
  %v4508 = vadd.f32 0.0, %v4507
  %v4509 = vpop.f32.mrf.mxu0
  %v4510 = vadd.f32 0.0, %v4509
  %v4511 = vpop.f32.mrf.mxu0
  %v4512 = vadd.f32 0.0, %v4511
  %4513 = vmatprep.mubr.bf16.mxu0 %v3771
  %4514 = vmatmul.mubr.bf16.gmra.mxu0 %v3274
  %v4515 = vpop.f32.mrf.mxu0
  %v4516 = vadd.f32 0.0, %v4515
  %v4517 = vpop.f32.mrf.mxu0
  %v4518 = vadd.f32 0.0, %v4517
  %v4519 = vpop.f32.mrf.mxu0
  %v4520 = vadd.f32 0.0, %v4519
  %v4521 = vpop.f32.mrf.mxu0
  %v4522 = vadd.f32 0.0, %v4521
  %4523 = vmatprep.mubr.bf16.mxu0 %v3774
  %4524 = vmatmul.mubr.bf16.gmra.mxu0 %v3276
  %v4525 = vpop.f32.mrf.mxu0
  %v4526 = vadd.f32 0.0, %v4525
  %v4527 = vpop.f32.mrf.mxu0
  %v4528 = vadd.f32 0.0, %v4527
  %v4529 = vpop.f32.mrf.mxu0
  %v4530 = vadd.f32 0.0, %v4529
  %v4531 = vpop.f32.mrf.mxu0
  %v4532 = vadd.f32 0.0, %v4531
  %4533 = vmatprep.mubr.bf16.mxu0 %v3777
  %4534 = vmatmul.mubr.bf16.gmra.mxu0 %v3278
  %v4535 = vpop.f32.mrf.mxu0
  %v4536 = vadd.f32 0.0, %v4535
  %v4537 = vpop.f32.mrf.mxu0
  %v4538 = vadd.f32 0.0, %v4537
  %v4539 = vpop.f32.mrf.mxu0
  %v4540 = vadd.f32 0.0, %v4539
  %v4541 = vpop.f32.mrf.mxu0
  %v4542 = vadd.f32 0.0, %v4541
  %4543 = vdwg.mxu0
  %4544 = vst [vmem:[%s3] sm:$0xff] %v3814
  %4545 = vst [vmem:[%s3 + $0x8] sm:$0xff] %v3816
  %4546 = vst [vmem:[%s3 + $0x10] sm:$0xff] %v3967
  %4547 = vst [vmem:[%s3 + $0x18] sm:$0xff] %v3969
  %4548 = vst [vmem:[%s3 + $0x20] sm:$0xff] %v4120
  %4549 = vst [vmem:[%s3 + $0x28] sm:$0xff] %v4122
  %4550 = vst [vmem:[%s3 + $0x30] sm:$0xff] %v4273
  %4551 = vst [vmem:[%s3 + $0x38] sm:$0xff] %v4275
  %4552 = vst [vmem:[%s3 + $0x40] sm:$0xff] %v4426
  %4553 = vst [vmem:[%s3 + $0x48] sm:$0xff] %v4428
  %4554 = vst [vmem:[%s3 + $0x50] sm:$0xff] %v3818
  %4555 = vst [vmem:[%s3 + $0x58] sm:$0xff] %v3820
  %4556 = vst [vmem:[%s3 + $0x60] sm:$0xff] %v3971
  %4557 = vst [vmem:[%s3 + $0x68] sm:$0xff] %v3973
  %4558 = vst [vmem:[%s3 + $0x70] sm:$0xff] %v4124
  %4559 = vst [vmem:[%s3 + $0x78] sm:$0xff] %v4126
  %4560 = vst [vmem:[%s3 + $0x80] sm:$0xff] %v4277
  %4561 = vst [vmem:[%s3 + $0x88] sm:$0xff] %v4279
  %4562 = vst [vmem:[%s3 + $0x90] sm:$0xff] %v4430
  %4563 = vst [vmem:[%s3 + $0x98] sm:$0xff] %v4432
  %4564 = vst [vmem:[%s3 + $0xa0] sm:$0xff] %v3824
  %4565 = vst [vmem:[%s3 + $0xa8] sm:$0xff] %v3826
  %4566 = vst [vmem:[%s3 + $0xb0] sm:$0xff] %v3977
  %4567 = vst [vmem:[%s3 + $0xb8] sm:$0xff] %v3979
  %4568 = vst [vmem:[%s3 + $0xc0] sm:$0xff] %v4130
  %4569 = vst [vmem:[%s3 + $0xc8] sm:$0xff] %v4132
  %4570 = vst [vmem:[%s3 + $0xd0] sm:$0xff] %v4283
  %4571 = vst [vmem:[%s3 + $0xd8] sm:$0xff] %v4285
  %4572 = vst [vmem:[%s3 + $0xe0] sm:$0xff] %v4436
  %4573 = vst [vmem:[%s3 + $0xe8] sm:$0xff] %v4438
  %4574 = vst [vmem:[%s3 + $0xf0] sm:$0xff] %v3828
  %4575 = vst [vmem:[%s3 + $0xf8] sm:$0xff] %v3830
  %4576 = vst [vmem:[%s3 + $0x100] sm:$0xff] %v3981
  %4577 = vst [vmem:[%s3 + $0x108] sm:$0xff] %v3983
  %4578 = vst [vmem:[%s3 + $0x110] sm:$0xff] %v4134
  %4579 = vst [vmem:[%s3 + $0x118] sm:$0xff] %v4136
  %4580 = vst [vmem:[%s3 + $0x120] sm:$0xff] %v4287
  %4581 = vst [vmem:[%s3 + $0x128] sm:$0xff] %v4289
  %4582 = vst [vmem:[%s3 + $0x130] sm:$0xff] %v4440
  %4583 = vst [vmem:[%s3 + $0x138] sm:$0xff] %v4442
  %4584 = vst [vmem:[%s3 + $0x140] sm:$0xff] %v3834
  %4585 = vst [vmem:[%s3 + $0x148] sm:$0xff] %v3836
  %4586 = vst [vmem:[%s3 + $0x150] sm:$0xff] %v3987
  %4587 = vst [vmem:[%s3 + $0x158] sm:$0xff] %v3989
  %4588 = vst [vmem:[%s3 + $0x160] sm:$0xff] %v4140
  %4589 = vst [vmem:[%s3 + $0x168] sm:$0xff] %v4142
  %4590 = vst [vmem:[%s3 + $0x170] sm:$0xff] %v4293
  %4591 = vst [vmem:[%s3 + $0x178] sm:$0xff] %v4295
  %4592 = vst [vmem:[%s3 + $0x180] sm:$0xff] %v4446
  %4593 = vst [vmem:[%s3 + $0x188] sm:$0xff] %v4448
  %4594 = vst [vmem:[%s3 + $0x190] sm:$0xff] %v3838
  %4595 = vst [vmem:[%s3 + $0x198] sm:$0xff] %v3840
  %4596 = vst [vmem:[%s3 + $0x1a0] sm:$0xff] %v3991
  %4597 = vst [vmem:[%s3 + $0x1a8] sm:$0xff] %v3993
  %4598 = vst [vmem:[%s3 + $0x1b0] sm:$0xff] %v4144
  %4599 = vst [vmem:[%s3 + $0x1b8] sm:$0xff] %v4146
  %4600 = vst [vmem:[%s3 + $0x1c0] sm:$0xff] %v4297
  %4601 = vst [vmem:[%s3 + $0x1c8] sm:$0xff] %v4299
  %4602 = vst [vmem:[%s3 + $0x1d0] sm:$0xff] %v4450
  %4603 = vst [vmem:[%s3 + $0x1d8] sm:$0xff] %v4452
  %4604 = vst [vmem:[%s3 + $0x1e0] sm:$0xff] %v3844
  %4605 = vst [vmem:[%s3 + $0x1e8] sm:$0xff] %v3846
  %4606 = vst [vmem:[%s3 + $0x1f0] sm:$0xff] %v3997
  %4607 = vst [vmem:[%s3 + $0x1f8] sm:$0xff] %v3999
  %4608 = vst [vmem:[%s3 + $0x200] sm:$0xff] %v4150
  %4609 = vst [vmem:[%s3 + $0x208] sm:$0xff] %v4152
  %4610 = vst [vmem:[%s3 + $0x210] sm:$0xff] %v4303
  %4611 = vst [vmem:[%s3 + $0x218] sm:$0xff] %v4305
  %4612 = vst [vmem:[%s3 + $0x220] sm:$0xff] %v4456
  %4613 = vst [vmem:[%s3 + $0x228] sm:$0xff] %v4458
  %4614 = vst [vmem:[%s3 + $0x230] sm:$0xff] %v3848
  %4615 = vst [vmem:[%s3 + $0x238] sm:$0xff] %v3850
  %4616 = vst [vmem:[%s3 + $0x240] sm:$0xff] %v4001
  %4617 = vst [vmem:[%s3 + $0x248] sm:$0xff] %v4003
  %4618 = vst [vmem:[%s3 + $0x250] sm:$0xff] %v4154
  %4619 = vst [vmem:[%s3 + $0x258] sm:$0xff] %v4156
  %4620 = vst [vmem:[%s3 + $0x260] sm:$0xff] %v4307
  %4621 = vst [vmem:[%s3 + $0x268] sm:$0xff] %v4309
  %4622 = vst [vmem:[%s3 + $0x270] sm:$0xff] %v4460
  %4623 = vst [vmem:[%s3 + $0x278] sm:$0xff] %v4462
  %4624 = vst [vmem:[%s3 + $0x280] sm:$0xff] %v3854
  %4625 = vst [vmem:[%s3 + $0x288] sm:$0xff] %v3856
  %4626 = vst [vmem:[%s3 + $0x290] sm:$0xff] %v4007
  %4627 = vst [vmem:[%s3 + $0x298] sm:$0xff] %v4009
  %4628 = vst [vmem:[%s3 + $0x2a0] sm:$0xff] %v4160
  %4629 = vst [vmem:[%s3 + $0x2a8] sm:$0xff] %v4162
  %4630 = vst [vmem:[%s3 + $0x2b0] sm:$0xff] %v4313
  %4631 = vst [vmem:[%s3 + $0x2b8] sm:$0xff] %v4315
  %4632 = vst [vmem:[%s3 + $0x2c0] sm:$0xff] %v4466
  %4633 = vst [vmem:[%s3 + $0x2c8] sm:$0xff] %v4468
  %4634 = vst [vmem:[%s3 + $0x2d0] sm:$0xff] %v3858
  %4635 = vst [vmem:[%s3 + $0x2d8] sm:$0xff] %v3860
  %4636 = vst [vmem:[%s3 + $0x2e0] sm:$0xff] %v4011
  %4637 = vst [vmem:[%s3 + $0x2e8] sm:$0xff] %v4013
  %4638 = vst [vmem:[%s3 + $0x2f0] sm:$0xff] %v4164
  %4639 = vst [vmem:[%s3 + $0x2f8] sm:$0xff] %v4166
  %4640 = vst [vmem:[%s3 + $0x300] sm:$0xff] %v4317
  %4641 = vst [vmem:[%s3 + $0x308] sm:$0xff] %v4319
  %4642 = vst [vmem:[%s3 + $0x310] sm:$0xff] %v4470
  %4643 = vst [vmem:[%s3 + $0x318] sm:$0xff] %v4472
  %4644 = vst [vmem:[%s3 + $0x320] sm:$0xff] %v3864
  %4645 = vst [vmem:[%s3 + $0x328] sm:$0xff] %v3866
  %4646 = vst [vmem:[%s3 + $0x330] sm:$0xff] %v4017
  %4647 = vst [vmem:[%s3 + $0x338] sm:$0xff] %v4019
  %4648 = vst [vmem:[%s3 + $0x340] sm:$0xff] %v4170
  %4649 = vst [vmem:[%s3 + $0x348] sm:$0xff] %v4172
  %4650 = vst [vmem:[%s3 + $0x350] sm:$0xff] %v4323
  %4651 = vst [vmem:[%s3 + $0x358] sm:$0xff] %v4325
  %4652 = vst [vmem:[%s3 + $0x360] sm:$0xff] %v4476
  %4653 = vst [vmem:[%s3 + $0x368] sm:$0xff] %v4478
  %4654 = vst [vmem:[%s3 + $0x370] sm:$0xff] %v3868
  %4655 = vst [vmem:[%s3 + $0x378] sm:$0xff] %v3870
  %4656 = vst [vmem:[%s3 + $0x380] sm:$0xff] %v4021
  %4657 = vst [vmem:[%s3 + $0x388] sm:$0xff] %v4023
  %4658 = vst [vmem:[%s3 + $0x390] sm:$0xff] %v4174
  %4659 = vst [vmem:[%s3 + $0x398] sm:$0xff] %v4176
  %4660 = vst [vmem:[%s3 + $0x3a0] sm:$0xff] %v4327
  %4661 = vst [vmem:[%s3 + $0x3a8] sm:$0xff] %v4329
  %4662 = vst [vmem:[%s3 + $0x3b0] sm:$0xff] %v4480
  %4663 = vst [vmem:[%s3 + $0x3b8] sm:$0xff] %v4482
  %4664 = vst [vmem:[%s3 + $0x3c0] sm:$0xff] %v3874
  %4665 = vst [vmem:[%s3 + $0x3c8] sm:$0xff] %v3876
  %4666 = vst [vmem:[%s3 + $0x3d0] sm:$0xff] %v4027
  %4667 = vst [vmem:[%s3 + $0x3d8] sm:$0xff] %v4029
  %4668 = vst [vmem:[%s3 + $0x3e0] sm:$0xff] %v4180
  %4669 = vst [vmem:[%s3 + $0x3e8] sm:$0xff] %v4182
  %4670 = vst [vmem:[%s3 + $0x3f0] sm:$0xff] %v4333
  %4671 = vst [vmem:[%s3 + $0x3f8] sm:$0xff] %v4335
  %4672 = vst [vmem:[%s3 + $0x400] sm:$0xff] %v4486
  %4673 = vst [vmem:[%s3 + $0x408] sm:$0xff] %v4488
  %4674 = vst [vmem:[%s3 + $0x410] sm:$0xff] %v3878
  %4675 = vst [vmem:[%s3 + $0x418] sm:$0xff] %v3880
  %4676 = vst [vmem:[%s3 + $0x420] sm:$0xff] %v4031
  %4677 = vst [vmem:[%s3 + $0x428] sm:$0xff] %v4033
  %4678 = vst [vmem:[%s3 + $0x430] sm:$0xff] %v4184
  %4679 = vst [vmem:[%s3 + $0x438] sm:$0xff] %v4186
  %4680 = vst [vmem:[%s3 + $0x440] sm:$0xff] %v4337
  %4681 = vst [vmem:[%s3 + $0x448] sm:$0xff] %v4339
  %4682 = vst [vmem:[%s3 + $0x450] sm:$0xff] %v4490
  %4683 = vst [vmem:[%s3 + $0x458] sm:$0xff] %v4492
  %4684 = vst [vmem:[%s3 + $0x460] sm:$0xff] %v3884
  %4685 = vst [vmem:[%s3 + $0x468] sm:$0xff] %v3886
  %4686 = vst [vmem:[%s3 + $0x470] sm:$0xff] %v4037
  %4687 = vst [vmem:[%s3 + $0x478] sm:$0xff] %v4039
  %4688 = vst [vmem:[%s3 + $0x480] sm:$0xff] %v4190
  %4689 = vst [vmem:[%s3 + $0x488] sm:$0xff] %v4192
  %4690 = vst [vmem:[%s3 + $0x490] sm:$0xff] %v4343
  %4691 = vst [vmem:[%s3 + $0x498] sm:$0xff] %v4345
  %4692 = vst [vmem:[%s3 + $0x4a0] sm:$0xff] %v4496
  %4693 = vst [vmem:[%s3 + $0x4a8] sm:$0xff] %v4498
  %4694 = vst [vmem:[%s3 + $0x4b0] sm:$0xff] %v3888
  %4695 = vst [vmem:[%s3 + $0x4b8] sm:$0xff] %v3890
  %4696 = vst [vmem:[%s3 + $0x4c0] sm:$0xff] %v4041
  %4697 = vst [vmem:[%s3 + $0x4c8] sm:$0xff] %v4043
  %4698 = vst [vmem:[%s3 + $0x4d0] sm:$0xff] %v4194
  %4699 = vst [vmem:[%s3 + $0x4d8] sm:$0xff] %v4196
  %4700 = vst [vmem:[%s3 + $0x4e0] sm:$0xff] %v4347
  %4701 = vst [vmem:[%s3 + $0x4e8] sm:$0xff] %v4349
  %4702 = vst [vmem:[%s3 + $0x4f0] sm:$0xff] %v4500
  %4703 = vst [vmem:[%s3 + $0x4f8] sm:$0xff] %v4502
  %4704 = vst [vmem:[%s3 + $0x500] sm:$0xff] %v3894
  %4705 = vst [vmem:[%s3 + $0x508] sm:$0xff] %v3896
  %4706 = vst [vmem:[%s3 + $0x510] sm:$0xff] %v4047
  %4707 = vst [vmem:[%s3 + $0x518] sm:$0xff] %v4049
  %4708 = vst [vmem:[%s3 + $0x520] sm:$0xff] %v4200
  %4709 = vst [vmem:[%s3 + $0x528] sm:$0xff] %v4202
  %4710 = vst [vmem:[%s3 + $0x530] sm:$0xff] %v4353
  %4711 = vst [vmem:[%s3 + $0x538] sm:$0xff] %v4355
  %4712 = vst [vmem:[%s3 + $0x540] sm:$0xff] %v4506
  %4713 = vst [vmem:[%s3 + $0x548] sm:$0xff] %v4508
  %4714 = vst [vmem:[%s3 + $0x550] sm:$0xff] %v3898
  %4715 = vst [vmem:[%s3 + $0x558] sm:$0xff] %v3900
  %4716 = vst [vmem:[%s3 + $0x560] sm:$0xff] %v4051
  %4717 = vst [vmem:[%s3 + $0x568] sm:$0xff] %v4053
  %4718 = vst [vmem:[%s3 + $0x570] sm:$0xff] %v4204
  %4719 = vst [vmem:[%s3 + $0x578] sm:$0xff] %v4206
  %4720 = vst [vmem:[%s3 + $0x580] sm:$0xff] %v4357
  %4721 = vst [vmem:[%s3 + $0x588] sm:$0xff] %v4359
  %4722 = vst [vmem:[%s3 + $0x590] sm:$0xff] %v4510
  %4723 = vst [vmem:[%s3 + $0x598] sm:$0xff] %v4512
  %4724 = vst [vmem:[%s3 + $0x5a0] sm:$0xff] %v3904
  %4725 = vst [vmem:[%s3 + $0x5a8] sm:$0xff] %v3906
  %4726 = vst [vmem:[%s3 + $0x5b0] sm:$0xff] %v4057
  %4727 = vst [vmem:[%s3 + $0x5b8] sm:$0xff] %v4059
  %4728 = vst [vmem:[%s3 + $0x5c0] sm:$0xff] %v4210
  %4729 = vst [vmem:[%s3 + $0x5c8] sm:$0xff] %v4212
  %4730 = vst [vmem:[%s3 + $0x5d0] sm:$0xff] %v4363
  %4731 = vst [vmem:[%s3 + $0x5d8] sm:$0xff] %v4365
  %4732 = vst [vmem:[%s3 + $0x5e0] sm:$0xff] %v4516
  %4733 = vst [vmem:[%s3 + $0x5e8] sm:$0xff] %v4518
  %4734 = vst [vmem:[%s3 + $0x5f0] sm:$0xff] %v3908
  %4735 = vst [vmem:[%s3 + $0x5f8] sm:$0xff] %v3910
  %4736 = vst [vmem:[%s3 + $0x600] sm:$0xff] %v4061
  %4737 = vst [vmem:[%s3 + $0x608] sm:$0xff] %v4063
  %4738 = vst [vmem:[%s3 + $0x610] sm:$0xff] %v4214
  %4739 = vst [vmem:[%s3 + $0x618] sm:$0xff] %v4216
  %4740 = vst [vmem:[%s3 + $0x620] sm:$0xff] %v4367
  %4741 = vst [vmem:[%s3 + $0x628] sm:$0xff] %v4369
  %4742 = vst [vmem:[%s3 + $0x630] sm:$0xff] %v4520
  %4743 = vst [vmem:[%s3 + $0x638] sm:$0xff] %v4522
  %4744 = vst [vmem:[%s3 + $0x640] sm:$0xff] %v3914
  %4745 = vst [vmem:[%s3 + $0x648] sm:$0xff] %v3916
  %4746 = vst [vmem:[%s3 + $0x650] sm:$0xff] %v4067
  %4747 = vst [vmem:[%s3 + $0x658] sm:$0xff] %v4069
  %4748 = vst [vmem:[%s3 + $0x660] sm:$0xff] %v4220
  %4749 = vst [vmem:[%s3 + $0x668] sm:$0xff] %v4222
  %4750 = vst [vmem:[%s3 + $0x670] sm:$0xff] %v4373
  %4751 = vst [vmem:[%s3 + $0x678] sm:$0xff] %v4375
  %4752 = vst [vmem:[%s3 + $0x680] sm:$0xff] %v4526
  %4753 = vst [vmem:[%s3 + $0x688] sm:$0xff] %v4528
  %4754 = vst [vmem:[%s3 + $0x690] sm:$0xff] %v3918
  %4755 = vst [vmem:[%s3 + $0x698] sm:$0xff] %v3920
  %4756 = vst [vmem:[%s3 + $0x6a0] sm:$0xff] %v4071
  %4757 = vst [vmem:[%s3 + $0x6a8] sm:$0xff] %v4073
  %4758 = vst [vmem:[%s3 + $0x6b0] sm:$0xff] %v4224
  %4759 = vst [vmem:[%s3 + $0x6b8] sm:$0xff] %v4226
  %4760 = vst [vmem:[%s3 + $0x6c0] sm:$0xff] %v4377
  %4761 = vst [vmem:[%s3 + $0x6c8] sm:$0xff] %v4379
  %4762 = vst [vmem:[%s3 + $0x6d0] sm:$0xff] %v4530
  %4763 = vst [vmem:[%s3 + $0x6d8] sm:$0xff] %v4532
  %4764 = vst [vmem:[%s3 + $0x6e0] sm:$0xff] %v3924
  %4765 = vst [vmem:[%s3 + $0x6e8] sm:$0xff] %v3926
  %4766 = vst [vmem:[%s3 + $0x6f0] sm:$0xff] %v4077
  %4767 = vst [vmem:[%s3 + $0x6f8] sm:$0xff] %v4079
  %4768 = vst [vmem:[%s3 + $0x700] sm:$0xff] %v4230
  %4769 = vst [vmem:[%s3 + $0x708] sm:$0xff] %v4232
  %4770 = vst [vmem:[%s3 + $0x710] sm:$0xff] %v4383
  %4771 = vst [vmem:[%s3 + $0x718] sm:$0xff] %v4385
  %4772 = vst [vmem:[%s3 + $0x720] sm:$0xff] %v4536
  %4773 = vst [vmem:[%s3 + $0x728] sm:$0xff] %v4538
  %4774 = vst [vmem:[%s3 + $0x730] sm:$0xff] %v3928
  %4775 = vst [vmem:[%s3 + $0x738] sm:$0xff] %v3930
  %4776 = vst [vmem:[%s3 + $0x740] sm:$0xff] %v4081
  %4777 = vst [vmem:[%s3 + $0x748] sm:$0xff] %v4083
  %4778 = vst [vmem:[%s3 + $0x750] sm:$0xff] %v4234
  %4779 = vst [vmem:[%s3 + $0x758] sm:$0xff] %v4236
  %4780 = vst [vmem:[%s3 + $0x760] sm:$0xff] %v4387
  %4781 = vst [vmem:[%s3 + $0x768] sm:$0xff] %v4389
  %4782 = vst [vmem:[%s3 + $0x770] sm:$0xff] %v4540
  %4783 = vst [vmem:[%s3 + $0x778] sm:$0xff] %v4542
  // Predicated region
  $region14: #{_forward.1} parent=0 // pred_check
    _
  $region15: #{_forward.1} parent=0 // pred_check_branch
    %4785 = sbr.rel (0) target = $region17
  $region16: #{_forward.1} parent=0 // pred_region
    _
  $region17: #{_forward.1} parent=0 // pred_fallthru
    _
  // Predicated region
  $region18: #{_forward.1} parent=0 // pred_check
    _
  $region19: #{_forward.1} parent=0 // pred_check_branch
    %4787 = sbr.rel (0) target = $region21
  $region20: #{_forward.1} parent=0 // pred_region
    _
  $region21: #{_forward.1} parent=0 // pred_fallthru
    _

</llo_original>
